<compile_context>
chip_gen: v6e
topology: v6e:2x2x1
jax: 0.10.0
libtpu: 0.0.40
codegen_flags: <defaults>
</compile_context>

<pallas_src>
import jax
import jax.numpy as jnp
from jax.experimental import pallas as pl
from jax.experimental.pallas import tpu as pltpu


def _tpu_vmem_capacity_bytes():
    """Best-effort VMEM capacity query (v7x: 64 MiB/TC, v5e/v6e: 128 MiB)."""
    try:
        info = pltpu.get_tpu_info()
        cap = getattr(info, "vmem_capacity_bytes", None)
        if cap:
            return int(cap)
    except Exception:
        pass
    return 128 * 1024 * 1024


# -----------------------------------------------------------------------------
# Kernel 1: per-point projections (all 1x1 convs = matmuls over channels).
# rows = B*N flattened; one fused (M, 2C) bf16 input; lane-dense outputs.
# -----------------------------------------------------------------------------
def _proj_kernel(kq_ref,
                 wv1_ref, bv1_ref, wv2_ref, bv2_ref, wvs_ref, bvs_ref,
                 wk_ref, bk_ref, wq_ref, bq_ref, wval_ref, bval_ref,
                 ident_ref, keyp_ref, qv_ref):
    bf16 = jnp.bfloat16
    f32 = jnp.float32
    C = wv2_ref.shape[0]

    kq = kq_ref[...]                       # (TM, 2C) bf16, [key | query]
    k = kq[:, :C]
    q = kq[:, C:]

    # mlp_v (MLP_Res): conv_1(cat) -> relu -> conv_2, + conv_shortcut(cat).
    # Single 2C-deep contractions (fills the 256-deep MXU on v6e/v7x).
    h = jnp.maximum(
        jnp.dot(kq, wv1_ref[...], preferred_element_type=f32) + bv1_ref[...],
        0.0)
    shortcut = jnp.dot(kq, wvs_ref[...], preferred_element_type=f32) + bvs_ref[...]
    value = (jnp.dot(h.astype(bf16), wv2_ref[...], preferred_element_type=f32)
             + bv2_ref[...] + shortcut)                           # (TM, C) f32

    ident_ref[...] = value
    keyp_ref[...] = (jnp.dot(k, wk_ref[...], preferred_element_type=f32)
                     + bk_ref[...]).astype(bf16)                  # bf16: halves gather traffic
    q_p = jnp.dot(q, wq_ref[...], preferred_element_type=f32) + bq_ref[...]
    v_p = (jnp.dot(value.astype(bf16), wval_ref[...], preferred_element_type=f32)
           + bval_ref[...])
    qv_ref[...] = jnp.concatenate([q_p, v_p], axis=-1)            # lane-dense (TM, 2D) store


# -----------------------------------------------------------------------------
# Kernel 2: positional MLP (VPU FMAs for the 3-wide contraction), attention
# MLP, softmax over K, aggregation, conv_end, residual.  Tiled over (B, N).
# Big per-neighbour tensors stay 2-D (TN*K, .) through the matmul chain.
# -----------------------------------------------------------------------------
def _attn_kernel(qv_ref, keyg_ref, posrel_ref, ident_ref,
                 wp1_ref, bp1_ref, wp2_ref, bp2_ref,
                 wa1_ref, ba1_ref, wa2_ref, ba2_ref,
                 we_ref, be_ref, out_ref):
    bf16 = jnp.bfloat16
    f32 = jnp.float32
    TN = qv_ref.shape[1]
    TNK = keyg_ref.shape[1]
    D = keyg_ref.shape[2]
    K = TNK // TN

    qv = qv_ref[0]                          # (TN, 2D) f32, [query_p | value_p]
    q = qv[:, :D]
    v = qv[:, D:]
    kg = keyg_ref[0]                        # (TN*K, D) bf16 -- no reshape of loaded slab
    pr = posrel_ref[0]                      # (TN*K, 3) f32

    # pos_mlp first layer: contraction dim is 3 -> explicit VPU FMAs, not MXU.
    wp1 = wp1_ref[...]                      # (3, PH) f32
    hp = jnp.maximum(pr[:, 0:1] * wp1[0:1, :]
                     + pr[:, 1:2] * wp1[1:2, :]
                     + pr[:, 2:3] * wp1[2:3, :]
                     + bp1_ref[...], 0.0)                         # (TN*K, PH)
    pe = (jnp.dot(hp.astype(bf16), wp2_ref[...], preferred_element_type=f32)
          + bp2_ref[...])                                         # (TN*K, D)

    # qk_rel + pos_embedding, kept as (TN*K, D) rows for the attn_mlp matmuls.
    q_rep = jnp.broadcast_to(q[:, None, :], (TN, K, D)).reshape(TNK, D)
    a_in = q_rep - kg.astype(f32) + pe                            # (TN*K, D)

    ha = jnp.maximum(
        jnp.dot(a_in.astype(bf16), wa1_ref[...], preferred_element_type=f32)
        + ba1_ref[...], 0.0)                                      # (TN*K, H)
    attn = (jnp.dot(ha.astype(bf16), wa2_ref[...], preferred_element_type=f32)
            + ba2_ref[...])                                       # (TN*K, D)

    # softmax over the K neighbours (PyTorch: softmax(dim=-1) on (B,D,N,K)).
    attn3 = attn.reshape(TN, K, D)
    attn3 = attn3 - jnp.max(attn3, axis=1, keepdims=True)
    attn3 = jnp.exp(attn3)
    attn3 = attn3 * pl.reciprocal(jnp.sum(attn3, axis=1, keepdims=True),
                                  approx=True)

    vv3 = v[:, None, :] + pe.reshape(TN, K, D)                    # (TN, K, D)
    agg = jnp.sum(attn3 * vv3, axis=1)                            # (TN, D)

    y = (jnp.dot(agg.astype(bf16), we_ref[...], preferred_element_type=f32)
         + be_ref[...])                                           # (TN, C)
    out_ref[0] = y + ident_ref[0]


# -----------------------------------------------------------------------------
# Plain-JAX glue: kNN indices (matmul-form distances + top_k) + neighbour gather
# -----------------------------------------------------------------------------
def knn_idx(pos_bn3, k):
    # pos_bn3: (B, N, 3) -> (B, N, k) int32 (include_self=True: self dist ~ 0)
    sq = jnp.sum(pos_bn3 * pos_bn3, axis=-1)                      # (B, N)
    inner = jnp.einsum('bnd,bmd->bnm', pos_bn3, pos_bn3,
                       preferred_element_type=jnp.float32)        # MXU, (B,N,N)
    d2 = sq[:, :, None] + sq[:, None, :] - 2.0 * inner
    _, idx = jax.lax.top_k(-d2, k)
    return idx


def group(feat_bnc, idx_bnk):
    # feat: (B, N, C), idx: (B, N, K) -> (B, N, K, C)
    return jax.vmap(lambda f, i: f[i])(feat_bnc, idx_bnk)


# -----------------------------------------------------------------------------
# Wrapper
# -----------------------------------------------------------------------------
def skip_transformer_forward(pos, key, query, params, n_knn):
    """pos: (B,3,N), key/query: (B,C,N)  ->  (B,C,N)"""
    B, C, N = key.shape
    D = params["wk"].shape[1]
    K = n_knn
    f32, bf16 = jnp.float32, jnp.bfloat16

    # Generation-aware limits: v7x has 64 MiB VMEM/TC (vs 128 MiB on v5e/v6e).
    vmem_cap = _tpu_vmem_capacity_bytes()
    small_vmem = vmem_cap <= 96 * 1024 * 1024
    vmem_limit = (32 if small_vmem else 48) * 1024 * 1024
    tn_cap = 128 if small_vmem else 256
    tm_cap = 1024

    key_t = jnp.transpose(key, (0, 2, 1))      # (B, N, C)
    query_t = jnp.transpose(query, (0, 2, 1))  # (B, N, C)
    pos_t = jnp.transpose(pos, (0, 2, 1))      # (B, N, 3)

    def full_spec(arr):
        nd = arr.ndim
        return pl.BlockSpec(arr.shape, lambda *_, _nd=nd: (0,) * _nd)

    # --- kernel 1: projections, fold (B, N) -> M rows, tile over M ---
    M = B * N
    TM = M if M <= tm_cap else tm_cap          # multiple of 16 or full extent
    kq = jnp.concatenate([key_t, query_t], axis=-1).reshape(M, 2 * C).astype(bf16)

    w1 = [params["wv1"].astype(bf16), params["bv1"],
          params["wv2"].astype(bf16), params["bv2"],
          params["wvs"].astype(bf16), params["bvs"],
          params["wk"].astype(bf16), params["bk"],
          params["wq"].astype(bf16), params["bq"],
          params["wval"].astype(bf16), params["bval"]]

    identity, key_p, qv = pl.pallas_call(
        _proj_kernel,
        grid=(pl.cdiv(M, TM),),
        out_shape=(
            jax.ShapeDtypeStruct((M, C), f32),
            jax.ShapeDtypeStruct((M, D), bf16),
            jax.ShapeDtypeStruct((M, 2 * D), f32),
        ),
        in_specs=[pl.BlockSpec((TM, 2 * C), lambda m: (m, 0))]
                 + [full_spec(w) for w in w1],
        out_specs=(pl.BlockSpec((TM, C), lambda m: (m, 0)),
                   pl.BlockSpec((TM, D), lambda m: (m, 0)),
                   pl.BlockSpec((TM, 2 * D), lambda m: (m, 0))),
        compiler_params=pltpu.CompilerParams(
            dimension_semantics=("parallel",),
            vmem_limit_bytes=vmem_limit),
    )(kq, *w1)

    identity = identity.reshape(B, N, C)       # f32
    key_p = key_p.reshape(B, N, D)             # bf16
    qv = qv.reshape(B, N, 2 * D)               # f32, [query_p | value_p]

    # --- glue: kNN + grouping_operation (conv(key) then group, as in PyTorch) ---
    # TODO(synk): data-dependent neighbour gather stays in XLA.
    idx = knn_idx(pos_t, K)
    key_g = group(key_p, idx).reshape(B, N * K, D)                    # bf16
    pos_rel = (pos_t[:, :, None, :] - group(pos_t, idx)).reshape(B, N * K, 3)

    # --- kernel 2: attention, tiled over (B, N); lane-dense 3-D input blocks ---
    TN = N if N <= tn_cap else tn_cap          # multiple of 8 or full extent
    w2 = [params["wp1"], params["bp1"],                        # f32: used on VPU
          params["wp2"].astype(bf16), params["bp2"],
          params["wa1"].astype(bf16), params["ba1"],
          params["wa2"].astype(bf16), params["ba2"],
          params["we"].astype(bf16), params["be"]]

    out = pl.pallas_call(
        _attn_kernel,
        grid=(B, pl.cdiv(N, TN)),
        out_shape=jax.ShapeDtypeStruct((B, N, C), f32),
        in_specs=[pl.BlockSpec((1, TN, 2 * D), lambda b, n: (b, n, 0)),
                  pl.BlockSpec((1, TN * K, D), lambda b, n: (b, n, 0)),
                  pl.BlockSpec((1, TN * K, 3), lambda b, n: (b, n, 0)),
                  pl.BlockSpec((1, TN, C), lambda b, n: (b, n, 0))]
                 + [full_spec(w) for w in w2],
        out_specs=pl.BlockSpec((1, TN, C), lambda b, n: (b, n, 0)),
        input_output_aliases={3: 0},           # identity buffer reused for output
        compiler_params=pltpu.CompilerParams(
            dimension_semantics=("parallel", "parallel"),
            vmem_limit_bytes=vmem_limit),
    )(qv, key_g, pos_rel, identity, *w2)

    return jnp.transpose(out, (0, 2, 1))       # back to (B, C, N)


# -----------------------------------------------------------------------------
# Deterministic parameter init (BatchNorm folded into preceding conv, eval mode)
# -----------------------------------------------------------------------------
def init_params(rng, C, D, pos_hidden, attn_mult):
    keys = iter(jax.random.split(rng, 40))

    def w(shape, scale=0.1):
        return (scale * jax.random.normal(next(keys), shape)).astype(jnp.float32)

    def bn_fold(wc, bc, cout):
        gamma = 1.0 + w((cout,))
        beta = w((cout,))
        mean = w((cout,))
        var = 1.0 + 0.5 * jnp.abs(jax.random.normal(next(keys), (cout,))).astype(jnp.float32)
        s = gamma / jnp.sqrt(var + 1e-5)
        return wc * s[None, :], bc * s[None, :] + (beta - mean * s)[None, :]

    p = {}
    # mlp_v (MLP_Res: conv_1, conv_2, conv_shortcut)
    p["wv1"], p["bv1"] = w((2 * C, C)), w((1, C))
    p["wv2"], p["bv2"] = w((C, C)), w((1, C))
    p["wvs"], p["bvs"] = w((2 * C, C)), w((1, C))
    # key / query / value projections
    p["wk"], p["bk"] = w((C, D)), w((1, D))
    p["wq"], p["bq"] = w((C, D)), w((1, D))
    p["wval"], p["bval"] = w((C, D)), w((1, D))
    # pos_mlp
    wp1, bp1 = w((3, pos_hidden)), w((1, pos_hidden))
    p["wp1"], p["bp1"] = bn_fold(wp1, bp1, pos_hidden)
    p["wp2"], p["bp2"] = w((pos_hidden, D)), w((1, D))
    # attn_mlp
    H = D * attn_mult
    wa1, ba1 = w((D, H)), w((1, H))
    p["wa1"], p["ba1"] = bn_fold(wa1, ba1, H)
    p["wa2"], p["ba2"] = w((H, D)), w((1, D))
    # conv_end
    p["we"], p["be"] = w((D, C)), w((1, C))
    return p


# -----------------------------------------------------------------------------
# Pure-JAX reference (same folded params, same bf16-matmul precision)
# -----------------------------------------------------------------------------
def _mm(x, w):
    return jnp.dot(x.astype(jnp.bfloat16), w.astype(jnp.bfloat16),
                   preferred_element_type=jnp.float32)


def reference_forward(pos, key, query, params, n_knn):
    key_t = jnp.transpose(key, (0, 2, 1))
    query_t = jnp.transpose(query, (0, 2, 1))
    pos_t = jnp.transpose(pos, (0, 2, 1))

    x = jnp.concatenate([key_t, query_t], axis=-1)
    h = jax.nn.relu(_mm(x, params["wv1"]) + params["bv1"])
    value = _mm(h, params["wv2"]) + params["bv2"] + _mm(x, params["wvs"]) + params["bvs"]
    identity = value
    key_p = _mm(key_t, params["wk"]) + params["bk"]
    query_p = _mm(query_t, params["wq"]) + params["bq"]
    value_p = _mm(value, params["wval"]) + params["bval"]

    idx = knn_idx(pos_t, n_knn)
    key_g = group(key_p.astype(jnp.bfloat16), idx).astype(jnp.float32)
    pos_g = group(pos_t, idx)

    qk_rel = query_p[:, :, None, :] - key_g
    pos_rel = pos_t[:, :, None, :] - pos_g
    hp = jax.nn.relu(pos_rel @ params["wp1"] + params["bp1"])
    pe = _mm(hp, params["wp2"]) + params["bp2"]
    attn = (_mm(jax.nn.relu(_mm(qk_rel + pe, params["wa1"]) + params["ba1"]),
                params["wa2"]) + params["ba2"])
    attn = jax.nn.softmax(attn, axis=2)       # over K
    vv = value_p[:, :, None, :] + pe
    agg = jnp.sum(attn * vv, axis=2)
    y = _mm(agg, params["we"]) + params["be"] + identity
    return jnp.transpose(y, (0, 2, 1))


if __name__ == "__main__":
    B, C, N = 2, 8, 16          # in_channel = 8, number of points = 16
    DIM, N_KNN, POS_HID, MULT = 32, 4, 16, 4

    root = jax.random.PRNGKey(0)
    k_pos, k_key, k_query, k_params = jax.random.split(root, 4)
    pos = jax.random.normal(k_pos, (B, 3, N), dtype=jnp.float32)
    key = jax.random.normal(k_key, (B, C, N), dtype=jnp.float32)
    query = jax.random.normal(k_query, (B, C, N), dtype=jnp.float32)
    params = init_params(k_params, C, DIM, POS_HID, MULT)

    fwd = jax.jit(skip_transformer_forward, static_argnums=(4,))
    out = jax.block_until_ready(fwd(pos, key, query, params, N_KNN))
    assert out.shape == (B, C, N), out.shape
    assert bool(jnp.all(jnp.isfinite(out)))

    ref = jax.block_until_ready(reference_forward(pos, key, query, params, N_KNN))
    err = float(jnp.max(jnp.abs(out - ref)))
    assert jnp.allclose(out, ref, rtol=2e-2, atol=2e-2), err

    print("KERNEL_OK")
</pallas_src>

<mosaic_0001>
module attributes {stable_mosaic.version = 11 : i64} {
  func.func @_proj_kernel(%arg0: i32, %arg1: memref<32x16xbf16, #tpu.memory_space<vmem>>, %arg2: memref<16x8xbf16, #tpu.memory_space<vmem>>, %arg3: memref<1x8xf32, #tpu.memory_space<vmem>>, %arg4: memref<8x8xbf16, #tpu.memory_space<vmem>>, %arg5: memref<1x8xf32, #tpu.memory_space<vmem>>, %arg6: memref<16x8xbf16, #tpu.memory_space<vmem>>, %arg7: memref<1x8xf32, #tpu.memory_space<vmem>>, %arg8: memref<8x32xbf16, #tpu.memory_space<vmem>>, %arg9: memref<1x32xf32, #tpu.memory_space<vmem>>, %arg10: memref<8x32xbf16, #tpu.memory_space<vmem>>, %arg11: memref<1x32xf32, #tpu.memory_space<vmem>>, %arg12: memref<8x32xbf16, #tpu.memory_space<vmem>>, %arg13: memref<1x32xf32, #tpu.memory_space<vmem>>, %arg14: memref<32x8xf32, #tpu.memory_space<vmem>>, %arg15: memref<32x32xbf16, #tpu.memory_space<vmem>>, %arg16: memref<32x64xf32, #tpu.memory_space<vmem>>) attributes {dimension_semantics = [#tpu.dimension_semantics<parallel>], iteration_bounds = array<i64: 1>, scalar_prefetch = 0 : i64, scratch_operands = 0 : i64, tpu.core_type = #tpu.core_type<tc>, window_params = [{transform_indices = @transform_0, window_bounds = array<i64: 32, 16>}, {pipeline_mode = #tpu.pipeline_mode<synchronous>, transform_indices = @transform_1, window_bounds = array<i64: 16, 8>}, {pipeline_mode = #tpu.pipeline_mode<synchronous>, transform_indices = @transform_2, window_bounds = array<i64: 1, 8>}, {pipeline_mode = #tpu.pipeline_mode<synchronous>, transform_indices = @transform_3, window_bounds = array<i64: 8, 8>}, {pipeline_mode = #tpu.pipeline_mode<synchronous>, transform_indices = @transform_4, window_bounds = array<i64: 1, 8>}, {pipeline_mode = #tpu.pipeline_mode<synchronous>, transform_indices = @transform_5, window_bounds = array<i64: 16, 8>}, {pipeline_mode = #tpu.pipeline_mode<synchronous>, transform_indices = @transform_6, window_bounds = array<i64: 1, 8>}, {pipeline_mode = #tpu.pipeline_mode<synchronous>, transform_indices = @transform_7, window_bounds = array<i64: 8, 32>}, {pipeline_mode = #tpu.pipeline_mode<synchronous>, transform_indices = @transform_8, window_bounds = array<i64: 1, 32>}, {pipeline_mode = #tpu.pipeline_mode<synchronous>, transform_indices = @transform_9, window_bounds = array<i64: 8, 32>}, {pipeline_mode = #tpu.pipeline_mode<synchronous>, transform_indices = @transform_10, window_bounds = array<i64: 1, 32>}, {pipeline_mode = #tpu.pipeline_mode<synchronous>, transform_indices = @transform_11, window_bounds = array<i64: 8, 32>}, {pipeline_mode = #tpu.pipeline_mode<synchronous>, transform_indices = @transform_12, window_bounds = array<i64: 1, 32>}, {transform_indices = @transform_13, window_bounds = array<i64: 32, 8>}, {transform_indices = @transform_14, window_bounds = array<i64: 32, 32>}, {transform_indices = @transform_15, window_bounds = array<i64: 32, 64>}]} {
    %c0 = arith.constant 0 : index
    %c0_0 = arith.constant 0 : index
    %0 = vector.load %arg1[%c0, %c0_0] : memref<32x16xbf16, #tpu.memory_space<vmem>>, vector<32x16xbf16>
    %1 = vector.extract_strided_slice %0 {offsets = [0, 0], sizes = [32, 8], strides = [1, 1]} : vector<32x16xbf16> to vector<32x8xbf16>
    %2 = vector.extract_strided_slice %0 {offsets = [0, 8], sizes = [32, 8], strides = [1, 1]} : vector<32x16xbf16> to vector<32x8xbf16>
    %c0_1 = arith.constant 0 : index
    %c0_2 = arith.constant 0 : index
    %3 = vector.load %arg2[%c0_1, %c0_2] : memref<16x8xbf16, #tpu.memory_space<vmem>>, vector<16x8xbf16>
    %cst = arith.constant dense<0.000000e+00> : vector<32x8xf32>
    %4 = tpu.matmul %0, %3, %cst {dimension_numbers = #tpu.dot_dimension_numbers<[1], [0], [0], [1], [0, 0, 1, 1], [], []>} : vector<32x16xbf16>, vector<16x8xbf16>, vector<32x8xf32> -> vector<32x8xf32>
    %c0_3 = arith.constant 0 : index
    %c0_4 = arith.constant 0 : index
    %5 = vector.load %arg3[%c0_3, %c0_4] : memref<1x8xf32, #tpu.memory_space<vmem>>, vector<1x8xf32>
    %6 = vector.broadcast %5 : vector<1x8xf32> to vector<32x8xf32>
    %7 = arith.addf %4, %6 : vector<32x8xf32>
    %cst_5 = arith.constant 0.000000e+00 : f32
    %8 = vector.broadcast %cst_5 : f32 to vector<32x8xf32>
    %9 = arith.maximumf %7, %8 : vector<32x8xf32>
    %c0_6 = arith.constant 0 : index
    %c0_7 = arith.constant 0 : index
    %10 = vector.load %arg6[%c0_6, %c0_7] : memref<16x8xbf16, #tpu.memory_space<vmem>>, vector<16x8xbf16>
    %cst_8 = arith.constant dense<0.000000e+00> : vector<32x8xf32>
    %11 = tpu.matmul %0, %10, %cst_8 {dimension_numbers = #tpu.dot_dimension_numbers<[1], [0], [0], [1], [0, 0, 1, 1], [], []>} : vector<32x16xbf16>, vector<16x8xbf16>, vector<32x8xf32> -> vector<32x8xf32>
    %c0_9 = arith.constant 0 : index
    %c0_10 = arith.constant 0 : index
    %12 = vector.load %arg7[%c0_9, %c0_10] : memref<1x8xf32, #tpu.memory_space<vmem>>, vector<1x8xf32>
    %13 = vector.broadcast %12 : vector<1x8xf32> to vector<32x8xf32>
    %14 = arith.addf %11, %13 : vector<32x8xf32>
    %15 = arith.truncf %9 : vector<32x8xf32> to vector<32x8xbf16>
    %c0_11 = arith.constant 0 : index
    %c0_12 = arith.constant 0 : index
    %16 = vector.load %arg4[%c0_11, %c0_12] : memref<8x8xbf16, #tpu.memory_space<vmem>>, vector<8x8xbf16>
    %cst_13 = arith.constant dense<0.000000e+00> : vector<32x8xf32>
    %17 = tpu.matmul %15, %16, %cst_13 {dimension_numbers = #tpu.dot_dimension_numbers<[1], [0], [0], [1], [0, 0, 1, 1], [], []>} : vector<32x8xbf16>, vector<8x8xbf16>, vector<32x8xf32> -> vector<32x8xf32>
    %c0_14 = arith.constant 0 : index
    %c0_15 = arith.constant 0 : index
    %18 = vector.load %arg5[%c0_14, %c0_15] : memref<1x8xf32, #tpu.memory_space<vmem>>, vector<1x8xf32>
    %19 = vector.broadcast %18 : vector<1x8xf32> to vector<32x8xf32>
    %20 = arith.addf %17, %19 : vector<32x8xf32>
    %21 = arith.addf %20, %14 : vector<32x8xf32>
    %c0_16 = arith.constant 0 : index
    %c0_17 = arith.constant 0 : index
    %22 = vector.load %arg14[%c0_16, %c0_17] : memref<32x8xf32, #tpu.memory_space<vmem>>, vector<32x8xf32>
    tpu.vector_store %arg14[%c0_16, %c0_17], %21 {strides = array<i32>} : memref<32x8xf32, #tpu.memory_space<vmem>>, vector<32x8xf32>,
    %c0_18 = arith.constant 0 : index
    %c0_19 = arith.constant 0 : index
    %23 = vector.load %arg8[%c0_18, %c0_19] : memref<8x32xbf16, #tpu.memory_space<vmem>>, vector<8x32xbf16>
    %cst_20 = arith.constant dense<0.000000e+00> : vector<32x32xf32>
    %24 = tpu.matmul %1, %23, %cst_20 {dimension_numbers = #tpu.dot_dimension_numbers<[1], [0], [0], [1], [0, 0, 1, 1], [], []>} : vector<32x8xbf16>, vector<8x32xbf16>, vector<32x32xf32> -> vector<32x32xf32>
    %c0_21 = arith.constant 0 : index
    %c0_22 = arith.constant 0 : index
    %25 = vector.load %arg9[%c0_21, %c0_22] : memref<1x32xf32, #tpu.memory_space<vmem>>, vector<1x32xf32>
    %26 = vector.broadcast %25 : vector<1x32xf32> to vector<32x32xf32>
    %27 = arith.addf %24, %26 : vector<32x32xf32>
    %28 = arith.truncf %27 : vector<32x32xf32> to vector<32x32xbf16>
    %c0_23 = arith.constant 0 : index
    %c0_24 = arith.constant 0 : index
    %29 = vector.load %arg15[%c0_23, %c0_24] : memref<32x32xbf16, #tpu.memory_space<vmem>>, vector<32x32xbf16>
    tpu.vector_store %arg15[%c0_23, %c0_24], %28 {strides = array<i32>} : memref<32x32xbf16, #tpu.memory_space<vmem>>, vector<32x32xbf16>,
    %c0_25 = arith.constant 0 : index
    %c0_26 = arith.constant 0 : index
    %30 = vector.load %arg10[%c0_25, %c0_26] : memref<8x32xbf16, #tpu.memory_space<vmem>>, vector<8x32xbf16>
    %cst_27 = arith.constant dense<0.000000e+00> : vector<32x32xf32>
    %31 = tpu.matmul %2, %30, %cst_27 {dimension_numbers = #tpu.dot_dimension_numbers<[1], [0], [0], [1], [0, 0, 1, 1], [], []>} : vector<32x8xbf16>, vector<8x32xbf16>, vector<32x32xf32> -> vector<32x32xf32>
    %c0_28 = arith.constant 0 : index
    %c0_29 = arith.constant 0 : index
    %32 = vector.load %arg11[%c0_28, %c0_29] : memref<1x32xf32, #tpu.memory_space<vmem>>, vector<1x32xf32>
    %33 = vector.broadcast %32 : vector<1x32xf32> to vector<32x32xf32>
    %34 = arith.addf %31, %33 : vector<32x32xf32>
    %35 = arith.truncf %21 : vector<32x8xf32> to vector<32x8xbf16>
    %c0_30 = arith.constant 0 : index
    %c0_31 = arith.constant 0 : index
    %36 = vector.load %arg12[%c0_30, %c0_31] : memref<8x32xbf16, #tpu.memory_space<vmem>>, vector<8x32xbf16>
    %cst_32 = arith.constant dense<0.000000e+00> : vector<32x32xf32>
    %37 = tpu.matmul %35, %36, %cst_32 {dimension_numbers = #tpu.dot_dimension_numbers<[1], [0], [0], [1], [0, 0, 1, 1], [], []>} : vector<32x8xbf16>, vector<8x32xbf16>, vector<32x32xf32> -> vector<32x32xf32>
    %c0_33 = arith.constant 0 : index
    %c0_34 = arith.constant 0 : index
    %38 = vector.load %arg13[%c0_33, %c0_34] : memref<1x32xf32, #tpu.memory_space<vmem>>, vector<1x32xf32>
    %39 = vector.broadcast %38 : vector<1x32xf32> to vector<32x32xf32>
    %40 = arith.addf %37, %39 : vector<32x32xf32>
    %41 = tpu.concatenate %34, %40 in 1 : vector<32x32xf32>, vector<32x32xf32> -> vector<32x64xf32>
    %c0_35 = arith.constant 0 : index
    %c0_36 = arith.constant 0 : index
    %42 = vector.load %arg16[%c0_35, %c0_36] : memref<32x64xf32, #tpu.memory_space<vmem>>, vector<32x64xf32>
    tpu.vector_store %arg16[%c0_35, %c0_36], %41 {strides = array<i32>} : memref<32x64xf32, #tpu.memory_space<vmem>>, vector<32x64xf32>,
    return
  }
  func.func @transform_0(%arg0: i32) -> (i32, i32) {
    %c0_i32 = arith.constant 0 : i32
    %c0_i32_0 = arith.constant 0 : i32
    return %arg0, %c0_i32 : i32, i32
  }
  func.func @transform_1(%arg0: i32) -> (i32, i32) {
    %c0_i32 = arith.constant 0 : i32
    %c0_i32_0 = arith.constant 0 : i32
    %c0_i32_1 = arith.constant 0 : i32
    return %c0_i32, %c0_i32_0 : i32, i32
  }
  func.func @transform_2(%arg0: i32) -> (i32, i32) {
    %c0_i32 = arith.constant 0 : i32
    %c0_i32_0 = arith.constant 0 : i32
    %c0_i32_1 = arith.constant 0 : i32
    return %c0_i32, %c0_i32_0 : i32, i32
  }
  func.func @transform_3(%arg0: i32) -> (i32, i32) {
    %c0_i32 = arith.constant 0 : i32
    %c0_i32_0 = arith.constant 0 : i32
    %c0_i32_1 = arith.constant 0 : i32
    return %c0_i32, %c0_i32_0 : i32, i32
  }
  func.func @transform_4(%arg0: i32) -> (i32, i32) {
    %c0_i32 = arith.constant 0 : i32
    %c0_i32_0 = arith.constant 0 : i32
    %c0_i32_1 = arith.constant 0 : i32
    return %c0_i32, %c0_i32_0 : i32, i32
  }
  func.func @transform_5(%arg0: i32) -> (i32, i32) {
    %c0_i32 = arith.constant 0 : i32
    %c0_i32_0 = arith.constant 0 : i32
    %c0_i32_1 = arith.constant 0 : i32
    return %c0_i32, %c0_i32_0 : i32, i32
  }
  func.func @transform_6(%arg0: i32) -> (i32, i32) {
    %c0_i32 = arith.constant 0 : i32
    %c0_i32_0 = arith.constant 0 : i32
    %c0_i32_1 = arith.constant 0 : i32
    return %c0_i32, %c0_i32_0 : i32, i32
  }
  func.func @transform_7(%arg0: i32) -> (i32, i32) {
    %c0_i32 = arith.constant 0 : i32
    %c0_i32_0 = arith.constant 0 : i32
    %c0_i32_1 = arith.constant 0 : i32
    return %c0_i32, %c0_i32_0 : i32, i32
  }
  func.func @transform_8(%arg0: i32) -> (i32, i32) {
    %c0_i32 = arith.constant 0 : i32
    %c0_i32_0 = arith.constant 0 : i32
    %c0_i32_1 = arith.constant 0 : i32
    return %c0_i32, %c0_i32_0 : i32, i32
  }
  func.func @transform_9(%arg0: i32) -> (i32, i32) {
    %c0_i32 = arith.constant 0 : i32
    %c0_i32_0 = arith.constant 0 : i32
    %c0_i32_1 = arith.constant 0 : i32
    return %c0_i32, %c0_i32_0 : i32, i32
  }
  func.func @transform_10(%arg0: i32) -> (i32, i32) {
    %c0_i32 = arith.constant 0 : i32
    %c0_i32_0 = arith.constant 0 : i32
    %c0_i32_1 = arith.constant 0 : i32
    return %c0_i32, %c0_i32_0 : i32, i32
  }
  func.func @transform_11(%arg0: i32) -> (i32, i32) {
    %c0_i32 = arith.constant 0 : i32
    %c0_i32_0 = arith.constant 0 : i32
    %c0_i32_1 = arith.constant 0 : i32
    return %c0_i32, %c0_i32_0 : i32, i32
  }
  func.func @transform_12(%arg0: i32) -> (i32, i32) {
    %c0_i32 = arith.constant 0 : i32
    %c0_i32_0 = arith.constant 0 : i32
    %c0_i32_1 = arith.constant 0 : i32
    return %c0_i32, %c0_i32_0 : i32, i32
  }
  func.func @transform_13(%arg0: i32) -> (i32, i32) {
    %c0_i32 = arith.constant 0 : i32
    %c0_i32_0 = arith.constant 0 : i32
    return %arg0, %c0_i32 : i32, i32
  }
  func.func @transform_14(%arg0: i32) -> (i32, i32) {
    %c0_i32 = arith.constant 0 : i32
    %c0_i32_0 = arith.constant 0 : i32
    return %arg0, %c0_i32 : i32, i32
  }
  func.func @transform_15(%arg0: i32) -> (i32, i32) {
    %c0_i32 = arith.constant 0 : i32
    %c0_i32_0 = arith.constant 0 : i32
    return %arg0, %c0_i32 : i32, i32
  }
}

module attributes {stable_mosaic.version = 11 : i64} {
  func.func @_attn_kernel(%arg0: i32, %arg1: i32, %arg2: memref<1x16x64xf32, #tpu.memory_space<vmem>>, %arg3: memref<1x64x32xbf16, #tpu.memory_space<vmem>>, %arg4: memref<1x64x3xf32, #tpu.memory_space<vmem>>, %arg5: memref<1x16x8xf32, #tpu.memory_space<vmem>>, %arg6: memref<3x16xf32, #tpu.memory_space<vmem>>, %arg7: memref<1x16xf32, #tpu.memory_space<vmem>>, %arg8: memref<16x32xbf16, #tpu.memory_space<vmem>>, %arg9: memref<1x32xf32, #tpu.memory_space<vmem>>, %arg10: memref<32x128xbf16, #tpu.memory_space<vmem>>, %arg11: memref<1x128xf32, #tpu.memory_space<vmem>>, %arg12: memref<128x32xbf16, #tpu.memory_space<vmem>>, %arg13: memref<1x32xf32, #tpu.memory_space<vmem>>, %arg14: memref<32x8xbf16, #tpu.memory_space<vmem>>, %arg15: memref<1x8xf32, #tpu.memory_space<vmem>>, %arg16: memref<1x16x8xf32, #tpu.memory_space<vmem>>) attributes {dimension_semantics = [#tpu.dimension_semantics<parallel>, #tpu.dimension_semantics<parallel>], iteration_bounds = array<i64: 2, 1>, scalar_prefetch = 0 : i64, scratch_operands = 0 : i64, tpu.core_type = #tpu.core_type<tc>, window_params = [{transform_indices = @transform_0, window_bounds = array<i64: 1, 16, 64>}, {transform_indices = @transform_1, window_bounds = array<i64: 1, 64, 32>}, {transform_indices = @transform_2, window_bounds = array<i64: 1, 64, 3>}, {transform_indices = @transform_3, window_bounds = array<i64: 1, 16, 8>}, {pipeline_mode = #tpu.pipeline_mode<synchronous>, transform_indices = @transform_4, window_bounds = array<i64: 3, 16>}, {pipeline_mode = #tpu.pipeline_mode<synchronous>, transform_indices = @transform_5, window_bounds = array<i64: 1, 16>}, {pipeline_mode = #tpu.pipeline_mode<synchronous>, transform_indices = @transform_6, window_bounds = array<i64: 16, 32>}, {pipeline_mode = #tpu.pipeline_mode<synchronous>, transform_indices = @transform_7, window_bounds = array<i64: 1, 32>}, {pipeline_mode = #tpu.pipeline_mode<synchronous>, transform_indices = @transform_8, window_bounds = array<i64: 32, 128>}, {pipeline_mode = #tpu.pipeline_mode<synchronous>, transform_indices = @transform_9, window_bounds = array<i64: 1, 128>}, {pipeline_mode = #tpu.pipeline_mode<synchronous>, transform_indices = @transform_10, window_bounds = array<i64: 128, 32>}, {pipeline_mode = #tpu.pipeline_mode<synchronous>, transform_indices = @transform_11, window_bounds = array<i64: 1, 32>}, {pipeline_mode = #tpu.pipeline_mode<synchronous>, transform_indices = @transform_12, window_bounds = array<i64: 32, 8>}, {pipeline_mode = #tpu.pipeline_mode<synchronous>, transform_indices = @transform_13, window_bounds = array<i64: 1, 8>}, {transform_indices = @transform_14, window_bounds = array<i64: 1, 16, 8>}]} {
    %c0 = arith.constant 0 : index
    %c0_0 = arith.constant 0 : index
    %c0_1 = arith.constant 0 : index
    %0 = vector.load %arg2[%c0, %c0_0, %c0_1] : memref<1x16x64xf32, #tpu.memory_space<vmem>>, vector<1x16x64xf32>
    %1 = vector.shape_cast %0 : vector<1x16x64xf32> to vector<16x64xf32>
    %2 = vector.extract_strided_slice %1 {offsets = [0, 0], sizes = [16, 32], strides = [1, 1]} : vector<16x64xf32> to vector<16x32xf32>
    %3 = vector.extract_strided_slice %1 {offsets = [0, 32], sizes = [16, 32], strides = [1, 1]} : vector<16x64xf32> to vector<16x32xf32>
    %c0_2 = arith.constant 0 : index
    %c0_3 = arith.constant 0 : index
    %c0_4 = arith.constant 0 : index
    %4 = vector.load %arg3[%c0_2, %c0_3, %c0_4] : memref<1x64x32xbf16, #tpu.memory_space<vmem>>, vector<1x64x32xbf16>
    %5 = vector.shape_cast %4 : vector<1x64x32xbf16> to vector<64x32xbf16>
    %c0_5 = arith.constant 0 : index
    %c0_6 = arith.constant 0 : index
    %c0_7 = arith.constant 0 : index
    %6 = vector.load %arg4[%c0_5, %c0_6, %c0_7] : memref<1x64x3xf32, #tpu.memory_space<vmem>>, vector<1x64x3xf32>
    %7 = vector.shape_cast %6 : vector<1x64x3xf32> to vector<64x3xf32>
    %c0_8 = arith.constant 0 : index
    %c0_9 = arith.constant 0 : index
    %8 = vector.load %arg6[%c0_8, %c0_9] : memref<3x16xf32, #tpu.memory_space<vmem>>, vector<3x16xf32>
    %9 = vector.extract_strided_slice %7 {offsets = [0, 0], sizes = [64, 1], strides = [1, 1]} : vector<64x3xf32> to vector<64x1xf32>
    %10 = vector.extract_strided_slice %8 {offsets = [0, 0], sizes = [1, 16], strides = [1, 1]} : vector<3x16xf32> to vector<1x16xf32>
    %11 = vector.broadcast %9 : vector<64x1xf32> to vector<64x16xf32>
    %12 = vector.broadcast %10 : vector<1x16xf32> to vector<64x16xf32>
    %13 = arith.mulf %11, %12 : vector<64x16xf32>
    %14 = vector.extract_strided_slice %7 {offsets = [0, 1], sizes = [64, 1], strides = [1, 1]} : vector<64x3xf32> to vector<64x1xf32>
    %15 = vector.extract_strided_slice %8 {offsets = [1, 0], sizes = [1, 16], strides = [1, 1]} : vector<3x16xf32> to vector<1x16xf32>
    %16 = vector.broadcast %14 : vector<64x1xf32> to vector<64x16xf32>
    %17 = vector.broadcast %15 : vector<1x16xf32> to vector<64x16xf32>
    %18 = arith.mulf %16, %17 : vector<64x16xf32>
    %19 = arith.addf %13, %18 : vector<64x16xf32>
    %20 = vector.extract_strided_slice %7 {offsets = [0, 2], sizes = [64, 1], strides = [1, 1]} : vector<64x3xf32> to vector<64x1xf32>
    %21 = vector.extract_strided_slice %8 {offsets = [2, 0], sizes = [1, 16], strides = [1, 1]} : vector<3x16xf32> to vector<1x16xf32>
    %22 = vector.broadcast %20 : vector<64x1xf32> to vector<64x16xf32>
    %23 = vector.broadcast %21 : vector<1x16xf32> to vector<64x16xf32>
    %24 = arith.mulf %22, %23 : vector<64x16xf32>
    %25 = arith.addf %19, %24 : vector<64x16xf32>
    %c0_10 = arith.constant 0 : index
    %c0_11 = arith.constant 0 : index
    %26 = vector.load %arg7[%c0_10, %c0_11] : memref<1x16xf32, #tpu.memory_space<vmem>>, vector<1x16xf32>
    %27 = vector.broadcast %26 : vector<1x16xf32> to vector<64x16xf32>
    %28 = arith.addf %25, %27 : vector<64x16xf32>
    %cst = arith.constant 0.000000e+00 : f32
    %29 = vector.broadcast %cst : f32 to vector<64x16xf32>
    %30 = arith.maximumf %28, %29 : vector<64x16xf32>
    %31 = arith.truncf %30 : vector<64x16xf32> to vector<64x16xbf16>
    %c0_12 = arith.constant 0 : index
    %c0_13 = arith.constant 0 : index
    %32 = vector.load %arg8[%c0_12, %c0_13] : memref<16x32xbf16, #tpu.memory_space<vmem>>, vector<16x32xbf16>
    %cst_14 = arith.constant dense<0.000000e+00> : vector<64x32xf32>
    %33 = tpu.matmul %31, %32, %cst_14 {dimension_numbers = #tpu.dot_dimension_numbers<[1], [0], [0], [1], [0, 0, 1, 1], [], []>} : vector<64x16xbf16>, vector<16x32xbf16>, vector<64x32xf32> -> vector<64x32xf32>
    %c0_15 = arith.constant 0 : index
    %c0_16 = arith.constant 0 : index
    %34 = vector.load %arg9[%c0_15, %c0_16] : memref<1x32xf32, #tpu.memory_space<vmem>>, vector<1x32xf32>
    %35 = vector.broadcast %34 : vector<1x32xf32> to vector<64x32xf32>
    %36 = arith.addf %33, %35 : vector<64x32xf32>
    %37 = vector.shape_cast %2 : vector<16x32xf32> to vector<16x1x32xf32>
    %38 = vector.shape_cast %37 : vector<16x1x32xf32> to vector<16x1x32xf32>
    %39 = vector.broadcast %38 : vector<16x1x32xf32> to vector<16x4x32xf32>
    %40 = vector.shape_cast %39 : vector<16x4x32xf32> to vector<64x32xf32>
    %41 = arith.extf %5 : vector<64x32xbf16> to vector<64x32xf32>
    %42 = arith.subf %40, %41 : vector<64x32xf32>
    %43 = arith.addf %42, %36 : vector<64x32xf32>
    %44 = arith.truncf %43 : vector<64x32xf32> to vector<64x32xbf16>
    %c0_17 = arith.constant 0 : index
    %c0_18 = arith.constant 0 : index
    %45 = vector.load %arg10[%c0_17, %c0_18] : memref<32x128xbf16, #tpu.memory_space<vmem>>, vector<32x128xbf16>
    %cst_19 = arith.constant dense<0.000000e+00> : vector<64x128xf32>
    %46 = tpu.matmul %44, %45, %cst_19 {dimension_numbers = #tpu.dot_dimension_numbers<[1], [0], [0], [1], [0, 0, 1, 1], [], []>} : vector<64x32xbf16>, vector<32x128xbf16>, vector<64x128xf32> -> vector<64x128xf32>
    %c0_20 = arith.constant 0 : index
    %c0_21 = arith.constant 0 : index
    %47 = vector.load %arg11[%c0_20, %c0_21] : memref<1x128xf32, #tpu.memory_space<vmem>>, vector<1x128xf32>
    %48 = vector.broadcast %47 : vector<1x128xf32> to vector<64x128xf32>
    %49 = arith.addf %46, %48 : vector<64x128xf32>
    %cst_22 = arith.constant 0.000000e+00 : f32
    %50 = vector.broadcast %cst_22 : f32 to vector<64x128xf32>
    %51 = arith.maximumf %49, %50 : vector<64x128xf32>
    %52 = arith.truncf %51 : vector<64x128xf32> to vector<64x128xbf16>
    %c0_23 = arith.constant 0 : index
    %c0_24 = arith.constant 0 : index
    %53 = vector.load %arg12[%c0_23, %c0_24] : memref<128x32xbf16, #tpu.memory_space<vmem>>, vector<128x32xbf16>
    %cst_25 = arith.constant dense<0.000000e+00> : vector<64x32xf32>
    %54 = tpu.matmul %52, %53, %cst_25 {dimension_numbers = #tpu.dot_dimension_numbers<[1], [0], [0], [1], [0, 0, 1, 1], [], []>} : vector<64x128xbf16>, vector<128x32xbf16>, vector<64x32xf32> -> vector<64x32xf32>
    %c0_26 = arith.constant 0 : index
    %c0_27 = arith.constant 0 : index
    %55 = vector.load %arg13[%c0_26, %c0_27] : memref<1x32xf32, #tpu.memory_space<vmem>>, vector<1x32xf32>
    %56 = vector.broadcast %55 : vector<1x32xf32> to vector<64x32xf32>
    %57 = arith.addf %54, %56 : vector<64x32xf32>
    %58 = vector.shape_cast %57 : vector<64x32xf32> to vector<16x4x32xf32>
    %cst_28 = arith.constant dense<0xFF800000> : vector<16x32xf32>
    %59 = vector.multi_reduction <maximumf>, %58, %cst_28 [1] : vector<16x4x32xf32> to vector<16x32xf32>
    %60 = vector.shape_cast %59 : vector<16x32xf32> to vector<16x1x32xf32>
    %61 = vector.broadcast %60 : vector<16x1x32xf32> to vector<16x4x32xf32>
    %62 = arith.subf %58, %61 : vector<16x4x32xf32>
    %63 = math.exp %62 : vector<16x4x32xf32>
    %cst_29 = arith.constant dense<0.000000e+00> : vector<16x32xf32>
    %64 = vector.multi_reduction <add>, %63, %cst_29 [1] : vector<16x4x32xf32> to vector<16x32xf32>
    %65 = vector.shape_cast %64 : vector<16x32xf32> to vector<16x1x32xf32>
    %66 = tpu.reciprocal %65 {approx = true} : vector<16x1x32xf32> -> vector<16x1x32xf32>
    %67 = vector.broadcast %66 : vector<16x1x32xf32> to vector<16x4x32xf32>
    %68 = arith.mulf %63, %67 : vector<16x4x32xf32>
    %69 = vector.shape_cast %3 : vector<16x32xf32> to vector<16x1x32xf32>
    %70 = vector.shape_cast %36 : vector<64x32xf32> to vector<16x4x32xf32>
    %71 = vector.broadcast %69 : vector<16x1x32xf32> to vector<16x4x32xf32>
    %72 = arith.addf %71, %70 : vector<16x4x32xf32>
    %73 = arith.mulf %68, %72 : vector<16x4x32xf32>
    %cst_30 = arith.constant dense<0.000000e+00> : vector<16x32xf32>
    %74 = vector.multi_reduction <add>, %73, %cst_30 [1] : vector<16x4x32xf32> to vector<16x32xf32>
    %75 = arith.truncf %74 : vector<16x32xf32> to vector<16x32xbf16>
    %c0_31 = arith.constant 0 : index
    %c0_32 = arith.constant 0 : index
    %76 = vector.load %arg14[%c0_31, %c0_32] : memref<32x8xbf16, #tpu.memory_space<vmem>>, vector<32x8xbf16>
    %cst_33 = arith.constant dense<0.000000e+00> : vector<16x8xf32>
    %77 = tpu.matmul %75, %76, %cst_33 {dimension_numbers = #tpu.dot_dimension_numbers<[1], [0], [0], [1], [0, 0, 1, 1], [], []>} : vector<16x32xbf16>, vector<32x8xbf16>, vector<16x8xf32> -> vector<16x8xf32>
    %c0_34 = arith.constant 0 : index
    %c0_35 = arith.constant 0 : index
    %78 = vector.load %arg15[%c0_34, %c0_35] : memref<1x8xf32, #tpu.memory_space<vmem>>, vector<1x8xf32>
    %79 = vector.broadcast %78 : vector<1x8xf32> to vector<16x8xf32>
    %80 = arith.addf %77, %79 : vector<16x8xf32>
    %c0_36 = arith.constant 0 : index
    %c0_37 = arith.constant 0 : index
    %c0_38 = arith.constant 0 : index
    %81 = vector.load %arg5[%c0_36, %c0_37, %c0_38] : memref<1x16x8xf32, #tpu.memory_space<vmem>>, vector<1x16x8xf32>
    %82 = vector.shape_cast %81 : vector<1x16x8xf32> to vector<16x8xf32>
    %83 = arith.addf %80, %82 : vector<16x8xf32>
    %c0_39 = arith.constant 0 : index
    %c0_40 = arith.constant 0 : index
    %c0_41 = arith.constant 0 : index
    %84 = vector.load %arg16[%c0_39, %c0_40, %c0_41] : memref<1x16x8xf32, #tpu.memory_space<vmem>>, vector<1x16x8xf32>
    %85 = vector.shape_cast %84 : vector<1x16x8xf32> to vector<16x8xf32>
    %86 = vector.shape_cast %83 : vector<16x8xf32> to vector<1x16x8xf32>
    tpu.vector_store %arg16[%c0_39, %c0_40, %c0_41], %86 {strides = array<i32>} : memref<1x16x8xf32, #tpu.memory_space<vmem>>, vector<1x16x8xf32>,
    return
  }
  func.func @transform_0(%arg0: i32, %arg1: i32) -> (i32, i32, i32) {
    %c0_i32 = arith.constant 0 : i32
    %c0_i32_0 = arith.constant 0 : i32
    return %arg0, %arg1, %c0_i32 : i32, i32, i32
  }
  func.func @transform_1(%arg0: i32, %arg1: i32) -> (i32, i32, i32) {
    %c0_i32 = arith.constant 0 : i32
    %c0_i32_0 = arith.constant 0 : i32
    return %arg0, %arg1, %c0_i32 : i32, i32, i32
  }
  func.func @transform_2(%arg0: i32, %arg1: i32) -> (i32, i32, i32) {
    %c0_i32 = arith.constant 0 : i32
    %c0_i32_0 = arith.constant 0 : i32
    return %arg0, %arg1, %c0_i32 : i32, i32, i32
  }
  func.func @transform_3(%arg0: i32, %arg1: i32) -> (i32, i32, i32) {
    %c0_i32 = arith.constant 0 : i32
    %c0_i32_0 = arith.constant 0 : i32
    return %arg0, %arg1, %c0_i32 : i32, i32, i32
  }
  func.func @transform_4(%arg0: i32, %arg1: i32) -> (i32, i32) {
    %c0_i32 = arith.constant 0 : i32
    %c0_i32_0 = arith.constant 0 : i32
    %c0_i32_1 = arith.constant 0 : i32
    return %c0_i32, %c0_i32_0 : i32, i32
  }
  func.func @transform_5(%arg0: i32, %arg1: i32) -> (i32, i32) {
    %c0_i32 = arith.constant 0 : i32
    %c0_i32_0 = arith.constant 0 : i32
    %c0_i32_1 = arith.constant 0 : i32
    return %c0_i32, %c0_i32_0 : i32, i32
  }
  func.func @transform_6(%arg0: i32, %arg1: i32) -> (i32, i32) {
    %c0_i32 = arith.constant 0 : i32
    %c0_i32_0 = arith.constant 0 : i32
    %c0_i32_1 = arith.constant 0 : i32
    return %c0_i32, %c0_i32_0 : i32, i32
  }
  func.func @transform_7(%arg0: i32, %arg1: i32) -> (i32, i32) {
    %c0_i32 = arith.constant 0 : i32
    %c0_i32_0 = arith.constant 0 : i32
    %c0_i32_1 = arith.constant 0 : i32
    return %c0_i32, %c0_i32_0 : i32, i32
  }
  func.func @transform_8(%arg0: i32, %arg1: i32) -> (i32, i32) {
    %c0_i32 = arith.constant 0 : i32
    %c0_i32_0 = arith.constant 0 : i32
    %c0_i32_1 = arith.constant 0 : i32
    return %c0_i32, %c0_i32_0 : i32, i32
  }
  func.func @transform_9(%arg0: i32, %arg1: i32) -> (i32, i32) {
    %c0_i32 = arith.constant 0 : i32
    %c0_i32_0 = arith.constant 0 : i32
    %c0_i32_1 = arith.constant 0 : i32
    return %c0_i32, %c0_i32_0 : i32, i32
  }
  func.func @transform_10(%arg0: i32, %arg1: i32) -> (i32, i32) {
    %c0_i32 = arith.constant 0 : i32
    %c0_i32_0 = arith.constant 0 : i32
    %c0_i32_1 = arith.constant 0 : i32
    return %c0_i32, %c0_i32_0 : i32, i32
  }
  func.func @transform_11(%arg0: i32, %arg1: i32) -> (i32, i32) {
    %c0_i32 = arith.constant 0 : i32
    %c0_i32_0 = arith.constant 0 : i32
    %c0_i32_1 = arith.constant 0 : i32
    return %c0_i32, %c0_i32_0 : i32, i32
  }
  func.func @transform_12(%arg0: i32, %arg1: i32) -> (i32, i32) {
    %c0_i32 = arith.constant 0 : i32
    %c0_i32_0 = arith.constant 0 : i32
    %c0_i32_1 = arith.constant 0 : i32
    return %c0_i32, %c0_i32_0 : i32, i32
  }
  func.func @transform_13(%arg0: i32, %arg1: i32) -> (i32, i32) {
    %c0_i32 = arith.constant 0 : i32
    %c0_i32_0 = arith.constant 0 : i32
    %c0_i32_1 = arith.constant 0 : i32
    return %c0_i32, %c0_i32_0 : i32, i32
  }
  func.func @transform_14(%arg0: i32, %arg1: i32) -> (i32, i32, i32) {
    %c0_i32 = arith.constant 0 : i32
    %c0_i32_0 = arith.constant 0 : i32
    return %arg0, %arg1, %c0_i32 : i32, i32, i32
  }
}

</mosaic_0001>

<llo_original>
// kernel: skip_transformer_forward.2
$region0: #{skip_transformer_forward.2}
  #allocation0 [shape = 'u32[]', space=smem, size = 0x4, offset = 0x4, fixed_abs, tag = 'smem constant byte address 0x4 - core index']
  #allocation1 [shape = 'u32[144,128]{1,0:T(1,128)}', space=vmem, size = 0x12000, scoped, tag = 'internal scratch']
  %s0 = inlined_call_operand.vmem [shape: bf16[32,16], index: 0, kind: input, shape index: {}]
  %s1 = inlined_call_operand.vmem [shape: bf16[16,8], index: 1, kind: input, shape index: {}]
  %s2 = inlined_call_operand.vmem [shape: f32[1,8], index: 2, kind: input, shape index: {}]
  %s3 = inlined_call_operand.vmem [shape: bf16[8,8], index: 3, kind: input, shape index: {}]
  %s4 = inlined_call_operand.vmem [shape: f32[1,8], index: 4, kind: input, shape index: {}]
  %s5 = inlined_call_operand.vmem [shape: bf16[16,8], index: 5, kind: input, shape index: {}]
  %s6 = inlined_call_operand.vmem [shape: f32[1,8], index: 6, kind: input, shape index: {}]
  %s7 = inlined_call_operand.vmem [shape: bf16[8,32], index: 7, kind: input, shape index: {}]
  %s8 = inlined_call_operand.vmem [shape: f32[1,32], index: 8, kind: input, shape index: {}]
  %s9 = inlined_call_operand.vmem [shape: bf16[8,32], index: 9, kind: input, shape index: {}]
  %s10 = inlined_call_operand.vmem [shape: f32[1,32], index: 10, kind: input, shape index: {}]
  %s11 = inlined_call_operand.vmem [shape: bf16[8,32], index: 11, kind: input, shape index: {}]
  %s12 = inlined_call_operand.vmem [shape: f32[1,32], index: 12, kind: input, shape index: {}]
  %s13 = inlined_call_operand.vmem [shape: f32[32,8], index: 13, kind: output, shape index: {0}]
  %s14 = inlined_call_operand.vmem [shape: bf16[32,32], index: 14, kind: output, shape index: {1}]
  %s15 = inlined_call_operand.vmem [shape: f32[32,64], index: 15, kind: output, shape index: {2}]
  %16 = xla_tuple %s13, %s14, %s15
  %s17 = sld [smem:[#allocation0]]
  $region78: #{skip_transformer_forward.2} parent=0
    _
  %s19 = ssub.s32 1, %s17
  %s20 = scalar_select 0, %s19, %s17
  // Predicated region
  $region2: #{skip_transformer_forward.2} parent=0 // pred_check
    _
  $region3: #{skip_transformer_forward.2} parent=0 // pred_check_branch
    %22 = sbr.rel (0) target = $region5
  $region4: #{skip_transformer_forward.2} parent=0 // pred_region
    _
  $region5: #{skip_transformer_forward.2} parent=0 // pred_fallthru
    _
  // Predicated region
  $region6: #{skip_transformer_forward.2} parent=0 // pred_check
    _
  $region7: #{skip_transformer_forward.2} parent=0 // pred_check_branch
    %24 = sbr.rel (0) target = $region9
  $region8: #{skip_transformer_forward.2} parent=0 // pred_region
    _
  $region9: #{skip_transformer_forward.2} parent=0 // pred_fallthru
    _
  // Predicated region
  $region10: #{skip_transformer_forward.2} parent=0 // pred_check
    _
  $region11: #{skip_transformer_forward.2} parent=0 // pred_check_branch
    %26 = sbr.rel (0) target = $region13
  $region12: #{skip_transformer_forward.2} parent=0 // pred_region
    _
  $region13: #{skip_transformer_forward.2} parent=0 // pred_fallthru
    _
  // Predicated region
  $region14: #{skip_transformer_forward.2} parent=0 // pred_check
    _
  $region15: #{skip_transformer_forward.2} parent=0 // pred_check_branch
    %28 = sbr.rel (0) target = $region17
  $region16: #{skip_transformer_forward.2} parent=0 // pred_region
    _
  $region17: #{skip_transformer_forward.2} parent=0 // pred_fallthru
    _
  // Predicated region
  $region18: #{skip_transformer_forward.2} parent=0 // pred_check
    _
  $region19: #{skip_transformer_forward.2} parent=0 // pred_check_branch
    %30 = sbr.rel (0) target = $region21
  $region20: #{skip_transformer_forward.2} parent=0 // pred_region
    _
  $region21: #{skip_transformer_forward.2} parent=0 // pred_fallthru
    _
  // Predicated region
  $region22: #{skip_transformer_forward.2} parent=0 // pred_check
    _
  $region23: #{skip_transformer_forward.2} parent=0 // pred_check_branch
    %32 = sbr.rel (0) target = $region25
  $region24: #{skip_transformer_forward.2} parent=0 // pred_region
    _
  $region25: #{skip_transformer_forward.2} parent=0 // pred_fallthru
    _
  // Predicated region
  $region26: #{skip_transformer_forward.2} parent=0 // pred_check
    _
  $region27: #{skip_transformer_forward.2} parent=0 // pred_check_branch
    %34 = sbr.rel (0) target = $region29
  $region28: #{skip_transformer_forward.2} parent=0 // pred_region
    _
  $region29: #{skip_transformer_forward.2} parent=0 // pred_fallthru
    _
  // Predicated region
  $region30: #{skip_transformer_forward.2} parent=0 // pred_check
    _
  $region31: #{skip_transformer_forward.2} parent=0 // pred_check_branch
    %36 = sbr.rel (0) target = $region33
  $region32: #{skip_transformer_forward.2} parent=0 // pred_region
    _
  $region33: #{skip_transformer_forward.2} parent=0 // pred_fallthru
    _
  // Predicated region
  $region34: #{skip_transformer_forward.2} parent=0 // pred_check
    _
  $region35: #{skip_transformer_forward.2} parent=0 // pred_check_branch
    %38 = sbr.rel (0) target = $region37
  $region36: #{skip_transformer_forward.2} parent=0 // pred_region
    _
  $region37: #{skip_transformer_forward.2} parent=0 // pred_fallthru
    _
  // Predicated region
  $region38: #{skip_transformer_forward.2} parent=0 // pred_check
    _
  $region39: #{skip_transformer_forward.2} parent=0 // pred_check_branch
    %40 = sbr.rel (0) target = $region41
  $region40: #{skip_transformer_forward.2} parent=0 // pred_region
    _
  $region41: #{skip_transformer_forward.2} parent=0 // pred_fallthru
    _
  // Predicated region
  $region42: #{skip_transformer_forward.2} parent=0 // pred_check
    _
  $region43: #{skip_transformer_forward.2} parent=0 // pred_check_branch
    %42 = sbr.rel (0) target = $region45
  $region44: #{skip_transformer_forward.2} parent=0 // pred_region
    _
  $region45: #{skip_transformer_forward.2} parent=0 // pred_fallthru
    _
  // Predicated region
  $region46: #{skip_transformer_forward.2} parent=0 // pred_check
    _
  $region47: #{skip_transformer_forward.2} parent=0 // pred_check_branch
    %44 = sbr.rel (0) target = $region49
  $region48: #{skip_transformer_forward.2} parent=0 // pred_region
    _
  $region49: #{skip_transformer_forward.2} parent=0 // pred_fallthru
    _
  // Predicated region
  $region50: #{skip_transformer_forward.2} parent=0 // pred_check
    _
  $region51: #{skip_transformer_forward.2} parent=0 // pred_check_branch
    %46 = sbr.rel (0) target = $region53
  $region52: #{skip_transformer_forward.2} parent=0 // pred_region
    _
  $region53: #{skip_transformer_forward.2} parent=0 // pred_fallthru
    _
  %v48 = vld [vmem:[%s0] sm:$0xf]
  %v49 = vld [vmem:[%s0 + $0x4] sm:$0xf]
  %v50 = vld [vmem:[%s0 + $0x8] sm:$0xf]
  %v51 = vld [vmem:[%s0 + $0xc] sm:$0xf]
  %v52 = vld [vmem:[%s1] sm:$0xf]
  %v53 = vld [vmem:[%s1 + $0x4] sm:$0xf]
  %v54 = vld [vmem:[%s2] sm:$0x1]
  %v56 = vlaneseq
  %v57 = vshrl.u32 %v56, 7
  %v58 = vsub.s32 0, %v57
  %v59 = vrot.slane %v54, %v58
  %v65 = vunpack.c.l.b16 %v48
  %v66 = vunpack.c.l.b16 %v49
  %v67 = vunpack.c.l.b16 %v50
  %v68 = vunpack.c.l.b16 %v51
  %v69 = vpack.c.b16 %v66, %v65
  %v70 = vpack.c.b16 %v68, %v67
  %v73 = vunpack.c.l.b16 %v52
  %v74 = vunpack.c.l.b16 %v53
  %v75 = vpack.c.b16 %v74, %v73
  %vm77 = vcmask 130048
  %v79 = vsel %vm77, %v69, 0
  %v82 = vsel %vm77, %v70, 0
  %84 = vmatprep.subr.bf16.mxu0 0
  %85 = vmatpush1.bf16.msra.mxu0 0
  %86 = vmatprep.subr.bf16.mxu0 0
  %87 = vmatpush1.bf16.msra.mxu0 0
  %88 = vmatprep.subr.bf16.mxu0 0
  %89 = vmatpush1.bf16.msra.mxu0 0
  %90 = vmatprep.subr.bf16.mxu0 0
  %91 = vmatpush1.bf16.msra.mxu0 0
  %92 = vmatprep.subr.bf16.mxu0 0
  %93 = vmatpush1.bf16.msra.mxu0 0
  %94 = vmatprep.subr.bf16.mxu0 0
  %95 = vmatpush1.bf16.msra.mxu0 0
  %96 = vmatprep.subr.bf16.mxu0 0
  %97 = vmatpush1.bf16.msra.mxu0 0
  %98 = vmatprep.subr.bf16.mxu0 0
  %99 = vmatpush1.bf16.msra.mxu0 %v75
  %100 = vmatprep.subr.bf16.mxu0 0
  %101 = vmatpush2.bf16.msra.mxu0 0
  %102 = vmatprep.subr.bf16.mxu0 0
  %103 = vmatpush2.bf16.msra.mxu0 0
  %104 = vmatprep.subr.bf16.mxu0 0
  %105 = vmatpush2.bf16.msra.mxu0 0
  %106 = vmatprep.subr.bf16.mxu0 0
  %107 = vmatpush2.bf16.msra.mxu0 0
  %108 = vmatprep.subr.bf16.mxu0 0
  %109 = vmatpush2.bf16.msra.mxu0 0
  %110 = vmatprep.subr.bf16.mxu0 0
  %111 = vmatpush2.bf16.msra.mxu0 0
  %112 = vmatprep.subr.bf16.mxu0 0
  %113 = vmatpush2.bf16.msra.mxu0 0
  %114 = vmatprep.subr.bf16.mxu0 0
  %115 = vmatpush2.bf16.msra.mxu0 0
  %116 = vmatprep.mubr.bf16.mxu0 0
  %117 = vmatmul.mubr.bf16.gmra.mxu0 %v79
  %v118 = vpop.f32.mrf.mxu0
  %v119 = vadd.f32 %v59, %v118
  %v120 = vpop.f32.mrf.mxu0
  %v121 = vpop.f32.mrf.mxu0
  %v122 = vadd.f32 %v59, %v121
  %v123 = vpop.f32.mrf.mxu0
  %124 = vmatprep.mubr.bf16.mxu0 0
  %125 = vmatmul.mubr.bf16.gmra.mxu0 %v82
  %v126 = vpop.f32.mrf.mxu0
  %v127 = vadd.f32 %v59, %v126
  %v128 = vpop.f32.mrf.mxu0
  %v129 = vpop.f32.mrf.mxu0
  %v130 = vadd.f32 %v59, %v129
  %v131 = vpop.f32.mrf.mxu0
  %132 = vdwg.mxu0
  %v133 = vmax.f32 %v119, 0.0
  %v134 = vmax.f32 %v122, 0.0
  %v135 = vmax.f32 %v127, 0.0
  %v136 = vmax.f32 %v130, 0.0
  %v137 = vld [vmem:[%s5] sm:$0xf]
  %v138 = vld [vmem:[%s5 + $0x4] sm:$0xf]
  %v139 = vld [vmem:[%s6] sm:$0x1]
  %v141 = vlaneseq
  %v142 = vshrl.u32 %v141, 7
  %v143 = vsub.s32 0, %v142
  %v144 = vrot.slane %v139, %v143
  %v148 = vunpack.c.l.b16 %v137
  %v149 = vunpack.c.l.b16 %v138
  %v150 = vpack.c.b16 %v149, %v148
  %152 = vmatprep.subr.bf16.mxu0 0
  %153 = vmatpush1.bf16.msra.mxu0 0
  %154 = vmatprep.subr.bf16.mxu0 0
  %155 = vmatpush1.bf16.msra.mxu0 0
  %156 = vmatprep.subr.bf16.mxu0 0
  %157 = vmatpush1.bf16.msra.mxu0 0
  %158 = vmatprep.subr.bf16.mxu0 0
  %159 = vmatpush1.bf16.msra.mxu0 0
  %160 = vmatprep.subr.bf16.mxu0 0
  %161 = vmatpush1.bf16.msra.mxu0 0
  %162 = vmatprep.subr.bf16.mxu0 0
  %163 = vmatpush1.bf16.msra.mxu0 0
  %164 = vmatprep.subr.bf16.mxu0 0
  %165 = vmatpush1.bf16.msra.mxu0 0
  %166 = vmatprep.subr.bf16.mxu0 0
  %167 = vmatpush1.bf16.msra.mxu0 %v150
  %168 = vmatprep.subr.bf16.mxu0 0
  %169 = vmatpush2.bf16.msra.mxu0 0
  %170 = vmatprep.subr.bf16.mxu0 0
  %171 = vmatpush2.bf16.msra.mxu0 0
  %172 = vmatprep.subr.bf16.mxu0 0
  %173 = vmatpush2.bf16.msra.mxu0 0
  %174 = vmatprep.subr.bf16.mxu0 0
  %175 = vmatpush2.bf16.msra.mxu0 0
  %176 = vmatprep.subr.bf16.mxu0 0
  %177 = vmatpush2.bf16.msra.mxu0 0
  %178 = vmatprep.subr.bf16.mxu0 0
  %179 = vmatpush2.bf16.msra.mxu0 0
  %180 = vmatprep.subr.bf16.mxu0 0
  %181 = vmatpush2.bf16.msra.mxu0 0
  %182 = vmatprep.subr.bf16.mxu0 0
  %183 = vmatpush2.bf16.msra.mxu0 0
  %184 = vmatprep.mubr.bf16.mxu0 0
  %185 = vmatmul.mubr.bf16.gmra.mxu0 %v79
  %v186 = vpop.f32.mrf.mxu0
  %v187 = vadd.f32 %v144, %v186
  %v188 = vpop.f32.mrf.mxu0
  %v189 = vpop.f32.mrf.mxu0
  %v190 = vadd.f32 %v144, %v189
  %v191 = vpop.f32.mrf.mxu0
  %192 = vmatprep.mubr.bf16.mxu0 0
  %193 = vmatmul.mubr.bf16.gmra.mxu0 %v82
  %v194 = vpop.f32.mrf.mxu0
  %v195 = vadd.f32 %v144, %v194
  %v196 = vpop.f32.mrf.mxu0
  %v197 = vpop.f32.mrf.mxu0
  %v198 = vadd.f32 %v144, %v197
  %v199 = vpop.f32.mrf.mxu0
  %200 = vdwg.mxu0
  %v201 = vpack.c.bf16 %v134, %v133
  %v202 = vpack.c.bf16 %v136, %v135
  %v203 = vld [vmem:[%s3] sm:$0xf]
  %v204 = vld [vmem:[%s4] sm:$0x1]
  %v206 = vlaneseq
  %v207 = vshrl.u32 %v206, 7
  %v208 = vsub.s32 0, %v207
  %v209 = vrot.slane %v204, %v208
  %vm211 = vcmask 64512
  %v213 = vsel %vm211, %v201, 0
  %v216 = vsel %vm211, %v202, 0
  %vm218 = vcmask 1043456
  %v220 = vsel %vm218, %v203, 0
  %222 = vmatprep.subr.bf16.mxu0 0
  %223 = vmatpush1.bf16.msra.mxu0 0
  %224 = vmatprep.subr.bf16.mxu0 0
  %225 = vmatpush1.bf16.msra.mxu0 0
  %226 = vmatprep.subr.bf16.mxu0 0
  %227 = vmatpush1.bf16.msra.mxu0 0
  %228 = vmatprep.subr.bf16.mxu0 0
  %229 = vmatpush1.bf16.msra.mxu0 0
  %230 = vmatprep.subr.bf16.mxu0 0
  %231 = vmatpush1.bf16.msra.mxu0 0
  %232 = vmatprep.subr.bf16.mxu0 0
  %233 = vmatpush1.bf16.msra.mxu0 0
  %234 = vmatprep.subr.bf16.mxu0 0
  %235 = vmatpush1.bf16.msra.mxu0 0
  %236 = vmatprep.subr.bf16.mxu0 0
  %237 = vmatpush1.bf16.msra.mxu0 %v220
  %238 = vmatprep.subr.bf16.mxu0 0
  %239 = vmatpush2.bf16.msra.mxu0 0
  %240 = vmatprep.subr.bf16.mxu0 0
  %241 = vmatpush2.bf16.msra.mxu0 0
  %242 = vmatprep.subr.bf16.mxu0 0
  %243 = vmatpush2.bf16.msra.mxu0 0
  %244 = vmatprep.subr.bf16.mxu0 0
  %245 = vmatpush2.bf16.msra.mxu0 0
  %246 = vmatprep.subr.bf16.mxu0 0
  %247 = vmatpush2.bf16.msra.mxu0 0
  %248 = vmatprep.subr.bf16.mxu0 0
  %249 = vmatpush2.bf16.msra.mxu0 0
  %250 = vmatprep.subr.bf16.mxu0 0
  %251 = vmatpush2.bf16.msra.mxu0 0
  %252 = vmatprep.subr.bf16.mxu0 0
  %253 = vmatpush2.bf16.msra.mxu0 0
  %254 = vmatprep.mubr.bf16.mxu0 0
  %255 = vmatmul.mubr.bf16.gmra.mxu0 %v213
  %v256 = vpop.f32.mrf.mxu0
  %v257 = vadd.f32 %v209, %v256
  %v258 = vpop.f32.mrf.mxu0
  %v259 = vpop.f32.mrf.mxu0
  %v260 = vadd.f32 %v209, %v259
  %v261 = vpop.f32.mrf.mxu0
  %262 = vmatprep.mubr.bf16.mxu0 0
  %263 = vmatmul.mubr.bf16.gmra.mxu0 %v216
  %v264 = vpop.f32.mrf.mxu0
  %v265 = vadd.f32 %v209, %v264
  %v266 = vpop.f32.mrf.mxu0
  %v267 = vpop.f32.mrf.mxu0
  %v268 = vadd.f32 %v209, %v267
  %v269 = vpop.f32.mrf.mxu0
  %270 = vdwg.mxu0
  %v271 = vadd.f32 %v257, %v187
  %v272 = vadd.f32 %v260, %v190
  %v273 = vadd.f32 %v265, %v195
  %v274 = vadd.f32 %v268, %v198
  %275 = vst.msk [vmem:[%s13] sm:$0xff] %vm211, %v271
  %276 = vst.msk [vmem:[%s13 + $0x8] sm:$0xff] %vm211, %v272
  %277 = vst.msk [vmem:[%s13 + $0x10] sm:$0xff] %vm211, %v273
  %278 = vst.msk [vmem:[%s13 + $0x18] sm:$0xff] %vm211, %v274
  %v279 = vld [vmem:[%s7] sm:$0xf]
  %v280 = vld [vmem:[%s8] sm:$0x1]
  %v282 = vlaneseq
  %v283 = vshrl.u32 %v282, 7
  %v284 = vsub.s32 0, %v283
  %v285 = vrot.slane %v280, %v284
  %v287 = vsel %vm211, %v69, 0
  %v289 = vsel %vm211, %v70, 0
  %v292 = vsel %vm218, %v279, 0
  %294 = vmatprep.subr.bf16.mxu0 0
  %295 = vmatpush1.bf16.msra.mxu0 0
  %296 = vmatprep.subr.bf16.mxu0 0
  %297 = vmatpush1.bf16.msra.mxu0 0
  %298 = vmatprep.subr.bf16.mxu0 0
  %299 = vmatpush1.bf16.msra.mxu0 0
  %300 = vmatprep.subr.bf16.mxu0 0
  %301 = vmatpush1.bf16.msra.mxu0 0
  %302 = vmatprep.subr.bf16.mxu0 0
  %303 = vmatpush1.bf16.msra.mxu0 0
  %304 = vmatprep.subr.bf16.mxu0 0
  %305 = vmatpush1.bf16.msra.mxu0 0
  %306 = vmatprep.subr.bf16.mxu0 0
  %307 = vmatpush1.bf16.msra.mxu0 0
  %308 = vmatprep.subr.bf16.mxu0 0
  %309 = vmatpush1.bf16.msra.mxu0 %v292
  %310 = vmatprep.subr.bf16.mxu0 0
  %311 = vmatpush2.bf16.msra.mxu0 0
  %312 = vmatprep.subr.bf16.mxu0 0
  %313 = vmatpush2.bf16.msra.mxu0 0
  %314 = vmatprep.subr.bf16.mxu0 0
  %315 = vmatpush2.bf16.msra.mxu0 0
  %316 = vmatprep.subr.bf16.mxu0 0
  %317 = vmatpush2.bf16.msra.mxu0 0
  %318 = vmatprep.subr.bf16.mxu0 0
  %319 = vmatpush2.bf16.msra.mxu0 0
  %320 = vmatprep.subr.bf16.mxu0 0
  %321 = vmatpush2.bf16.msra.mxu0 0
  %322 = vmatprep.subr.bf16.mxu0 0
  %323 = vmatpush2.bf16.msra.mxu0 0
  %324 = vmatprep.subr.bf16.mxu0 0
  %325 = vmatpush2.bf16.msra.mxu0 0
  %326 = vmatprep.mubr.bf16.mxu0 0
  %327 = vmatmul.mubr.bf16.gmra.mxu0 %v287
  %v328 = vpop.f32.mrf.mxu0
  %v329 = vadd.f32 %v285, %v328
  %v330 = vpop.f32.mrf.mxu0
  %v331 = vpop.f32.mrf.mxu0
  %v332 = vadd.f32 %v285, %v331
  %v333 = vpop.f32.mrf.mxu0
  %334 = vmatprep.mubr.bf16.mxu0 0
  %335 = vmatmul.mubr.bf16.gmra.mxu0 %v289
  %v336 = vpop.f32.mrf.mxu0
  %v337 = vadd.f32 %v285, %v336
  %v338 = vpop.f32.mrf.mxu0
  %v339 = vpop.f32.mrf.mxu0
  %v340 = vadd.f32 %v285, %v339
  %v341 = vpop.f32.mrf.mxu0
  %342 = vdwg.mxu0
  %v343 = vpack.c.bf16 %v332, %v329
  %v344 = vpack.c.bf16 %v340, %v337
  %v347 = vunpack.c.l.b16 %v343
  %v348 = vunpack.c.h.b16 %v343
  %v349 = vunpack.c.l.b16 %v344
  %v350 = vunpack.c.h.b16 %v344
  %v351 = vpack.c.b16 %v347, %v347
  %v352 = vpack.c.b16 %v348, %v348
  %v353 = vpack.c.b16 %v349, %v349
  %v354 = vpack.c.b16 %v350, %v350
  %vm359 = vcmask 257024
  %360 = vst.msk [vmem:[%s14] sm:$0xf] %vm359, %v351
  %361 = vst.msk [vmem:[%s14 + $0x4] sm:$0xf] %vm359, %v352
  %362 = vst.msk [vmem:[%s14 + $0x8] sm:$0xf] %vm359, %v353
  %363 = vst.msk [vmem:[%s14 + $0xc] sm:$0xf] %vm359, %v354
  %v364 = vld [vmem:[%s9] sm:$0xf]
  %v365 = vld [vmem:[%s10] sm:$0x1]
  %v367 = vlaneseq
  %v368 = vshrl.u32 %v367, 7
  %v369 = vsub.s32 0, %v368
  %v370 = vrot.slane %v365, %v369
  %372 = vrot.lane.b32.xlu0 %v69, 120
  %v373 = vpop.permute.xlu0 %372
  %374 = vrot.lane.b32.xlu0 %v70, 120
  %v375 = vpop.permute.xlu0 %374
  %v377 = vsel %vm211, %v373, 0
  %v380 = vsel %vm211, %v375, 0
  %v383 = vsel %vm218, %v364, 0
  %385 = vmatprep.subr.bf16.mxu0 0
  %386 = vmatpush1.bf16.msra.mxu0 0
  %387 = vmatprep.subr.bf16.mxu0 0
  %388 = vmatpush1.bf16.msra.mxu0 0
  %389 = vmatprep.subr.bf16.mxu0 0
  %390 = vmatpush1.bf16.msra.mxu0 0
  %391 = vmatprep.subr.bf16.mxu0 0
  %392 = vmatpush1.bf16.msra.mxu0 0
  %393 = vmatprep.subr.bf16.mxu0 0
  %394 = vmatpush1.bf16.msra.mxu0 0
  %395 = vmatprep.subr.bf16.mxu0 0
  %396 = vmatpush1.bf16.msra.mxu0 0
  %397 = vmatprep.subr.bf16.mxu0 0
  %398 = vmatpush1.bf16.msra.mxu0 0
  %399 = vmatprep.subr.bf16.mxu0 0
  %400 = vmatpush1.bf16.msra.mxu0 %v383
  %401 = vmatprep.subr.bf16.mxu0 0
  %402 = vmatpush2.bf16.msra.mxu0 0
  %403 = vmatprep.subr.bf16.mxu0 0
  %404 = vmatpush2.bf16.msra.mxu0 0
  %405 = vmatprep.subr.bf16.mxu0 0
  %406 = vmatpush2.bf16.msra.mxu0 0
  %407 = vmatprep.subr.bf16.mxu0 0
  %408 = vmatpush2.bf16.msra.mxu0 0
  %409 = vmatprep.subr.bf16.mxu0 0
  %410 = vmatpush2.bf16.msra.mxu0 0
  %411 = vmatprep.subr.bf16.mxu0 0
  %412 = vmatpush2.bf16.msra.mxu0 0
  %413 = vmatprep.subr.bf16.mxu0 0
  %414 = vmatpush2.bf16.msra.mxu0 0
  %415 = vmatprep.subr.bf16.mxu0 0
  %416 = vmatpush2.bf16.msra.mxu0 0
  %417 = vmatprep.mubr.bf16.mxu0 0
  %418 = vmatmul.mubr.bf16.gmra.mxu0 %v377
  %v419 = vpop.f32.mrf.mxu0
  %v420 = vadd.f32 %v370, %v419
  %v421 = vpop.f32.mrf.mxu0
  %v422 = vpop.f32.mrf.mxu0
  %v423 = vadd.f32 %v370, %v422
  %v424 = vpop.f32.mrf.mxu0
  %425 = vmatprep.mubr.bf16.mxu0 0
  %426 = vmatmul.mubr.bf16.gmra.mxu0 %v380
  %v427 = vpop.f32.mrf.mxu0
  %v428 = vadd.f32 %v370, %v427
  %v429 = vpop.f32.mrf.mxu0
  %v430 = vpop.f32.mrf.mxu0
  %v431 = vadd.f32 %v370, %v430
  %v432 = vpop.f32.mrf.mxu0
  %433 = vdwg.mxu0
  %v434 = vpack.c.bf16 %v272, %v271
  %v435 = vpack.c.bf16 %v274, %v273
  %v436 = vld [vmem:[%s11] sm:$0xf]
  %v437 = vld [vmem:[%s12] sm:$0x1]
  %v439 = vlaneseq
  %v440 = vshrl.u32 %v439, 7
  %v441 = vsub.s32 0, %v440
  %v442 = vrot.slane %v437, %v441
  %v445 = vsel %vm211, %v434, 0
  %v448 = vsel %vm211, %v435, 0
  %v451 = vsel %vm218, %v436, 0
  %453 = vmatprep.subr.bf16.mxu0 0
  %454 = vmatpush1.bf16.msra.mxu0 0
  %455 = vmatprep.subr.bf16.mxu0 0
  %456 = vmatpush1.bf16.msra.mxu0 0
  %457 = vmatprep.subr.bf16.mxu0 0
  %458 = vmatpush1.bf16.msra.mxu0 0
  %459 = vmatprep.subr.bf16.mxu0 0
  %460 = vmatpush1.bf16.msra.mxu0 0
  %461 = vmatprep.subr.bf16.mxu0 0
  %462 = vmatpush1.bf16.msra.mxu0 0
  %463 = vmatprep.subr.bf16.mxu0 0
  %464 = vmatpush1.bf16.msra.mxu0 0
  %465 = vmatprep.subr.bf16.mxu0 0
  %466 = vmatpush1.bf16.msra.mxu0 0
  %467 = vmatprep.subr.bf16.mxu0 0
  %468 = vmatpush1.bf16.msra.mxu0 %v451
  %469 = vmatprep.subr.bf16.mxu0 0
  %470 = vmatpush2.bf16.msra.mxu0 0
  %471 = vmatprep.subr.bf16.mxu0 0
  %472 = vmatpush2.bf16.msra.mxu0 0
  %473 = vmatprep.subr.bf16.mxu0 0
  %474 = vmatpush2.bf16.msra.mxu0 0
  %475 = vmatprep.subr.bf16.mxu0 0
  %476 = vmatpush2.bf16.msra.mxu0 0
  %477 = vmatprep.subr.bf16.mxu0 0
  %478 = vmatpush2.bf16.msra.mxu0 0
  %479 = vmatprep.subr.bf16.mxu0 0
  %480 = vmatpush2.bf16.msra.mxu0 0
  %481 = vmatprep.subr.bf16.mxu0 0
  %482 = vmatpush2.bf16.msra.mxu0 0
  %483 = vmatprep.subr.bf16.mxu0 0
  %484 = vmatpush2.bf16.msra.mxu0 0
  %485 = vmatprep.mubr.bf16.mxu0 0
  %486 = vmatmul.mubr.bf16.gmra.mxu0 %v445
  %v487 = vpop.f32.mrf.mxu0
  %v488 = vadd.f32 %v442, %v487
  %v489 = vpop.f32.mrf.mxu0
  %v490 = vpop.f32.mrf.mxu0
  %v491 = vadd.f32 %v442, %v490
  %v492 = vpop.f32.mrf.mxu0
  %493 = vmatprep.mubr.bf16.mxu0 0
  %494 = vmatmul.mubr.bf16.gmra.mxu0 %v448
  %v495 = vpop.f32.mrf.mxu0
  %v496 = vadd.f32 %v442, %v495
  %v497 = vpop.f32.mrf.mxu0
  %v498 = vpop.f32.mrf.mxu0
  %v499 = vadd.f32 %v442, %v498
  %v500 = vpop.f32.mrf.mxu0
  %501 = vdwg.mxu0
  %506 = vrot.lane.b32.xlu0 %v488, 32
  %v507 = vpop.permute.xlu0 %506
  %508 = vrot.lane.b32.xlu0 %v491, 32
  %v509 = vpop.permute.xlu0 %508
  %510 = vrot.lane.b32.xlu0 %v496, 32
  %v511 = vpop.permute.xlu0 %510
  %512 = vrot.lane.b32.xlu0 %v499, 32
  %v513 = vpop.permute.xlu0 %512
  %vm518 = vcmask 261120
  %v519 = vsel %vm518, %v420, %v507
  %v520 = vsel %vm518, %v423, %v509
  %v521 = vsel %vm518, %v428, %v511
  %v522 = vsel %vm518, %v431, %v513
  %vm523 = vcmask 523264
  %524 = vst.msk [vmem:[%s15] sm:$0xff] %vm523, %v519
  %525 = vst.msk [vmem:[%s15 + $0x8] sm:$0xff] %vm523, %v520
  %526 = vst.msk [vmem:[%s15 + $0x10] sm:$0xff] %vm523, %v521
  %527 = vst.msk [vmem:[%s15 + $0x18] sm:$0xff] %vm523, %v522
  // Predicated region
  $region54: #{skip_transformer_forward.2} parent=0 // pred_check
    _
  $region55: #{skip_transformer_forward.2} parent=0 // pred_check_branch
    %529 = sbr.rel (0) target = $region57
  $region56: #{skip_transformer_forward.2} parent=0 // pred_region
    _
  $region57: #{skip_transformer_forward.2} parent=0 // pred_fallthru
    _
  // Predicated region
  $region58: #{skip_transformer_forward.2} parent=0 // pred_check
    _
  $region59: #{skip_transformer_forward.2} parent=0 // pred_check_branch
    %531 = sbr.rel (0) target = $region61
  $region60: #{skip_transformer_forward.2} parent=0 // pred_region
    _
  $region61: #{skip_transformer_forward.2} parent=0 // pred_fallthru
    _
  // Predicated region
  $region62: #{skip_transformer_forward.2} parent=0 // pred_check
    _
  $region63: #{skip_transformer_forward.2} parent=0 // pred_check_branch
    %533 = sbr.rel (0) target = $region65
  $region64: #{skip_transformer_forward.2} parent=0 // pred_region
    _
  $region65: #{skip_transformer_forward.2} parent=0 // pred_fallthru
    _
  // Predicated region
  $region66: #{skip_transformer_forward.2} parent=0 // pred_check
    _
  $region67: #{skip_transformer_forward.2} parent=0 // pred_check_branch
    %535 = sbr.rel (0) target = $region69
  $region68: #{skip_transformer_forward.2} parent=0 // pred_region
    _
  $region69: #{skip_transformer_forward.2} parent=0 // pred_fallthru
    _
  // Predicated region
  $region70: #{skip_transformer_forward.2} parent=0 // pred_check
    _
  $region71: #{skip_transformer_forward.2} parent=0 // pred_check_branch
    %537 = sbr.rel (0) target = $region73
  $region72: #{skip_transformer_forward.2} parent=0 // pred_region
    _
  $region73: #{skip_transformer_forward.2} parent=0 // pred_fallthru
    _
  // Predicated region
  $region74: #{skip_transformer_forward.2} parent=0 // pred_check
    _
  $region75: #{skip_transformer_forward.2} parent=0 // pred_check_branch
    %539 = sbr.rel (0) target = $region77
  $region76: #{skip_transformer_forward.2} parent=0 // pred_region
    _
  $region77: #{skip_transformer_forward.2} parent=0 // pred_fallthru
    _

// kernel: skip_transformer_forward.3
$region0: #{skip_transformer_forward.3}
  #allocation0 [shape = 'u32[]', space=smem, size = 0x4, offset = 0x4, fixed_abs, tag = 'smem constant byte address 0x4 - core index']
  #allocation1 [shape = 'u32[144,128]{1,0:T(1,128)}', space=vmem, size = 0x12000, scoped, tag = 'internal scratch']
  %s0 = inlined_call_operand.vmem [shape: f32[2,16,64], index: 0, kind: input, shape index: {}]
  %s1 = inlined_call_operand.vmem [shape: bf16[2,64,32], index: 1, kind: input, shape index: {}]
  %s2 = inlined_call_operand.vmem [shape: f32[2,64,3], index: 2, kind: input, shape index: {}]
  %s3 = inlined_call_operand.vmem [shape: f32[2,16,8], index: 3, kind: input, shape index: {}, may-alias: {3,14}]
  %s4 = inlined_call_operand.vmem [shape: f32[3,16], index: 4, kind: input, shape index: {}]
  %s5 = inlined_call_operand.vmem [shape: f32[1,16], index: 5, kind: input, shape index: {}]
  %s6 = inlined_call_operand.vmem [shape: bf16[16,32], index: 6, kind: input, shape index: {}]
  %s7 = inlined_call_operand.vmem [shape: f32[1,32], index: 7, kind: input, shape index: {}]
  %s8 = inlined_call_operand.vmem [shape: bf16[32,128], index: 8, kind: input, shape index: {}]
  %s9 = inlined_call_operand.vmem [shape: f32[1,128], index: 9, kind: input, shape index: {}]
  %s10 = inlined_call_operand.vmem [shape: bf16[128,32], index: 10, kind: input, shape index: {}]
  %s11 = inlined_call_operand.vmem [shape: f32[1,32], index: 11, kind: input, shape index: {}]
  %s12 = inlined_call_operand.vmem [shape: bf16[32,8], index: 12, kind: input, shape index: {}]
  %s13 = inlined_call_operand.vmem [shape: f32[1,8], index: 13, kind: input, shape index: {}]
  %s14 = inlined_call_operand.vmem [shape: f32[2,16,8], index: 14, kind: output, shape index: {}, may-alias: {3,14}]
  %s15 = sld [smem:[#allocation0]]
  $region89: #{skip_transformer_forward.3} parent=0
    _
  %s17 = ssub.s32 1, %s15
  %s18 = scalar_select 0, %s17, %s15
  loop: start=0, step=1, limit=4
  $region2: #{skip_transformer_forward.3} parent=0 // loop_pre_header
    _
  $region3: #{skip_transformer_forward.3} parent=0 // loop_header
    %s20 = sphi 0, %s24
    %p21 = scmp.ge.s32.totalorder %s20, 4
    %s27 = sphi 0, %s39
    %s28 = sphi 0, %s35
    %s29 = sphi 0, %s27
    %s30 = sphi 0, %s28
    %s31 = sphi 0, %s29
    %s32 = sphi 0, %s30
    %s44 = sphi 0, %s46
    %s47 = sphi 0, %s44
    %s48 = sphi 0, %s47
    %s64 = sphi 0, %s48
    %s72 = sphi 0, %s74
    %s75 = sphi 0, %s72
    %s76 = sphi 0, %s75
    %s92 = sphi 0, %s76
    %s100 = sphi 0, %s102
    %s103 = sphi 0, %s100
    %s104 = sphi 0, %s103
    %s120 = sphi 0, %s104
    %s128 = sphi 0, %s130
    %s131 = sphi 0, %s128
    %s132 = sphi 0, %s131
    %s148 = sphi 0, %s132
    %s152 = sphi 0, %s152
    %s154 = sphi 0, %s152
    %s155 = sphi 0, %s154
    %s169 = sphi 0, %s155
    %s173 = sphi 0, %s173
    %s175 = sphi 0, %s173
    %s176 = sphi 0, %s175
    %s190 = sphi 0, %s176
    %s194 = sphi 0, %s194
    %s196 = sphi 0, %s194
    %s197 = sphi 0, %s196
    %s211 = sphi 0, %s197
    %s215 = sphi 0, %s215
    %s217 = sphi 0, %s215
    %s218 = sphi 0, %s217
    %s232 = sphi 0, %s218
    %s236 = sphi 0, %s236
    %s238 = sphi 0, %s236
    %s239 = sphi 0, %s238
    %s253 = sphi 0, %s239
    %s257 = sphi 0, %s257
    %s259 = sphi 0, %s257
    %s260 = sphi 0, %s259
    %s274 = sphi 0, %s260
    %s278 = sphi 0, %s278
    %s280 = sphi 0, %s278
    %s281 = sphi 0, %s280
    %s295 = sphi 0, %s281
    %s299 = sphi 0, %s299
    %s301 = sphi 0, %s299
    %s302 = sphi 0, %s301
    %s316 = sphi 0, %s302
    %s320 = sphi 0, %s320
    %s322 = sphi 0, %s320
    %s323 = sphi 0, %s322
    %s337 = sphi 0, %s323
    %s341 = sphi 0, %s341
    %s343 = sphi 0, %s341
    %s344 = sphi 0, %s343
    %s358 = sphi 0, %s344
    %s366 = sphi 0, %s368
    %s369 = sphi 0, %s366
    %s370 = sphi 0, %s369
    %s386 = sphi 0, %s370
  $region4: #{skip_transformer_forward.3} parent=0 // loop_header_branch
    %23 = sbr.rel (%p21) target = $region8
  $region5: #{skip_transformer_forward.3} parent=0 // loop_body
    %s25 = ssub.s32 %s20, 1
    %s26 = ssub.s32 %s20, 2
    %s33 = sadd.s32 1, %s28
    %p34 = scmp.ge.s32.totalorder %s33, 1
    %s35 = scalar_select %p34, 0, %s33
    %s36 = sadd.s32 1, %s27
    %s37 = scalar_select %p34, %s36, %s27
    %p38 = scmp.ge.s32.totalorder %s37, 2
    %s39 = scalar_select %p38, 0, %s37
    %s40 = ssub.s32 %s27, %s39
    %s41 = ssub.s32 %s28, %s35
    %s42 = sor.u32 %s40, %s41
    %p43 = scmp.eq.s32.totalorder %s42, 0
    %s45 = sadd.s32 %s44, 1
    %s46 = scalar_select %p43, %s44, %s45
    %p49 = pneg %p43
    %p50 = scmp.eq.s32.totalorder %s20, 1
    %p51 = por %p49, %p50
    %p52 = scmp.ne.s32.totalorder %s44, %s47
    %p53 = scmp.eq.s32.totalorder %s20, 0
    %p54 = por %p52, %p53
    %p55 = scmp.ne.s32.totalorder %s44, %s47
    %p56 = scmp.eq.s32.totalorder %s25, 1
    %p57 = por %p55, %p56
    %p58 = scmp.ne.s32.totalorder %s47, %s48
    %p59 = scmp.eq.s32.totalorder %s25, 0
    %p60 = por %p58, %p59
    %p61 = scmp.ne.s32.totalorder %s47, %s48
    %p62 = scmp.eq.s32.totalorder %s26, 1
    %p63 = por %p61, %p62
    %p65 = scmp.ne.s32.totalorder %s48, %s64
    %p66 = scmp.eq.s32.totalorder %s26, 0
    %p67 = por %p65, %p66
    %s68 = ssub.s32 %s27, %s39
    %s69 = ssub.s32 %s28, %s35
    %s70 = sor.u32 %s68, %s69
    %p71 = scmp.eq.s32.totalorder %s70, 0
    %s73 = sadd.s32 %s72, 1
    %s74 = scalar_select %p71, %s72, %s73
    %p77 = pneg %p71
    %p78 = scmp.eq.s32.totalorder %s20, 1
    %p79 = por %p77, %p78
    %p80 = scmp.ne.s32.totalorder %s72, %s75
    %p81 = scmp.eq.s32.totalorder %s20, 0
    %p82 = por %p80, %p81
    %p83 = scmp.ne.s32.totalorder %s72, %s75
    %p84 = scmp.eq.s32.totalorder %s25, 1
    %p85 = por %p83, %p84
    %p86 = scmp.ne.s32.totalorder %s75, %s76
    %p87 = scmp.eq.s32.totalorder %s25, 0
    %p88 = por %p86, %p87
    %p89 = scmp.ne.s32.totalorder %s75, %s76
    %p90 = scmp.eq.s32.totalorder %s26, 1
    %p91 = por %p89, %p90
    %p93 = scmp.ne.s32.totalorder %s76, %s92
    %p94 = scmp.eq.s32.totalorder %s26, 0
    %p95 = por %p93, %p94
    %s96 = ssub.s32 %s27, %s39
    %s97 = ssub.s32 %s28, %s35
    %s98 = sor.u32 %s96, %s97
    %p99 = scmp.eq.s32.totalorder %s98, 0
    %s101 = sadd.s32 %s100, 1
    %s102 = scalar_select %p99, %s100, %s101
    %p105 = pneg %p99
    %p106 = scmp.eq.s32.totalorder %s20, 1
    %p107 = por %p105, %p106
    %p108 = scmp.ne.s32.totalorder %s100, %s103
    %p109 = scmp.eq.s32.totalorder %s20, 0
    %p110 = por %p108, %p109
    %p111 = scmp.ne.s32.totalorder %s100, %s103
    %p112 = scmp.eq.s32.totalorder %s25, 1
    %p113 = por %p111, %p112
    %p114 = scmp.ne.s32.totalorder %s103, %s104
    %p115 = scmp.eq.s32.totalorder %s25, 0
    %p116 = por %p114, %p115
    %p117 = scmp.ne.s32.totalorder %s103, %s104
    %p118 = scmp.eq.s32.totalorder %s26, 1
    %p119 = por %p117, %p118
    %p121 = scmp.ne.s32.totalorder %s104, %s120
    %p122 = scmp.eq.s32.totalorder %s26, 0
    %p123 = por %p121, %p122
    %s124 = ssub.s32 %s27, %s39
    %s125 = ssub.s32 %s28, %s35
    %s126 = sor.u32 %s124, %s125
    %p127 = scmp.eq.s32.totalorder %s126, 0
    %s129 = sadd.s32 %s128, 1
    %s130 = scalar_select %p127, %s128, %s129
    %p133 = pneg %p127
    %p134 = scmp.eq.s32.totalorder %s20, 1
    %p135 = por %p133, %p134
    %p136 = scmp.ne.s32.totalorder %s128, %s131
    %p137 = scmp.eq.s32.totalorder %s20, 0
    %p138 = por %p136, %p137
    %p139 = scmp.ne.s32.totalorder %s128, %s131
    %p140 = scmp.eq.s32.totalorder %s25, 1
    %p141 = por %p139, %p140
    %p142 = scmp.ne.s32.totalorder %s131, %s132
    %p143 = scmp.eq.s32.totalorder %s25, 0
    %p144 = por %p142, %p143
    %p145 = scmp.ne.s32.totalorder %s131, %s132
    %p146 = scmp.eq.s32.totalorder %s26, 1
    %p147 = por %p145, %p146
    %p149 = scmp.ne.s32.totalorder %s132, %s148
    %p150 = scmp.eq.s32.totalorder %s26, 0
    %p151 = por %p149, %p150
    %s153 = sadd.s32 %s152, 1
    %p156 = scmp.eq.s32.totalorder %s20, 1
    %p157 = scmp.ne.s32.totalorder %s152, %s154
    %p158 = scmp.eq.s32.totalorder %s20, 0
    %p159 = por %p157, %p158
    %p160 = scmp.ne.s32.totalorder %s152, %s154
    %p161 = scmp.eq.s32.totalorder %s25, 1
    %p162 = por %p160, %p161
    %p163 = scmp.ne.s32.totalorder %s154, %s155
    %p164 = scmp.eq.s32.totalorder %s25, 0
    %p165 = por %p163, %p164
    %p166 = scmp.ne.s32.totalorder %s154, %s155
    %p167 = scmp.eq.s32.totalorder %s26, 1
    %p168 = por %p166, %p167
    %p170 = scmp.ne.s32.totalorder %s155, %s169
    %p171 = scmp.eq.s32.totalorder %s26, 0
    %p172 = por %p170, %p171
    %s174 = sadd.s32 %s173, 1
    %p177 = scmp.eq.s32.totalorder %s20, 1
    %p178 = scmp.ne.s32.totalorder %s173, %s175
    %p179 = scmp.eq.s32.totalorder %s20, 0
    %p180 = por %p178, %p179
    %p181 = scmp.ne.s32.totalorder %s173, %s175
    %p182 = scmp.eq.s32.totalorder %s25, 1
    %p183 = por %p181, %p182
    %p184 = scmp.ne.s32.totalorder %s175, %s176
    %p185 = scmp.eq.s32.totalorder %s25, 0
    %p186 = por %p184, %p185
    %p187 = scmp.ne.s32.totalorder %s175, %s176
    %p188 = scmp.eq.s32.totalorder %s26, 1
    %p189 = por %p187, %p188
    %p191 = scmp.ne.s32.totalorder %s176, %s190
    %p192 = scmp.eq.s32.totalorder %s26, 0
    %p193 = por %p191, %p192
    %s195 = sadd.s32 %s194, 1
    %p198 = scmp.eq.s32.totalorder %s20, 1
    %p199 = scmp.ne.s32.totalorder %s194, %s196
    %p200 = scmp.eq.s32.totalorder %s20, 0
    %p201 = por %p199, %p200
    %p202 = scmp.ne.s32.totalorder %s194, %s196
    %p203 = scmp.eq.s32.totalorder %s25, 1
    %p204 = por %p202, %p203
    %p205 = scmp.ne.s32.totalorder %s196, %s197
    %p206 = scmp.eq.s32.totalorder %s25, 0
    %p207 = por %p205, %p206
    %p208 = scmp.ne.s32.totalorder %s196, %s197
    %p209 = scmp.eq.s32.totalorder %s26, 1
    %p210 = por %p208, %p209
    %p212 = scmp.ne.s32.totalorder %s197, %s211
    %p213 = scmp.eq.s32.totalorder %s26, 0
    %p214 = por %p212, %p213
    %s216 = sadd.s32 %s215, 1
    %p219 = scmp.eq.s32.totalorder %s20, 1
    %p220 = scmp.ne.s32.totalorder %s215, %s217
    %p221 = scmp.eq.s32.totalorder %s20, 0
    %p222 = por %p220, %p221
    %p223 = scmp.ne.s32.totalorder %s215, %s217
    %p224 = scmp.eq.s32.totalorder %s25, 1
    %p225 = por %p223, %p224
    %p226 = scmp.ne.s32.totalorder %s217, %s218
    %p227 = scmp.eq.s32.totalorder %s25, 0
    %p228 = por %p226, %p227
    %p229 = scmp.ne.s32.totalorder %s217, %s218
    %p230 = scmp.eq.s32.totalorder %s26, 1
    %p231 = por %p229, %p230
    %p233 = scmp.ne.s32.totalorder %s218, %s232
    %p234 = scmp.eq.s32.totalorder %s26, 0
    %p235 = por %p233, %p234
    %s237 = sadd.s32 %s236, 1
    %p240 = scmp.eq.s32.totalorder %s20, 1
    %p241 = scmp.ne.s32.totalorder %s236, %s238
    %p242 = scmp.eq.s32.totalorder %s20, 0
    %p243 = por %p241, %p242
    %p244 = scmp.ne.s32.totalorder %s236, %s238
    %p245 = scmp.eq.s32.totalorder %s25, 1
    %p246 = por %p244, %p245
    %p247 = scmp.ne.s32.totalorder %s238, %s239
    %p248 = scmp.eq.s32.totalorder %s25, 0
    %p249 = por %p247, %p248
    %p250 = scmp.ne.s32.totalorder %s238, %s239
    %p251 = scmp.eq.s32.totalorder %s26, 1
    %p252 = por %p250, %p251
    %p254 = scmp.ne.s32.totalorder %s239, %s253
    %p255 = scmp.eq.s32.totalorder %s26, 0
    %p256 = por %p254, %p255
    %s258 = sadd.s32 %s257, 1
    %p261 = scmp.eq.s32.totalorder %s20, 1
    %p262 = scmp.ne.s32.totalorder %s257, %s259
    %p263 = scmp.eq.s32.totalorder %s20, 0
    %p264 = por %p262, %p263
    %p265 = scmp.ne.s32.totalorder %s257, %s259
    %p266 = scmp.eq.s32.totalorder %s25, 1
    %p267 = por %p265, %p266
    %p268 = scmp.ne.s32.totalorder %s259, %s260
    %p269 = scmp.eq.s32.totalorder %s25, 0
    %p270 = por %p268, %p269
    %p271 = scmp.ne.s32.totalorder %s259, %s260
    %p272 = scmp.eq.s32.totalorder %s26, 1
    %p273 = por %p271, %p272
    %p275 = scmp.ne.s32.totalorder %s260, %s274
    %p276 = scmp.eq.s32.totalorder %s26, 0
    %p277 = por %p275, %p276
    %s279 = sadd.s32 %s278, 1
    %p282 = scmp.eq.s32.totalorder %s20, 1
    %p283 = scmp.ne.s32.totalorder %s278, %s280
    %p284 = scmp.eq.s32.totalorder %s20, 0
    %p285 = por %p283, %p284
    %p286 = scmp.ne.s32.totalorder %s278, %s280
    %p287 = scmp.eq.s32.totalorder %s25, 1
    %p288 = por %p286, %p287
    %p289 = scmp.ne.s32.totalorder %s280, %s281
    %p290 = scmp.eq.s32.totalorder %s25, 0
    %p291 = por %p289, %p290
    %p292 = scmp.ne.s32.totalorder %s280, %s281
    %p293 = scmp.eq.s32.totalorder %s26, 1
    %p294 = por %p292, %p293
    %p296 = scmp.ne.s32.totalorder %s281, %s295
    %p297 = scmp.eq.s32.totalorder %s26, 0
    %p298 = por %p296, %p297
    %s300 = sadd.s32 %s299, 1
    %p303 = scmp.eq.s32.totalorder %s20, 1
    %p304 = scmp.ne.s32.totalorder %s299, %s301
    %p305 = scmp.eq.s32.totalorder %s20, 0
    %p306 = por %p304, %p305
    %p307 = scmp.ne.s32.totalorder %s299, %s301
    %p308 = scmp.eq.s32.totalorder %s25, 1
    %p309 = por %p307, %p308
    %p310 = scmp.ne.s32.totalorder %s301, %s302
    %p311 = scmp.eq.s32.totalorder %s25, 0
    %p312 = por %p310, %p311
    %p313 = scmp.ne.s32.totalorder %s301, %s302
    %p314 = scmp.eq.s32.totalorder %s26, 1
    %p315 = por %p313, %p314
    %p317 = scmp.ne.s32.totalorder %s302, %s316
    %p318 = scmp.eq.s32.totalorder %s26, 0
    %p319 = por %p317, %p318
    %s321 = sadd.s32 %s320, 1
    %p324 = scmp.eq.s32.totalorder %s20, 1
    %p325 = scmp.ne.s32.totalorder %s320, %s322
    %p326 = scmp.eq.s32.totalorder %s20, 0
    %p327 = por %p325, %p326
    %p328 = scmp.ne.s32.totalorder %s320, %s322
    %p329 = scmp.eq.s32.totalorder %s25, 1
    %p330 = por %p328, %p329
    %p331 = scmp.ne.s32.totalorder %s322, %s323
    %p332 = scmp.eq.s32.totalorder %s25, 0
    %p333 = por %p331, %p332
    %p334 = scmp.ne.s32.totalorder %s322, %s323
    %p335 = scmp.eq.s32.totalorder %s26, 1
    %p336 = por %p334, %p335
    %p338 = scmp.ne.s32.totalorder %s323, %s337
    %p339 = scmp.eq.s32.totalorder %s26, 0
    %p340 = por %p338, %p339
    %s342 = sadd.s32 %s341, 1
    %p345 = scmp.eq.s32.totalorder %s20, 1
    %p346 = scmp.ne.s32.totalorder %s341, %s343
    %p347 = scmp.eq.s32.totalorder %s20, 0
    %p348 = por %p346, %p347
    %p349 = scmp.ne.s32.totalorder %s341, %s343
    %p350 = scmp.eq.s32.totalorder %s25, 1
    %p351 = por %p349, %p350
    %p352 = scmp.ne.s32.totalorder %s343, %s344
    %p353 = scmp.eq.s32.totalorder %s25, 0
    %p354 = por %p352, %p353
    %p355 = scmp.ne.s32.totalorder %s343, %s344
    %p356 = scmp.eq.s32.totalorder %s26, 1
    %p357 = por %p355, %p356
    %p359 = scmp.ne.s32.totalorder %s344, %s358
    %p360 = scmp.eq.s32.totalorder %s26, 0
    %p361 = por %p359, %p360
    %s362 = ssub.s32 %s27, %s39
    %s363 = ssub.s32 %s28, %s35
    %s364 = sor.u32 %s362, %s363
    %p365 = scmp.eq.s32.totalorder %s364, 0
    %s367 = sadd.s32 %s366, 1
    %s368 = scalar_select %p365, %s366, %s367
    %p371 = pneg %p365
    %p372 = scmp.eq.s32.totalorder %s20, 1
    %p373 = por %p371, %p372
    %p374 = scmp.ne.s32.totalorder %s366, %s369
    %p375 = scmp.eq.s32.totalorder %s20, 0
    %p376 = por %p374, %p375
    %p377 = scmp.ne.s32.totalorder %s366, %s369
    %p378 = scmp.eq.s32.totalorder %s25, 1
    %p379 = por %p377, %p378
    %p380 = scmp.ne.s32.totalorder %s369, %s370
    %p381 = scmp.eq.s32.totalorder %s25, 0
    %p382 = por %p380, %p381
    %p383 = scmp.ne.s32.totalorder %s369, %s370
    %p384 = scmp.eq.s32.totalorder %s26, 1
    %p385 = por %p383, %p384
    %p387 = scmp.ne.s32.totalorder %s370, %s386
    %p388 = scmp.eq.s32.totalorder %s26, 0
    %p389 = por %p387, %p388
    %p390 = scmp.le.s32.totalorder 1, %s20
    %p391 = scmp.lt.s32.totalorder %s20, 3
    %p392 = pnand %p390, %p391
    %p393 = pneg %p392
    // Predicated region
    $region9: #{skip_transformer_forward.3} parent=5 // pred_check
      _
    $region10: #{skip_transformer_forward.3} parent=5 // pred_check_branch
      %395 = sbr.rel (%p392) target = $region12
    $region11: #{skip_transformer_forward.3} parent=5 // pred_region
      %s396 = ssub.s32 %s20, 1
      // Predicated region
      $region13: #{skip_transformer_forward.3} parent=11 // pred_check
        %p397 = pneg %p165
      $region14: #{skip_transformer_forward.3} parent=11 // pred_check_branch
        %399 = sbr.rel (%p397) target = $region16
      $region15: #{skip_transformer_forward.3} parent=11 // pred_region
        _
      $region16: #{skip_transformer_forward.3} parent=11 // pred_fallthru
        _
      // Predicated region
      $region17: #{skip_transformer_forward.3} parent=11 // pred_check
        %p400 = pneg %p186
      $region18: #{skip_transformer_forward.3} parent=11 // pred_check_branch
        %402 = sbr.rel (%p400) target = $region20
      $region19: #{skip_transformer_forward.3} parent=11 // pred_region
        _
      $region20: #{skip_transformer_forward.3} parent=11 // pred_fallthru
        _
      // Predicated region
      $region21: #{skip_transformer_forward.3} parent=11 // pred_check
        %p403 = pneg %p207
      $region22: #{skip_transformer_forward.3} parent=11 // pred_check_branch
        %405 = sbr.rel (%p403) target = $region24
      $region23: #{skip_transformer_forward.3} parent=11 // pred_region
        _
      $region24: #{skip_transformer_forward.3} parent=11 // pred_fallthru
        _
      // Predicated region
      $region25: #{skip_transformer_forward.3} parent=11 // pred_check
        %p406 = pneg %p228
      $region26: #{skip_transformer_forward.3} parent=11 // pred_check_branch
        %408 = sbr.rel (%p406) target = $region28
      $region27: #{skip_transformer_forward.3} parent=11 // pred_region
        _
      $region28: #{skip_transformer_forward.3} parent=11 // pred_fallthru
        _
      // Predicated region
      $region29: #{skip_transformer_forward.3} parent=11 // pred_check
        %p409 = pneg %p249
      $region30: #{skip_transformer_forward.3} parent=11 // pred_check_branch
        %411 = sbr.rel (%p409) target = $region32
      $region31: #{skip_transformer_forward.3} parent=11 // pred_region
        _
      $region32: #{skip_transformer_forward.3} parent=11 // pred_fallthru
        _
      // Predicated region
      $region33: #{skip_transformer_forward.3} parent=11 // pred_check
        %p412 = pneg %p270
      $region34: #{skip_transformer_forward.3} parent=11 // pred_check_branch
        %414 = sbr.rel (%p412) target = $region36
      $region35: #{skip_transformer_forward.3} parent=11 // pred_region
        _
      $region36: #{skip_transformer_forward.3} parent=11 // pred_fallthru
        _
      // Predicated region
      $region37: #{skip_transformer_forward.3} parent=11 // pred_check
        %p415 = pneg %p291
      $region38: #{skip_transformer_forward.3} parent=11 // pred_check_branch
        %417 = sbr.rel (%p415) target = $region40
      $region39: #{skip_transformer_forward.3} parent=11 // pred_region
        _
      $region40: #{skip_transformer_forward.3} parent=11 // pred_fallthru
        _
      // Predicated region
      $region41: #{skip_transformer_forward.3} parent=11 // pred_check
        %p418 = pneg %p312
      $region42: #{skip_transformer_forward.3} parent=11 // pred_check_branch
        %420 = sbr.rel (%p418) target = $region44
      $region43: #{skip_transformer_forward.3} parent=11 // pred_region
        _
      $region44: #{skip_transformer_forward.3} parent=11 // pred_fallthru
        _
      // Predicated region
      $region45: #{skip_transformer_forward.3} parent=11 // pred_check
        %p421 = pneg %p333
      $region46: #{skip_transformer_forward.3} parent=11 // pred_check_branch
        %423 = sbr.rel (%p421) target = $region48
      $region47: #{skip_transformer_forward.3} parent=11 // pred_region
        _
      $region48: #{skip_transformer_forward.3} parent=11 // pred_fallthru
        _
      // Predicated region
      $region49: #{skip_transformer_forward.3} parent=11 // pred_check
        %p424 = pneg %p354
      $region50: #{skip_transformer_forward.3} parent=11 // pred_check_branch
        %426 = sbr.rel (%p424) target = $region52
      $region51: #{skip_transformer_forward.3} parent=11 // pred_region
        _
      $region52: #{skip_transformer_forward.3} parent=11 // pred_fallthru
        _
    $region12: #{skip_transformer_forward.3} parent=5 // pred_fallthru
      _
    %p427 = scmp.lt.s32.totalorder %s20, 2
    // Predicated region
    $region53: #{skip_transformer_forward.3} parent=5 // pred_check
      %p428 = pneg %p427
    $region54: #{skip_transformer_forward.3} parent=5 // pred_check_branch
      %430 = sbr.rel (%p428) target = $region56
    $region55: #{skip_transformer_forward.3} parent=5 // pred_region
      // Predicated region
      $region57: #{skip_transformer_forward.3} parent=55 // pred_check
        %p431 = pneg %p54
      $region58: #{skip_transformer_forward.3} parent=55 // pred_check_branch
        %433 = sbr.rel (%p431) target = $region60
      $region59: #{skip_transformer_forward.3} parent=55 // pred_region
        %s434 = smul.u32 2, %s28
        %p435 = scmp.lt.s32.totalorder %s27, 1
        %s436 = scalar_select %p435, %s27, 1
        %p437 = scmp.lt.s32.totalorder %s434, 1
        %s438 = scalar_select %p437, %s434, 1
        %s439 = smul.addr %s436, 2
        %s440 = sadd.s32 %s438, %s439
        %s441 = smul.addr %s440, 8
        %s442 = scalar_lea.vmem %s0, %s441
        %s443 = smul.u32 2, %s28
      $region60: #{skip_transformer_forward.3} parent=55 // pred_fallthru
        _
      // Predicated region
      $region61: #{skip_transformer_forward.3} parent=55 // pred_check
        %p444 = pneg %p82
      $region62: #{skip_transformer_forward.3} parent=55 // pred_check_branch
        %446 = sbr.rel (%p444) target = $region64
      $region63: #{skip_transformer_forward.3} parent=55 // pred_region
        %s447 = smul.u32 8, %s28
        %p448 = scmp.lt.s32.totalorder %s27, 1
        %s449 = scalar_select %p448, %s27, 1
        %p450 = scmp.lt.s32.totalorder %s447, 7
        %s451 = scalar_select %p450, %s447, 7
        %s452 = smul.addr %s449, 8
        %s453 = sadd.s32 %s451, %s452
        %s454 = smul.addr %s453, 4
        %s455 = scalar_lea.vmem %s1, %s454
        %s456 = smul.u32 8, %s28
      $region64: #{skip_transformer_forward.3} parent=55 // pred_fallthru
        _
      // Predicated region
      $region65: #{skip_transformer_forward.3} parent=55 // pred_check
        %p457 = pneg %p110
      $region66: #{skip_transformer_forward.3} parent=55 // pred_check_branch
        %459 = sbr.rel (%p457) target = $region68
      $region67: #{skip_transformer_forward.3} parent=55 // pred_region
        %s460 = smul.u32 8, %s28
        %p461 = scmp.lt.s32.totalorder %s27, 1
        %s462 = scalar_select %p461, %s27, 1
        %p463 = scmp.lt.s32.totalorder %s460, 7
        %s464 = scalar_select %p463, %s460, 7
        %s465 = smul.addr %s462, 8
        %s466 = sadd.s32 %s464, %s465
        %s467 = smul.addr %s466, 8
        %s468 = scalar_lea.vmem %s2, %s467
        %s469 = smul.u32 8, %s28
      $region68: #{skip_transformer_forward.3} parent=55 // pred_fallthru
        _
      // Predicated region
      $region69: #{skip_transformer_forward.3} parent=55 // pred_check
        %p470 = pneg %p138
      $region70: #{skip_transformer_forward.3} parent=55 // pred_check_branch
        %472 = sbr.rel (%p470) target = $region72
      $region71: #{skip_transformer_forward.3} parent=55 // pred_region
        %s473 = smul.u32 2, %s28
        %p474 = scmp.lt.s32.totalorder %s27, 1
        %s475 = scalar_select %p474, %s27, 1
        %p476 = scmp.lt.s32.totalorder %s473, 1
        %s477 = scalar_select %p476, %s473, 1
        %s478 = smul.addr %s475, 2
        %s479 = sadd.s32 %s477, %s478
        %s480 = smul.addr %s479, 8
        %s481 = scalar_lea.vmem %s3, %s480
        %s482 = smul.u32 2, %s28
      $region72: #{skip_transformer_forward.3} parent=55 // pred_fallthru
        _
    $region56: #{skip_transformer_forward.3} parent=5 // pred_fallthru
      _
    %p483 = scmp.le.s32.totalorder 1, %s20
    %p484 = scmp.lt.s32.totalorder %s20, 3
    %p485 = pnand %p483, %p484
    %p486 = pneg %p485
    // Predicated region
    $region73: #{skip_transformer_forward.3} parent=5 // pred_check
      _
    $region74: #{skip_transformer_forward.3} parent=5 // pred_check_branch
      %488 = sbr.rel (%p485) target = $region76
    $region75: #{skip_transformer_forward.3} parent=5 // pred_region
      %s489 = ssub.s32 %s20, 1
      %s490 = smul.u32 2, %s30
      %p491 = scmp.lt.s32.totalorder %s29, 1
      %s492 = scalar_select %p491, %s29, 1
      %p493 = scmp.lt.s32.totalorder %s490, 1
      %s494 = scalar_select %p493, %s490, 1
      %s495 = smul.addr %s492, 2
      %s496 = sadd.s32 %s494, %s495
      %s497 = smul.addr %s496, 8
      %s498 = scalar_lea.vmem %s0, %s497
      %p499 = pneg %p60
      %p500 = pneg %p57
      %s501 = smul.u32 8, %s30
      %p502 = scmp.lt.s32.totalorder %s29, 1
      %s503 = scalar_select %p502, %s29, 1
      %p504 = scmp.lt.s32.totalorder %s501, 7
      %s505 = scalar_select %p504, %s501, 7
      %s506 = smul.addr %s503, 8
      %s507 = sadd.s32 %s505, %s506
      %s508 = smul.addr %s507, 4
      %s509 = scalar_lea.vmem %s1, %s508
      %p510 = pneg %p88
      %p511 = pneg %p85
      %s512 = smul.u32 8, %s30
      %p513 = scmp.lt.s32.totalorder %s29, 1
      %s514 = scalar_select %p513, %s29, 1
      %p515 = scmp.lt.s32.totalorder %s512, 7
      %s516 = scalar_select %p515, %s512, 7
      %s517 = smul.addr %s514, 8
      %s518 = sadd.s32 %s516, %s517
      %s519 = smul.addr %s518, 8
      %s520 = scalar_lea.vmem %s2, %s519
      %p521 = pneg %p116
      %p522 = pneg %p113
      %s523 = smul.u32 2, %s30
      %p524 = scmp.lt.s32.totalorder %s29, 1
      %s525 = scalar_select %p524, %s29, 1
      %p526 = scmp.lt.s32.totalorder %s523, 1
      %s527 = scalar_select %p526, %s523, 1
      %s528 = smul.addr %s525, 2
      %s529 = sadd.s32 %s527, %s528
      %s530 = smul.addr %s529, 8
      %s531 = scalar_lea.vmem %s3, %s530
      %p532 = pneg %p144
      %p533 = pneg %p141
      %p534 = pneg %p165
      %p535 = pneg %p162
      %p536 = pneg %p186
      %p537 = pneg %p183
      %p538 = pneg %p207
      %p539 = pneg %p204
      %p540 = pneg %p228
      %p541 = pneg %p225
      %p542 = pneg %p249
      %p543 = pneg %p246
      %p544 = pneg %p270
      %p545 = pneg %p267
      %p546 = pneg %p291
      %p547 = pneg %p288
      %p548 = pneg %p312
      %p549 = pneg %p309
      %p550 = pneg %p333
      %p551 = pneg %p330
      %p552 = pneg %p354
      %p553 = pneg %p351
      %p554 = pneg %p382
      %p555 = pneg %p379
      %s556 = smul.u32 2, %s30
      %p557 = scmp.lt.s32.totalorder %s29, 1
      %s558 = scalar_select %p557, %s29, 1
      %p559 = scmp.lt.s32.totalorder %s556, 1
      %s560 = scalar_select %p559, %s556, 1
      %s561 = smul.addr %s558, 2
      %s562 = sadd.s32 %s560, %s561
      %s563 = smul.addr %s562, 8
      %s564 = scalar_lea.vmem %s14, %s563
      %s565 = smul.u32 2, %s30
      %p566 = scmp.lt.s32.totalorder %s29, 1
      %s567 = scalar_select %p566, %s29, 1
      %p568 = scmp.lt.s32.totalorder %s565, 1
      %s569 = scalar_select %p568, %s565, 1
      %s570 = smul.addr %s567, 2
      %s571 = sadd.s32 %s569, %s570
      %s572 = smul.addr %s571, 8
      %s573 = scalar_lea.vmem %s0, %s572
      %s574 = smul.u32 2, %s30
      %s575 = smul.u32 8, %s30
      %p576 = scmp.lt.s32.totalorder %s29, 1
      %s577 = scalar_select %p576, %s29, 1
      %p578 = scmp.lt.s32.totalorder %s575, 7
      %s579 = scalar_select %p578, %s575, 7
      %s580 = smul.addr %s577, 8
      %s581 = sadd.s32 %s579, %s580
      %s582 = smul.addr %s581, 4
      %s583 = scalar_lea.vmem %s1, %s582
      %s584 = smul.u32 8, %s30
      %s585 = smul.u32 8, %s30
      %p586 = scmp.lt.s32.totalorder %s29, 1
      %s587 = scalar_select %p586, %s29, 1
      %p588 = scmp.lt.s32.totalorder %s585, 7
      %s589 = scalar_select %p588, %s585, 7
      %s590 = smul.addr %s587, 8
      %s591 = sadd.s32 %s589, %s590
      %s592 = smul.addr %s591, 8
      %s593 = scalar_lea.vmem %s2, %s592
      %s594 = smul.u32 8, %s30
      %s595 = smul.u32 2, %s30
      %p596 = scmp.lt.s32.totalorder %s29, 1
      %s597 = scalar_select %p596, %s29, 1
      %p598 = scmp.lt.s32.totalorder %s595, 1
      %s599 = scalar_select %p598, %s595, 1
      %s600 = smul.addr %s597, 2
      %s601 = sadd.s32 %s599, %s600
      %s602 = smul.addr %s601, 8
      %s603 = scalar_lea.vmem %s3, %s602
      %s604 = smul.u32 2, %s30
      %s605 = smul.u32 2, %s30
      %p606 = scmp.lt.s32.totalorder %s29, 1
      %s607 = scalar_select %p606, %s29, 1
      %p608 = scmp.lt.s32.totalorder %s605, 1
      %s609 = scalar_select %p608, %s605, 1
      %s610 = smul.addr %s607, 2
      %s611 = sadd.s32 %s609, %s610
      %s612 = smul.addr %s611, 8
      %s613 = scalar_lea.vmem %s14, %s612
      %s614 = smul.u32 2, %s30
      %v616 = vld [vmem:[%s573] sm:$0xff]
      %v617 = vld [vmem:[%s573 + $0x8] sm:$0xff]
      %v618 = vld [vmem:[%s583] sm:$0xf]
      %v619 = vld [vmem:[%s583 + $0x4] sm:$0xf]
      %v620 = vld [vmem:[%s583 + $0x8] sm:$0xf]
      %v621 = vld [vmem:[%s583 + $0xc] sm:$0xf]
      %v622 = vld [vmem:[%s583 + $0x10] sm:$0xf]
      %v623 = vld [vmem:[%s583 + $0x14] sm:$0xf]
      %v624 = vld [vmem:[%s583 + $0x18] sm:$0xf]
      %v625 = vld [vmem:[%s583 + $0x1c] sm:$0xf]
      %v626 = vld [vmem:[%s593] sm:$0xff]
      %v627 = vld [vmem:[%s593 + $0x8] sm:$0xff]
      %v628 = vld [vmem:[%s593 + $0x10] sm:$0xff]
      %v629 = vld [vmem:[%s593 + $0x18] sm:$0xff]
      %v630 = vld [vmem:[%s593 + $0x20] sm:$0xff]
      %v631 = vld [vmem:[%s593 + $0x28] sm:$0xff]
      %v632 = vld [vmem:[%s593 + $0x30] sm:$0xff]
      %v633 = vld [vmem:[%s593 + $0x38] sm:$0xff]
      %v634 = vld [vmem:[%s4] sm:$0x7]
      %636 = vset.pattern.permute.xlu0 0
      %637 = vperm.xlu0 %636, %v626
      %v638 = vpop.permute.xlu0 %637
      %641 = vset.pattern.permute.xlu0 0
      %642 = vperm.xlu0 %641, %v627
      %v643 = vpop.permute.xlu0 %642
      %646 = vset.pattern.permute.xlu0 0
      %647 = vperm.xlu0 %646, %v628
      %v648 = vpop.permute.xlu0 %647
      %651 = vset.pattern.permute.xlu0 0
      %652 = vperm.xlu0 %651, %v629
      %v653 = vpop.permute.xlu0 %652
      %656 = vset.pattern.permute.xlu0 0
      %657 = vperm.xlu0 %656, %v630
      %v658 = vpop.permute.xlu0 %657
      %661 = vset.pattern.permute.xlu0 0
      %662 = vperm.xlu0 %661, %v631
      %v663 = vpop.permute.xlu0 %662
      %666 = vset.pattern.permute.xlu0 0
      %667 = vperm.xlu0 %666, %v632
      %v668 = vpop.permute.xlu0 %667
      %671 = vset.pattern.permute.xlu0 0
      %672 = vperm.xlu0 %671, %v633
      %v673 = vpop.permute.xlu0 %672
      %v675 = vlaneseq
      %v676 = vshrl.u32 %v675, 7
      %v677 = vsub.s32 0, %v676
      %v678 = vrot.slane %v634, %v677
      %v679 = vmul.f32 %v638, %v678
      %v680 = vmul.f32 %v643, %v678
      %v681 = vmul.f32 %v648, %v678
      %v682 = vmul.f32 %v653, %v678
      %v683 = vmul.f32 %v658, %v678
      %v684 = vmul.f32 %v663, %v678
      %v685 = vmul.f32 %v668, %v678
      %v686 = vmul.f32 %v673, %v678
      %687 = vset.pattern.permute.xlu0 1
      %688 = vperm.xlu0 %687, %v626
      %v689 = vpop.permute.xlu0 %688
      %691 = vset.pattern.permute.xlu0 1
      %692 = vperm.xlu0 %691, %v627
      %v693 = vpop.permute.xlu0 %692
      %695 = vset.pattern.permute.xlu0 1
      %696 = vperm.xlu0 %695, %v628
      %v697 = vpop.permute.xlu0 %696
      %699 = vset.pattern.permute.xlu0 1
      %700 = vperm.xlu0 %699, %v629
      %v701 = vpop.permute.xlu0 %700
      %703 = vset.pattern.permute.xlu0 1
      %704 = vperm.xlu0 %703, %v630
      %v705 = vpop.permute.xlu0 %704
      %707 = vset.pattern.permute.xlu0 1
      %708 = vperm.xlu0 %707, %v631
      %v709 = vpop.permute.xlu0 %708
      %711 = vset.pattern.permute.xlu0 1
      %712 = vperm.xlu0 %711, %v632
      %v713 = vpop.permute.xlu0 %712
      %715 = vset.pattern.permute.xlu0 1
      %716 = vperm.xlu0 %715, %v633
      %v717 = vpop.permute.xlu0 %716
      %v719 = vlaneseq
      %v720 = vshrl.u32 %v719, 7
      %v721 = vsub.s32 1, %v720
      %v722 = vrot.slane %v634, %v721
      %v723 = vmul.f32 %v689, %v722
      %v724 = vmul.f32 %v693, %v722
      %v725 = vmul.f32 %v697, %v722
      %v726 = vmul.f32 %v701, %v722
      %v727 = vmul.f32 %v705, %v722
      %v728 = vmul.f32 %v709, %v722
      %v729 = vmul.f32 %v713, %v722
      %v730 = vmul.f32 %v717, %v722
      %v731 = vadd.f32 %v679, %v723
      %v732 = vadd.f32 %v680, %v724
      %v733 = vadd.f32 %v681, %v725
      %v734 = vadd.f32 %v682, %v726
      %v735 = vadd.f32 %v683, %v727
      %v736 = vadd.f32 %v684, %v728
      %v737 = vadd.f32 %v685, %v729
      %v738 = vadd.f32 %v686, %v730
      %739 = vset.pattern.permute.xlu0 2
      %740 = vperm.xlu0 %739, %v626
      %v741 = vpop.permute.xlu0 %740
      %743 = vset.pattern.permute.xlu0 2
      %744 = vperm.xlu0 %743, %v627
      %v745 = vpop.permute.xlu0 %744
      %747 = vset.pattern.permute.xlu0 2
      %748 = vperm.xlu0 %747, %v628
      %v749 = vpop.permute.xlu0 %748
      %751 = vset.pattern.permute.xlu0 2
      %752 = vperm.xlu0 %751, %v629
      %v753 = vpop.permute.xlu0 %752
      %755 = vset.pattern.permute.xlu0 2
      %756 = vperm.xlu0 %755, %v630
      %v757 = vpop.permute.xlu0 %756
      %759 = vset.pattern.permute.xlu0 2
      %760 = vperm.xlu0 %759, %v631
      %v761 = vpop.permute.xlu0 %760
      %763 = vset.pattern.permute.xlu0 2
      %764 = vperm.xlu0 %763, %v632
      %v765 = vpop.permute.xlu0 %764
      %767 = vset.pattern.permute.xlu0 2
      %768 = vperm.xlu0 %767, %v633
      %v769 = vpop.permute.xlu0 %768
      %v771 = vlaneseq
      %v772 = vshrl.u32 %v771, 7
      %v773 = vsub.s32 2, %v772
      %v774 = vrot.slane %v634, %v773
      %v775 = vmul.f32 %v741, %v774
      %v776 = vmul.f32 %v745, %v774
      %v777 = vmul.f32 %v749, %v774
      %v778 = vmul.f32 %v753, %v774
      %v779 = vmul.f32 %v757, %v774
      %v780 = vmul.f32 %v761, %v774
      %v781 = vmul.f32 %v765, %v774
      %v782 = vmul.f32 %v769, %v774
      %v783 = vadd.f32 %v731, %v775
      %v784 = vadd.f32 %v732, %v776
      %v785 = vadd.f32 %v733, %v777
      %v786 = vadd.f32 %v734, %v778
      %v787 = vadd.f32 %v735, %v779
      %v788 = vadd.f32 %v736, %v780
      %v789 = vadd.f32 %v737, %v781
      %v790 = vadd.f32 %v738, %v782
      %v791 = vld [vmem:[%s5] sm:$0x1]
      %v793 = vlaneseq
      %v794 = vshrl.u32 %v793, 7
      %v795 = vsub.s32 0, %v794
      %v796 = vrot.slane %v791, %v795
      %v798 = vadd.f32 %v783, %v796
      %v799 = vadd.f32 %v784, %v796
      %v800 = vadd.f32 %v785, %v796
      %v801 = vadd.f32 %v786, %v796
      %v802 = vadd.f32 %v787, %v796
      %v803 = vadd.f32 %v788, %v796
      %v804 = vadd.f32 %v789, %v796
      %v805 = vadd.f32 %v790, %v796
      %v806 = vmax.f32 %v798, 0.0
      %v807 = vmax.f32 %v799, 0.0
      %v808 = vmax.f32 %v800, 0.0
      %v809 = vmax.f32 %v801, 0.0
      %v810 = vmax.f32 %v802, 0.0
      %v811 = vmax.f32 %v803, 0.0
      %v812 = vmax.f32 %v804, 0.0
      %v813 = vmax.f32 %v805, 0.0
      %v814 = vpack.c.bf16 %v807, %v806
      %v815 = vpack.c.bf16 %v809, %v808
      %v816 = vpack.c.bf16 %v811, %v810
      %v817 = vpack.c.bf16 %v813, %v812
      %v818 = vld [vmem:[%s6] sm:$0xf]
      %v819 = vld [vmem:[%s6 + $0x4] sm:$0xf]
      %v820 = vld [vmem:[%s7] sm:$0x1]
      %v822 = vlaneseq
      %v823 = vshrl.u32 %v822, 7
      %v824 = vsub.s32 0, %v823
      %v825 = vrot.slane %v820, %v824
      %v829 = vunpack.c.l.b16 %v818
      %v830 = vunpack.c.l.b16 %v819
      %v831 = vpack.c.b16 %v830, %v829
      %vm833 = vcmask 130048
      %v835 = vsel %vm833, %v814, 0
      %v838 = vsel %vm833, %v815, 0
      %v841 = vsel %vm833, %v816, 0
      %v844 = vsel %vm833, %v817, 0
      %846 = vmatprep.subr.bf16.mxu0 0
      %847 = vmatpush1.bf16.msra.mxu0 0
      %848 = vmatprep.subr.bf16.mxu0 0
      %849 = vmatpush1.bf16.msra.mxu0 0
      %850 = vmatprep.subr.bf16.mxu0 0
      %851 = vmatpush1.bf16.msra.mxu0 0
      %852 = vmatprep.subr.bf16.mxu0 0
      %853 = vmatpush1.bf16.msra.mxu0 0
      %854 = vmatprep.subr.bf16.mxu0 0
      %855 = vmatpush1.bf16.msra.mxu0 0
      %856 = vmatprep.subr.bf16.mxu0 0
      %857 = vmatpush1.bf16.msra.mxu0 0
      %858 = vmatprep.subr.bf16.mxu0 0
      %859 = vmatpush1.bf16.msra.mxu0 0
      %860 = vmatprep.subr.bf16.mxu0 0
      %861 = vmatpush1.bf16.msra.mxu0 %v831
      %862 = vmatprep.subr.bf16.mxu0 0
      %863 = vmatpush2.bf16.msra.mxu0 0
      %864 = vmatprep.subr.bf16.mxu0 0
      %865 = vmatpush2.bf16.msra.mxu0 0
      %866 = vmatprep.subr.bf16.mxu0 0
      %867 = vmatpush2.bf16.msra.mxu0 0
      %868 = vmatprep.subr.bf16.mxu0 0
      %869 = vmatpush2.bf16.msra.mxu0 0
      %870 = vmatprep.subr.bf16.mxu0 0
      %871 = vmatpush2.bf16.msra.mxu0 0
      %872 = vmatprep.subr.bf16.mxu0 0
      %873 = vmatpush2.bf16.msra.mxu0 0
      %874 = vmatprep.subr.bf16.mxu0 0
      %875 = vmatpush2.bf16.msra.mxu0 0
      %876 = vmatprep.subr.bf16.mxu0 0
      %877 = vmatpush2.bf16.msra.mxu0 0
      %878 = vmatprep.mubr.bf16.mxu0 0
      %879 = vmatmul.mubr.bf16.gmra.mxu0 %v835
      %v880 = vpop.f32.mrf.mxu0
      %v881 = vadd.f32 %v825, %v880
      %v882 = vpop.f32.mrf.mxu0
      %v883 = vpop.f32.mrf.mxu0
      %v884 = vadd.f32 %v825, %v883
      %v885 = vpop.f32.mrf.mxu0
      %886 = vmatprep.mubr.bf16.mxu0 0
      %887 = vmatmul.mubr.bf16.gmra.mxu0 %v838
      %v888 = vpop.f32.mrf.mxu0
      %v889 = vadd.f32 %v825, %v888
      %v890 = vpop.f32.mrf.mxu0
      %v891 = vpop.f32.mrf.mxu0
      %v892 = vadd.f32 %v825, %v891
      %v893 = vpop.f32.mrf.mxu0
      %894 = vmatprep.mubr.bf16.mxu0 0
      %895 = vmatmul.mubr.bf16.gmra.mxu0 %v841
      %v896 = vpop.f32.mrf.mxu0
      %v897 = vadd.f32 %v825, %v896
      %v898 = vpop.f32.mrf.mxu0
      %v899 = vpop.f32.mrf.mxu0
      %v900 = vadd.f32 %v825, %v899
      %v901 = vpop.f32.mrf.mxu0
      %902 = vmatprep.mubr.bf16.mxu0 0
      %903 = vmatmul.mubr.bf16.gmra.mxu0 %v844
      %v904 = vpop.f32.mrf.mxu0
      %v905 = vadd.f32 %v825, %v904
      %v906 = vpop.f32.mrf.mxu0
      %v907 = vpop.f32.mrf.mxu0
      %v908 = vadd.f32 %v825, %v907
      %v909 = vpop.f32.mrf.mxu0
      %910 = vdwg.mxu0
      %v913 = vcombine.high %v616, %v616
      %v915 = vunpack.c.l.s4 1966171168
      %v916 = vunpack.c.0.s8 %v915
      %v917 = vlaneseq
      %v918 = vshrl.u32 %v917, 7
      %v919 = vsub.s32 %v916, %v918
      %v920 = vrot.slane %v616, %v919
      %v922 = vunpack.c.l.s4 1966171168
      %v923 = vunpack.c.0.s8 %v922
      %v924 = vlaneseq
      %v925 = vshrl.u32 %v924, 7
      %v926 = vsub.s32 %v923, %v925
      %v927 = vrot.slane %v913, %v926
      %v928 = vcombine.high %v920, %v920
      %v929 = vcombine.high %v927, %v927
      %v931 = vunpack.c.l.s4 1966171168
      %v932 = vunpack.c.0.s8 %v931
      %v933 = vlaneseq
      %v934 = vshrl.u32 %v933, 7
      %v935 = vsub.s32 %v932, %v934
      %v936 = vrot.slane %v920, %v935
      %v938 = vunpack.c.l.s4 1966171168
      %v939 = vunpack.c.0.s8 %v938
      %v940 = vlaneseq
      %v941 = vshrl.u32 %v940, 7
      %v942 = vsub.s32 %v939, %v941
      %v943 = vrot.slane %v927, %v942
      %v945 = vunpack.c.l.s4 1966171168
      %v946 = vunpack.c.0.s8 %v945
      %v947 = vlaneseq
      %v948 = vshrl.u32 %v947, 7
      %v949 = vsub.s32 %v946, %v948
      %v950 = vrot.slane %v928, %v949
      %v952 = vunpack.c.l.s4 1966171168
      %v953 = vunpack.c.0.s8 %v952
      %v954 = vlaneseq
      %v955 = vshrl.u32 %v954, 7
      %v956 = vsub.s32 %v953, %v955
      %v957 = vrot.slane %v929, %v956
      %v958 = vcombine.high %v936, %v936
      %v959 = vcombine.high %v943, %v943
      %v960 = vcombine.high %v950, %v950
      %v961 = vcombine.high %v957, %v957
      %v962 = vcombine.high %v617, %v617
      %v964 = vunpack.c.l.s4 1966171168
      %v965 = vunpack.c.0.s8 %v964
      %v966 = vlaneseq
      %v967 = vshrl.u32 %v966, 7
      %v968 = vsub.s32 %v965, %v967
      %v969 = vrot.slane %v617, %v968
      %v971 = vunpack.c.l.s4 1966171168
      %v972 = vunpack.c.0.s8 %v971
      %v973 = vlaneseq
      %v974 = vshrl.u32 %v973, 7
      %v975 = vsub.s32 %v972, %v974
      %v976 = vrot.slane %v962, %v975
      %v977 = vcombine.high %v969, %v969
      %v978 = vcombine.high %v976, %v976
      %v980 = vunpack.c.l.s4 1966171168
      %v981 = vunpack.c.0.s8 %v980
      %v982 = vlaneseq
      %v983 = vshrl.u32 %v982, 7
      %v984 = vsub.s32 %v981, %v983
      %v985 = vrot.slane %v969, %v984
      %v987 = vunpack.c.l.s4 1966171168
      %v988 = vunpack.c.0.s8 %v987
      %v989 = vlaneseq
      %v990 = vshrl.u32 %v989, 7
      %v991 = vsub.s32 %v988, %v990
      %v992 = vrot.slane %v976, %v991
      %v994 = vunpack.c.l.s4 1966171168
      %v995 = vunpack.c.0.s8 %v994
      %v996 = vlaneseq
      %v997 = vshrl.u32 %v996, 7
      %v998 = vsub.s32 %v995, %v997
      %v999 = vrot.slane %v977, %v998
      %v1001 = vunpack.c.l.s4 1966171168
      %v1002 = vunpack.c.0.s8 %v1001
      %v1003 = vlaneseq
      %v1004 = vshrl.u32 %v1003, 7
      %v1005 = vsub.s32 %v1002, %v1004
      %v1006 = vrot.slane %v978, %v1005
      %v1007 = vcombine.high %v985, %v985
      %v1008 = vcombine.high %v992, %v992
      %v1009 = vcombine.high %v999, %v999
      %v1010 = vcombine.high %v1006, %v1006
      %v1011 = vlaneseq
      %v1012 = vshrl.u32 %v1011, 7
      %v1013 = vsub.s32 0, %v1012
      %v1014 = vrot.slane %v936, %v1013
      %v1015 = vlaneseq
      %v1016 = vshrl.u32 %v1015, 7
      %v1017 = vsub.s32 0, %v1016
      %v1018 = vrot.slane %v950, %v1017
      %v1019 = vlaneseq
      %v1020 = vshrl.u32 %v1019, 7
      %v1021 = vsub.s32 0, %v1020
      %v1022 = vrot.slane %v958, %v1021
      %v1023 = vlaneseq
      %v1024 = vshrl.u32 %v1023, 7
      %v1025 = vsub.s32 0, %v1024
      %v1026 = vrot.slane %v960, %v1025
      %v1027 = vlaneseq
      %v1028 = vshrl.u32 %v1027, 7
      %v1029 = vsub.s32 0, %v1028
      %v1030 = vrot.slane %v943, %v1029
      %v1031 = vlaneseq
      %v1032 = vshrl.u32 %v1031, 7
      %v1033 = vsub.s32 0, %v1032
      %v1034 = vrot.slane %v957, %v1033
      %v1035 = vlaneseq
      %v1036 = vshrl.u32 %v1035, 7
      %v1037 = vsub.s32 0, %v1036
      %v1038 = vrot.slane %v959, %v1037
      %v1039 = vlaneseq
      %v1040 = vshrl.u32 %v1039, 7
      %v1041 = vsub.s32 0, %v1040
      %v1042 = vrot.slane %v961, %v1041
      %v1043 = vlaneseq
      %v1044 = vshrl.u32 %v1043, 7
      %v1045 = vsub.s32 0, %v1044
      %v1046 = vrot.slane %v985, %v1045
      %v1047 = vlaneseq
      %v1048 = vshrl.u32 %v1047, 7
      %v1049 = vsub.s32 0, %v1048
      %v1050 = vrot.slane %v999, %v1049
      %v1051 = vlaneseq
      %v1052 = vshrl.u32 %v1051, 7
      %v1053 = vsub.s32 0, %v1052
      %v1054 = vrot.slane %v1007, %v1053
      %v1055 = vlaneseq
      %v1056 = vshrl.u32 %v1055, 7
      %v1057 = vsub.s32 0, %v1056
      %v1058 = vrot.slane %v1009, %v1057
      %v1059 = vlaneseq
      %v1060 = vshrl.u32 %v1059, 7
      %v1061 = vsub.s32 0, %v1060
      %v1062 = vrot.slane %v992, %v1061
      %v1063 = vlaneseq
      %v1064 = vshrl.u32 %v1063, 7
      %v1065 = vsub.s32 0, %v1064
      %v1066 = vrot.slane %v1006, %v1065
      %v1067 = vlaneseq
      %v1068 = vshrl.u32 %v1067, 7
      %v1069 = vsub.s32 0, %v1068
      %v1070 = vrot.slane %v1008, %v1069
      %v1071 = vlaneseq
      %v1072 = vshrl.u32 %v1071, 7
      %v1073 = vsub.s32 0, %v1072
      %v1074 = vrot.slane %v1010, %v1073
      %v1091 = vunpack.c.l.bf16 %v618
      %v1092 = vunpack.c.l.bf16 %v619
      %v1093 = vunpack.c.l.bf16 %v620
      %v1094 = vunpack.c.l.bf16 %v621
      %v1095 = vunpack.c.l.bf16 %v622
      %v1096 = vunpack.c.l.bf16 %v623
      %v1097 = vunpack.c.l.bf16 %v624
      %v1098 = vunpack.c.l.bf16 %v625
      %v1107 = vcombine.high %v1091, %v1091
      %v1108 = vcombine.high %v1092, %v1092
      %v1109 = vcombine.high %v1093, %v1093
      %v1110 = vcombine.high %v1094, %v1094
      %v1111 = vcombine.high %v1095, %v1095
      %v1112 = vcombine.high %v1096, %v1096
      %v1113 = vcombine.high %v1097, %v1097
      %v1114 = vcombine.high %v1098, %v1098
      %v1123 = vsub.f32 %v1014, %v1091
      %v1124 = vsub.f32 %v1018, %v1107
      %v1125 = vsub.f32 %v1022, %v1092
      %v1126 = vsub.f32 %v1026, %v1108
      %v1127 = vsub.f32 %v1030, %v1093
      %v1128 = vsub.f32 %v1034, %v1109
      %v1129 = vsub.f32 %v1038, %v1094
      %v1130 = vsub.f32 %v1042, %v1110
      %v1131 = vsub.f32 %v1046, %v1095
      %v1132 = vsub.f32 %v1050, %v1111
      %v1133 = vsub.f32 %v1054, %v1096
      %v1134 = vsub.f32 %v1058, %v1112
      %v1135 = vsub.f32 %v1062, %v1097
      %v1136 = vsub.f32 %v1066, %v1113
      %v1137 = vsub.f32 %v1070, %v1098
      %v1138 = vsub.f32 %v1074, %v1114
      %v1147 = vcombine.high %v881, %v881
      %v1148 = vcombine.high %v884, %v884
      %v1149 = vcombine.high %v889, %v889
      %v1150 = vcombine.high %v892, %v892
      %v1151 = vcombine.high %v897, %v897
      %v1152 = vcombine.high %v900, %v900
      %v1153 = vcombine.high %v905, %v905
      %v1154 = vcombine.high %v908, %v908
      %v1163 = vadd.f32 %v1123, %v881
      %v1164 = vadd.f32 %v1124, %v1147
      %v1165 = vadd.f32 %v1125, %v884
      %v1166 = vadd.f32 %v1126, %v1148
      %v1167 = vadd.f32 %v1127, %v889
      %v1168 = vadd.f32 %v1128, %v1149
      %v1169 = vadd.f32 %v1129, %v892
      %v1170 = vadd.f32 %v1130, %v1150
      %v1171 = vadd.f32 %v1131, %v897
      %v1172 = vadd.f32 %v1132, %v1151
      %v1173 = vadd.f32 %v1133, %v900
      %v1174 = vadd.f32 %v1134, %v1152
      %v1175 = vadd.f32 %v1135, %v905
      %v1176 = vadd.f32 %v1136, %v1153
      %v1177 = vadd.f32 %v1137, %v908
      %v1178 = vadd.f32 %v1138, %v1154
      %v1195 = vcombine.low %v1163, %v1164
      %v1196 = vcombine.low %v1165, %v1166
      %v1197 = vcombine.low %v1167, %v1168
      %v1198 = vcombine.low %v1169, %v1170
      %v1199 = vcombine.low %v1171, %v1172
      %v1200 = vcombine.low %v1173, %v1174
      %v1201 = vcombine.low %v1175, %v1176
      %v1202 = vcombine.low %v1177, %v1178
      %v1211 = vpack.c.bf16 %v1196, %v1195
      %v1212 = vpack.c.bf16 %v1198, %v1197
      %v1213 = vpack.c.bf16 %v1200, %v1199
      %v1214 = vpack.c.bf16 %v1202, %v1201
      %v1215 = vld [vmem:[%s8] sm:$0xf]
      %v1216 = vld [vmem:[%s8 + $0x4] sm:$0xf]
      %v1217 = vld [vmem:[%s8 + $0x8] sm:$0xf]
      %v1218 = vld [vmem:[%s8 + $0xc] sm:$0xf]
      %v1219 = vld [vmem:[%s9] sm:$0x1]
      %v1221 = vlaneseq
      %v1222 = vshrl.u32 %v1221, 7
      %v1223 = vsub.s32 0, %v1222
      %v1224 = vrot.slane %v1219, %v1223
      %v1230 = vunpack.c.l.b16 %v1215
      %v1231 = vunpack.c.l.b16 %v1216
      %v1232 = vunpack.c.l.b16 %v1217
      %v1233 = vunpack.c.l.b16 %v1218
      %v1234 = vpack.c.b16 %v1231, %v1230
      %v1235 = vpack.c.b16 %v1233, %v1232
      %vm1238 = vcmask 261120
      %v1240 = vsel %vm1238, %v1211, 0
      %v1243 = vsel %vm1238, %v1212, 0
      %v1246 = vsel %vm1238, %v1213, 0
      %v1249 = vsel %vm1238, %v1214, 0
      %1251 = vmatprep.subr.bf16.mxu0 0
      %1252 = vmatpush1.bf16.msra.mxu0 0
      %1253 = vmatprep.subr.bf16.mxu0 0
      %1254 = vmatpush1.bf16.msra.mxu0 0
      %1255 = vmatprep.subr.bf16.mxu0 0
      %1256 = vmatpush1.bf16.msra.mxu0 0
      %1257 = vmatprep.subr.bf16.mxu0 0
      %1258 = vmatpush1.bf16.msra.mxu0 0
      %1259 = vmatprep.subr.bf16.mxu0 0
      %1260 = vmatpush1.bf16.msra.mxu0 0
      %1261 = vmatprep.subr.bf16.mxu0 0
      %1262 = vmatpush1.bf16.msra.mxu0 0
      %1263 = vmatprep.subr.bf16.mxu0 0
      %1264 = vmatpush1.bf16.msra.mxu0 %v1235
      %1265 = vmatprep.subr.bf16.mxu0 0
      %1266 = vmatpush1.bf16.msra.mxu0 %v1234
      %1267 = vmatprep.subr.bf16.mxu0 0
      %1268 = vmatpush2.bf16.msra.mxu0 0
      %1269 = vmatprep.subr.bf16.mxu0 0
      %1270 = vmatpush2.bf16.msra.mxu0 0
      %1271 = vmatprep.subr.bf16.mxu0 0
      %1272 = vmatpush2.bf16.msra.mxu0 0
      %1273 = vmatprep.subr.bf16.mxu0 0
      %1274 = vmatpush2.bf16.msra.mxu0 0
      %1275 = vmatprep.subr.bf16.mxu0 0
      %1276 = vmatpush2.bf16.msra.mxu0 0
      %1277 = vmatprep.subr.bf16.mxu0 0
      %1278 = vmatpush2.bf16.msra.mxu0 0
      %1279 = vmatprep.subr.bf16.mxu0 0
      %1280 = vmatpush2.bf16.msra.mxu0 0
      %1281 = vmatprep.subr.bf16.mxu0 0
      %1282 = vmatpush2.bf16.msra.mxu0 0
      %1283 = vmatprep.mubr.bf16.mxu0 0
      %1284 = vmatmul.mubr.bf16.gmra.mxu0 %v1240
      %v1285 = vpop.f32.mrf.mxu0
      %v1286 = vadd.f32 %v1224, %v1285
      %v1287 = vpop.f32.mrf.mxu0
      %v1288 = vpop.f32.mrf.mxu0
      %v1289 = vadd.f32 %v1224, %v1288
      %v1290 = vpop.f32.mrf.mxu0
      %1291 = vmatprep.mubr.bf16.mxu0 0
      %1292 = vmatmul.mubr.bf16.gmra.mxu0 %v1243
      %v1293 = vpop.f32.mrf.mxu0
      %v1294 = vadd.f32 %v1224, %v1293
      %v1295 = vpop.f32.mrf.mxu0
      %v1296 = vpop.f32.mrf.mxu0
      %v1297 = vadd.f32 %v1224, %v1296
      %v1298 = vpop.f32.mrf.mxu0
      %1299 = vmatprep.mubr.bf16.mxu0 0
      %1300 = vmatmul.mubr.bf16.gmra.mxu0 %v1246
      %v1301 = vpop.f32.mrf.mxu0
      %v1302 = vadd.f32 %v1224, %v1301
      %v1303 = vpop.f32.mrf.mxu0
      %v1304 = vpop.f32.mrf.mxu0
      %v1305 = vadd.f32 %v1224, %v1304
      %v1306 = vpop.f32.mrf.mxu0
      %1307 = vmatprep.mubr.bf16.mxu0 0
      %1308 = vmatmul.mubr.bf16.gmra.mxu0 %v1249
      %v1309 = vpop.f32.mrf.mxu0
      %v1310 = vadd.f32 %v1224, %v1309
      %v1311 = vpop.f32.mrf.mxu0
      %v1312 = vpop.f32.mrf.mxu0
      %v1313 = vadd.f32 %v1224, %v1312
      %v1314 = vpop.f32.mrf.mxu0
      %1315 = vdwg.mxu0
      %v1316 = vmax.f32 %v1286, 0.0
      %v1317 = vmax.f32 %v1289, 0.0
      %v1318 = vmax.f32 %v1294, 0.0
      %v1319 = vmax.f32 %v1297, 0.0
      %v1320 = vmax.f32 %v1302, 0.0
      %v1321 = vmax.f32 %v1305, 0.0
      %v1322 = vmax.f32 %v1310, 0.0
      %v1323 = vmax.f32 %v1313, 0.0
      %v1324 = vpack.c.bf16 %v1317, %v1316
      %v1325 = vpack.c.bf16 %v1319, %v1318
      %v1326 = vpack.c.bf16 %v1321, %v1320
      %v1327 = vpack.c.bf16 %v1323, %v1322
      %v1328 = vld [vmem:[%s10] sm:$0xf]
      %v1329 = vld [vmem:[%s10 + $0x4] sm:$0xf]
      %v1330 = vld [vmem:[%s10 + $0x8] sm:$0xf]
      %v1331 = vld [vmem:[%s10 + $0xc] sm:$0xf]
      %v1332 = vld [vmem:[%s10 + $0x10] sm:$0xf]
      %v1333 = vld [vmem:[%s10 + $0x14] sm:$0xf]
      %v1334 = vld [vmem:[%s10 + $0x18] sm:$0xf]
      %v1335 = vld [vmem:[%s10 + $0x1c] sm:$0xf]
      %v1336 = vld [vmem:[%s10 + $0x20] sm:$0xf]
      %v1337 = vld [vmem:[%s10 + $0x24] sm:$0xf]
      %v1338 = vld [vmem:[%s10 + $0x28] sm:$0xf]
      %v1339 = vld [vmem:[%s10 + $0x2c] sm:$0xf]
      %v1340 = vld [vmem:[%s10 + $0x30] sm:$0xf]
      %v1341 = vld [vmem:[%s10 + $0x34] sm:$0xf]
      %v1342 = vld [vmem:[%s10 + $0x38] sm:$0xf]
      %v1343 = vld [vmem:[%s10 + $0x3c] sm:$0xf]
      %v1344 = vld [vmem:[%s11] sm:$0x1]
      %v1346 = vlaneseq
      %v1347 = vshrl.u32 %v1346, 7
      %v1348 = vsub.s32 0, %v1347
      %v1349 = vrot.slane %v1344, %v1348
      %v1367 = vunpack.c.l.b16 %v1328
      %v1368 = vunpack.c.l.b16 %v1329
      %v1369 = vunpack.c.l.b16 %v1330
      %v1370 = vunpack.c.l.b16 %v1331
      %v1371 = vunpack.c.l.b16 %v1332
      %v1372 = vunpack.c.l.b16 %v1333
      %v1373 = vunpack.c.l.b16 %v1334
      %v1374 = vunpack.c.l.b16 %v1335
      %v1375 = vunpack.c.l.b16 %v1336
      %v1376 = vunpack.c.l.b16 %v1337
      %v1377 = vunpack.c.l.b16 %v1338
      %v1378 = vunpack.c.l.b16 %v1339
      %v1379 = vunpack.c.l.b16 %v1340
      %v1380 = vunpack.c.l.b16 %v1341
      %v1381 = vunpack.c.l.b16 %v1342
      %v1382 = vunpack.c.l.b16 %v1343
      %v1383 = vpack.c.b16 %v1368, %v1367
      %v1384 = vpack.c.b16 %v1370, %v1369
      %v1385 = vpack.c.b16 %v1372, %v1371
      %v1386 = vpack.c.b16 %v1374, %v1373
      %v1387 = vpack.c.b16 %v1376, %v1375
      %v1388 = vpack.c.b16 %v1378, %v1377
      %v1389 = vpack.c.b16 %v1380, %v1379
      %v1390 = vpack.c.b16 %v1382, %v1381
      %1399 = vmatprep.subr.bf16.mxu0 0
      %1400 = vmatpush1.bf16.msra.mxu0 %v1390
      %1401 = vmatprep.subr.bf16.mxu0 0
      %1402 = vmatpush1.bf16.msra.mxu0 %v1389
      %1403 = vmatprep.subr.bf16.mxu0 0
      %1404 = vmatpush1.bf16.msra.mxu0 %v1388
      %1405 = vmatprep.subr.bf16.mxu0 0
      %1406 = vmatpush1.bf16.msra.mxu0 %v1387
      %1407 = vmatprep.subr.bf16.mxu0 0
      %1408 = vmatpush1.bf16.msra.mxu0 %v1386
      %1409 = vmatprep.subr.bf16.mxu0 0
      %1410 = vmatpush1.bf16.msra.mxu0 %v1385
      %1411 = vmatprep.subr.bf16.mxu0 0
      %1412 = vmatpush1.bf16.msra.mxu0 %v1384
      %1413 = vmatprep.subr.bf16.mxu0 0
      %1414 = vmatpush1.bf16.msra.mxu0 %v1383
      %1415 = vmatprep.subr.bf16.mxu0 0
      %1416 = vmatpush2.bf16.msra.mxu0 0
      %1417 = vmatprep.subr.bf16.mxu0 0
      %1418 = vmatpush2.bf16.msra.mxu0 0
      %1419 = vmatprep.subr.bf16.mxu0 0
      %1420 = vmatpush2.bf16.msra.mxu0 0
      %1421 = vmatprep.subr.bf16.mxu0 0
      %1422 = vmatpush2.bf16.msra.mxu0 0
      %1423 = vmatprep.subr.bf16.mxu0 0
      %1424 = vmatpush2.bf16.msra.mxu0 0
      %1425 = vmatprep.subr.bf16.mxu0 0
      %1426 = vmatpush2.bf16.msra.mxu0 0
      %1427 = vmatprep.subr.bf16.mxu0 0
      %1428 = vmatpush2.bf16.msra.mxu0 0
      %1429 = vmatprep.subr.bf16.mxu0 0
      %1430 = vmatpush2.bf16.msra.mxu0 0
      %1431 = vmatprep.mubr.bf16.mxu0 0
      %1432 = vmatmul.mubr.bf16.gmra.mxu0 %v1324
      %v1433 = vpop.f32.mrf.mxu0
      %v1434 = vadd.f32 %v1349, %v1433
      %v1435 = vpop.f32.mrf.mxu0
      %v1436 = vpop.f32.mrf.mxu0
      %v1437 = vadd.f32 %v1349, %v1436
      %v1438 = vpop.f32.mrf.mxu0
      %1439 = vmatprep.mubr.bf16.mxu0 0
      %1440 = vmatmul.mubr.bf16.gmra.mxu0 %v1325
      %v1441 = vpop.f32.mrf.mxu0
      %v1442 = vadd.f32 %v1349, %v1441
      %v1443 = vpop.f32.mrf.mxu0
      %v1444 = vpop.f32.mrf.mxu0
      %v1445 = vadd.f32 %v1349, %v1444
      %v1446 = vpop.f32.mrf.mxu0
      %1447 = vmatprep.mubr.bf16.mxu0 0
      %1448 = vmatmul.mubr.bf16.gmra.mxu0 %v1326
      %v1449 = vpop.f32.mrf.mxu0
      %v1450 = vadd.f32 %v1349, %v1449
      %v1451 = vpop.f32.mrf.mxu0
      %v1452 = vpop.f32.mrf.mxu0
      %v1453 = vadd.f32 %v1349, %v1452
      %v1454 = vpop.f32.mrf.mxu0
      %1455 = vmatprep.mubr.bf16.mxu0 0
      %1456 = vmatmul.mubr.bf16.gmra.mxu0 %v1327
      %v1457 = vpop.f32.mrf.mxu0
      %v1458 = vadd.f32 %v1349, %v1457
      %v1459 = vpop.f32.mrf.mxu0
      %v1460 = vpop.f32.mrf.mxu0
      %v1461 = vadd.f32 %v1349, %v1460
      %v1462 = vpop.f32.mrf.mxu0
      %1463 = vdwg.mxu0
      %v1472 = vcombine.high %v1434, %v1434
      %v1473 = vcombine.high %v1437, %v1437
      %v1474 = vcombine.high %v1442, %v1442
      %v1475 = vcombine.high %v1445, %v1445
      %v1476 = vcombine.high %v1450, %v1450
      %v1477 = vcombine.high %v1453, %v1453
      %v1478 = vcombine.high %v1458, %v1458
      %v1479 = vcombine.high %v1461, %v1461
      %vm1488 = vcmask 257024
      %v1489 = vsel %vm1488, %v1434, -inf
      %v1490 = vrot.slane %v1489, 4
      %v1491 = vmax.f32 %v1489, %v1490
      %v1492 = vrot.slane %v1491, 2
      %v1493 = vmax.f32 %v1491, %v1492
      %v1494 = vrot.slane %v1493, 1
      %v1495 = vmax.f32 %v1493, %v1494
      %v1496 = vsel %vm1488, %v1472, -inf
      %v1497 = vrot.slane %v1496, 4
      %v1498 = vmax.f32 %v1496, %v1497
      %v1499 = vrot.slane %v1498, 2
      %v1500 = vmax.f32 %v1498, %v1499
      %v1501 = vrot.slane %v1500, 1
      %v1502 = vmax.f32 %v1500, %v1501
      %v1503 = vsel %vm1488, %v1437, -inf
      %v1504 = vrot.slane %v1503, 4
      %v1505 = vmax.f32 %v1503, %v1504
      %v1506 = vrot.slane %v1505, 2
      %v1507 = vmax.f32 %v1505, %v1506
      %v1508 = vrot.slane %v1507, 1
      %v1509 = vmax.f32 %v1507, %v1508
      %v1510 = vsel %vm1488, %v1473, -inf
      %v1511 = vrot.slane %v1510, 4
      %v1512 = vmax.f32 %v1510, %v1511
      %v1513 = vrot.slane %v1512, 2
      %v1514 = vmax.f32 %v1512, %v1513
      %v1515 = vrot.slane %v1514, 1
      %v1516 = vmax.f32 %v1514, %v1515
      %v1517 = vsel %vm1488, %v1442, -inf
      %v1518 = vrot.slane %v1517, 4
      %v1519 = vmax.f32 %v1517, %v1518
      %v1520 = vrot.slane %v1519, 2
      %v1521 = vmax.f32 %v1519, %v1520
      %v1522 = vrot.slane %v1521, 1
      %v1523 = vmax.f32 %v1521, %v1522
      %v1524 = vsel %vm1488, %v1474, -inf
      %v1525 = vrot.slane %v1524, 4
      %v1526 = vmax.f32 %v1524, %v1525
      %v1527 = vrot.slane %v1526, 2
      %v1528 = vmax.f32 %v1526, %v1527
      %v1529 = vrot.slane %v1528, 1
      %v1530 = vmax.f32 %v1528, %v1529
      %v1531 = vsel %vm1488, %v1445, -inf
      %v1532 = vrot.slane %v1531, 4
      %v1533 = vmax.f32 %v1531, %v1532
      %v1534 = vrot.slane %v1533, 2
      %v1535 = vmax.f32 %v1533, %v1534
      %v1536 = vrot.slane %v1535, 1
      %v1537 = vmax.f32 %v1535, %v1536
      %v1538 = vsel %vm1488, %v1475, -inf
      %v1539 = vrot.slane %v1538, 4
      %v1540 = vmax.f32 %v1538, %v1539
      %v1541 = vrot.slane %v1540, 2
      %v1542 = vmax.f32 %v1540, %v1541
      %v1543 = vrot.slane %v1542, 1
      %v1544 = vmax.f32 %v1542, %v1543
      %v1545 = vsel %vm1488, %v1450, -inf
      %v1546 = vrot.slane %v1545, 4
      %v1547 = vmax.f32 %v1545, %v1546
      %v1548 = vrot.slane %v1547, 2
      %v1549 = vmax.f32 %v1547, %v1548
      %v1550 = vrot.slane %v1549, 1
      %v1551 = vmax.f32 %v1549, %v1550
      %v1552 = vsel %vm1488, %v1476, -inf
      %v1553 = vrot.slane %v1552, 4
      %v1554 = vmax.f32 %v1552, %v1553
      %v1555 = vrot.slane %v1554, 2
      %v1556 = vmax.f32 %v1554, %v1555
      %v1557 = vrot.slane %v1556, 1
      %v1558 = vmax.f32 %v1556, %v1557
      %v1559 = vsel %vm1488, %v1453, -inf
      %v1560 = vrot.slane %v1559, 4
      %v1561 = vmax.f32 %v1559, %v1560
      %v1562 = vrot.slane %v1561, 2
      %v1563 = vmax.f32 %v1561, %v1562
      %v1564 = vrot.slane %v1563, 1
      %v1565 = vmax.f32 %v1563, %v1564
      %v1566 = vsel %vm1488, %v1477, -inf
      %v1567 = vrot.slane %v1566, 4
      %v1568 = vmax.f32 %v1566, %v1567
      %v1569 = vrot.slane %v1568, 2
      %v1570 = vmax.f32 %v1568, %v1569
      %v1571 = vrot.slane %v1570, 1
      %v1572 = vmax.f32 %v1570, %v1571
      %v1573 = vsel %vm1488, %v1458, -inf
      %v1574 = vrot.slane %v1573, 4
      %v1575 = vmax.f32 %v1573, %v1574
      %v1576 = vrot.slane %v1575, 2
      %v1577 = vmax.f32 %v1575, %v1576
      %v1578 = vrot.slane %v1577, 1
      %v1579 = vmax.f32 %v1577, %v1578
      %v1580 = vsel %vm1488, %v1478, -inf
      %v1581 = vrot.slane %v1580, 4
      %v1582 = vmax.f32 %v1580, %v1581
      %v1583 = vrot.slane %v1582, 2
      %v1584 = vmax.f32 %v1582, %v1583
      %v1585 = vrot.slane %v1584, 1
      %v1586 = vmax.f32 %v1584, %v1585
      %v1587 = vsel %vm1488, %v1461, -inf
      %v1588 = vrot.slane %v1587, 4
      %v1589 = vmax.f32 %v1587, %v1588
      %v1590 = vrot.slane %v1589, 2
      %v1591 = vmax.f32 %v1589, %v1590
      %v1592 = vrot.slane %v1591, 1
      %v1593 = vmax.f32 %v1591, %v1592
      %v1594 = vsel %vm1488, %v1479, -inf
      %v1595 = vrot.slane %v1594, 4
      %v1596 = vmax.f32 %v1594, %v1595
      %v1597 = vrot.slane %v1596, 2
      %v1598 = vmax.f32 %v1596, %v1597
      %v1599 = vrot.slane %v1598, 1
      %v1600 = vmax.f32 %v1598, %v1599
      %v1601 = vsub.f32 %v1434, %v1495
      %v1602 = vsub.f32 %v1472, %v1502
      %v1603 = vsub.f32 %v1437, %v1509
      %v1604 = vsub.f32 %v1473, %v1516
      %v1605 = vsub.f32 %v1442, %v1523
      %v1606 = vsub.f32 %v1474, %v1530
      %v1607 = vsub.f32 %v1445, %v1537
      %v1608 = vsub.f32 %v1475, %v1544
      %v1609 = vsub.f32 %v1450, %v1551
      %v1610 = vsub.f32 %v1476, %v1558
      %v1611 = vsub.f32 %v1453, %v1565
      %v1612 = vsub.f32 %v1477, %v1572
      %v1613 = vsub.f32 %v1458, %v1579
      %v1614 = vsub.f32 %v1478, %v1586
      %v1615 = vsub.f32 %v1461, %v1593
      %v1616 = vsub.f32 %v1479, %v1600
      %v1617 = vmul.f32 %v1601, 1.442695
      %v1618 = vpow.pop %v1617
      %v1619 = vmul.f32 %v1602, 1.442695
      %v1620 = vpow.pop %v1619
      %v1621 = vmul.f32 %v1603, 1.442695
      %v1622 = vpow.pop %v1621
      %v1623 = vmul.f32 %v1604, 1.442695
      %v1624 = vpow.pop %v1623
      %v1625 = vmul.f32 %v1605, 1.442695
      %v1626 = vpow.pop %v1625
      %v1627 = vmul.f32 %v1606, 1.442695
      %v1628 = vpow.pop %v1627
      %v1629 = vmul.f32 %v1607, 1.442695
      %v1630 = vpow.pop %v1629
      %v1631 = vmul.f32 %v1608, 1.442695
      %v1632 = vpow.pop %v1631
      %v1633 = vmul.f32 %v1609, 1.442695
      %v1634 = vpow.pop %v1633
      %v1635 = vmul.f32 %v1610, 1.442695
      %v1636 = vpow.pop %v1635
      %v1637 = vmul.f32 %v1611, 1.442695
      %v1638 = vpow.pop %v1637
      %v1639 = vmul.f32 %v1612, 1.442695
      %v1640 = vpow.pop %v1639
      %v1641 = vmul.f32 %v1613, 1.442695
      %v1642 = vpow.pop %v1641
      %v1643 = vmul.f32 %v1614, 1.442695
      %v1644 = vpow.pop %v1643
      %v1645 = vmul.f32 %v1615, 1.442695
      %v1646 = vpow.pop %v1645
      %v1647 = vmul.f32 %v1616, 1.442695
      %v1648 = vpow.pop %v1647
      %v1649 = vsel %vm1488, %v1618, 0.0
      %v1650 = vrot.slane %v1649, 4
      %v1651 = vadd.f32 %v1649, %v1650
      %v1652 = vrot.slane %v1651, 2
      %v1653 = vadd.f32 %v1651, %v1652
      %v1654 = vrot.slane %v1653, 1
      %v1655 = vadd.f32 %v1653, %v1654
      %v1656 = vsel %vm1488, %v1620, 0.0
      %v1657 = vrot.slane %v1656, 4
      %v1658 = vadd.f32 %v1656, %v1657
      %v1659 = vrot.slane %v1658, 2
      %v1660 = vadd.f32 %v1658, %v1659
      %v1661 = vrot.slane %v1660, 1
      %v1662 = vadd.f32 %v1660, %v1661
      %v1663 = vsel %vm1488, %v1622, 0.0
      %v1664 = vrot.slane %v1663, 4
      %v1665 = vadd.f32 %v1663, %v1664
      %v1666 = vrot.slane %v1665, 2
      %v1667 = vadd.f32 %v1665, %v1666
      %v1668 = vrot.slane %v1667, 1
      %v1669 = vadd.f32 %v1667, %v1668
      %v1670 = vsel %vm1488, %v1624, 0.0
      %v1671 = vrot.slane %v1670, 4
      %v1672 = vadd.f32 %v1670, %v1671
      %v1673 = vrot.slane %v1672, 2
      %v1674 = vadd.f32 %v1672, %v1673
      %v1675 = vrot.slane %v1674, 1
      %v1676 = vadd.f32 %v1674, %v1675
      %v1677 = vsel %vm1488, %v1626, 0.0
      %v1678 = vrot.slane %v1677, 4
      %v1679 = vadd.f32 %v1677, %v1678
      %v1680 = vrot.slane %v1679, 2
      %v1681 = vadd.f32 %v1679, %v1680
      %v1682 = vrot.slane %v1681, 1
      %v1683 = vadd.f32 %v1681, %v1682
      %v1684 = vsel %vm1488, %v1628, 0.0
      %v1685 = vrot.slane %v1684, 4
      %v1686 = vadd.f32 %v1684, %v1685
      %v1687 = vrot.slane %v1686, 2
      %v1688 = vadd.f32 %v1686, %v1687
      %v1689 = vrot.slane %v1688, 1
      %v1690 = vadd.f32 %v1688, %v1689
      %v1691 = vsel %vm1488, %v1630, 0.0
      %v1692 = vrot.slane %v1691, 4
      %v1693 = vadd.f32 %v1691, %v1692
      %v1694 = vrot.slane %v1693, 2
      %v1695 = vadd.f32 %v1693, %v1694
      %v1696 = vrot.slane %v1695, 1
      %v1697 = vadd.f32 %v1695, %v1696
      %v1698 = vsel %vm1488, %v1632, 0.0
      %v1699 = vrot.slane %v1698, 4
      %v1700 = vadd.f32 %v1698, %v1699
      %v1701 = vrot.slane %v1700, 2
      %v1702 = vadd.f32 %v1700, %v1701
      %v1703 = vrot.slane %v1702, 1
      %v1704 = vadd.f32 %v1702, %v1703
      %v1705 = vsel %vm1488, %v1634, 0.0
      %v1706 = vrot.slane %v1705, 4
      %v1707 = vadd.f32 %v1705, %v1706
      %v1708 = vrot.slane %v1707, 2
      %v1709 = vadd.f32 %v1707, %v1708
      %v1710 = vrot.slane %v1709, 1
      %v1711 = vadd.f32 %v1709, %v1710
      %v1712 = vsel %vm1488, %v1636, 0.0
      %v1713 = vrot.slane %v1712, 4
      %v1714 = vadd.f32 %v1712, %v1713
      %v1715 = vrot.slane %v1714, 2
      %v1716 = vadd.f32 %v1714, %v1715
      %v1717 = vrot.slane %v1716, 1
      %v1718 = vadd.f32 %v1716, %v1717
      %v1719 = vsel %vm1488, %v1638, 0.0
      %v1720 = vrot.slane %v1719, 4
      %v1721 = vadd.f32 %v1719, %v1720
      %v1722 = vrot.slane %v1721, 2
      %v1723 = vadd.f32 %v1721, %v1722
      %v1724 = vrot.slane %v1723, 1
      %v1725 = vadd.f32 %v1723, %v1724
      %v1726 = vsel %vm1488, %v1640, 0.0
      %v1727 = vrot.slane %v1726, 4
      %v1728 = vadd.f32 %v1726, %v1727
      %v1729 = vrot.slane %v1728, 2
      %v1730 = vadd.f32 %v1728, %v1729
      %v1731 = vrot.slane %v1730, 1
      %v1732 = vadd.f32 %v1730, %v1731
      %v1733 = vsel %vm1488, %v1642, 0.0
      %v1734 = vrot.slane %v1733, 4
      %v1735 = vadd.f32 %v1733, %v1734
      %v1736 = vrot.slane %v1735, 2
      %v1737 = vadd.f32 %v1735, %v1736
      %v1738 = vrot.slane %v1737, 1
      %v1739 = vadd.f32 %v1737, %v1738
      %v1740 = vsel %vm1488, %v1644, 0.0
      %v1741 = vrot.slane %v1740, 4
      %v1742 = vadd.f32 %v1740, %v1741
      %v1743 = vrot.slane %v1742, 2
      %v1744 = vadd.f32 %v1742, %v1743
      %v1745 = vrot.slane %v1744, 1
      %v1746 = vadd.f32 %v1744, %v1745
      %v1747 = vsel %vm1488, %v1646, 0.0
      %v1748 = vrot.slane %v1747, 4
      %v1749 = vadd.f32 %v1747, %v1748
      %v1750 = vrot.slane %v1749, 2
      %v1751 = vadd.f32 %v1749, %v1750
      %v1752 = vrot.slane %v1751, 1
      %v1753 = vadd.f32 %v1751, %v1752
      %v1754 = vsel %vm1488, %v1648, 0.0
      %v1755 = vrot.slane %v1754, 4
      %v1756 = vadd.f32 %v1754, %v1755
      %v1757 = vrot.slane %v1756, 2
      %v1758 = vadd.f32 %v1756, %v1757
      %v1759 = vrot.slane %v1758, 1
      %v1760 = vadd.f32 %v1758, %v1759
      %v1761 = vrcp.pop %v1655
      %v1762 = vrcp.pop %v1662
      %v1763 = vrcp.pop %v1669
      %v1764 = vrcp.pop %v1676
      %v1765 = vrcp.pop %v1683
      %v1766 = vrcp.pop %v1690
      %v1767 = vrcp.pop %v1697
      %v1768 = vrcp.pop %v1704
      %v1769 = vrcp.pop %v1711
      %v1770 = vrcp.pop %v1718
      %v1771 = vrcp.pop %v1725
      %v1772 = vrcp.pop %v1732
      %v1773 = vrcp.pop %v1739
      %v1774 = vrcp.pop %v1746
      %v1775 = vrcp.pop %v1753
      %v1776 = vrcp.pop %v1760
      %v1777 = vmul.f32 %v1618, %v1761
      %v1778 = vmul.f32 %v1620, %v1762
      %v1779 = vmul.f32 %v1622, %v1763
      %v1780 = vmul.f32 %v1624, %v1764
      %v1781 = vmul.f32 %v1626, %v1765
      %v1782 = vmul.f32 %v1628, %v1766
      %v1783 = vmul.f32 %v1630, %v1767
      %v1784 = vmul.f32 %v1632, %v1768
      %v1785 = vmul.f32 %v1634, %v1769
      %v1786 = vmul.f32 %v1636, %v1770
      %v1787 = vmul.f32 %v1638, %v1771
      %v1788 = vmul.f32 %v1640, %v1772
      %v1789 = vmul.f32 %v1642, %v1773
      %v1790 = vmul.f32 %v1644, %v1774
      %v1791 = vmul.f32 %v1646, %v1775
      %v1792 = vmul.f32 %v1648, %v1776
      %1793 = vrot.lane.b32.xlu0 %v881, 32
      %v1794 = vpop.permute.xlu0 %1793
      %1795 = vrot.lane.b32.xlu0 %v1147, 32
      %v1796 = vpop.permute.xlu0 %1795
      %1797 = vrot.lane.b32.xlu0 %v884, 32
      %v1798 = vpop.permute.xlu0 %1797
      %1799 = vrot.lane.b32.xlu0 %v1148, 32
      %v1800 = vpop.permute.xlu0 %1799
      %1801 = vrot.lane.b32.xlu0 %v889, 32
      %v1802 = vpop.permute.xlu0 %1801
      %1803 = vrot.lane.b32.xlu0 %v1149, 32
      %v1804 = vpop.permute.xlu0 %1803
      %1805 = vrot.lane.b32.xlu0 %v892, 32
      %v1806 = vpop.permute.xlu0 %1805
      %1807 = vrot.lane.b32.xlu0 %v1150, 32
      %v1808 = vpop.permute.xlu0 %1807
      %1809 = vrot.lane.b32.xlu0 %v897, 32
      %v1810 = vpop.permute.xlu0 %1809
      %1811 = vrot.lane.b32.xlu0 %v1151, 32
      %v1812 = vpop.permute.xlu0 %1811
      %1813 = vrot.lane.b32.xlu0 %v900, 32
      %v1814 = vpop.permute.xlu0 %1813
      %1815 = vrot.lane.b32.xlu0 %v1152, 32
      %v1816 = vpop.permute.xlu0 %1815
      %1817 = vrot.lane.b32.xlu0 %v905, 32
      %v1818 = vpop.permute.xlu0 %1817
      %1819 = vrot.lane.b32.xlu0 %v1153, 32
      %v1820 = vpop.permute.xlu0 %1819
      %1821 = vrot.lane.b32.xlu0 %v908, 32
      %v1822 = vpop.permute.xlu0 %1821
      %1823 = vrot.lane.b32.xlu0 %v1154, 32
      %v1824 = vpop.permute.xlu0 %1823
      %v1841 = vadd.f32 %v1014, %v1794
      %v1842 = vadd.f32 %v1018, %v1796
      %v1843 = vadd.f32 %v1022, %v1798
      %v1844 = vadd.f32 %v1026, %v1800
      %v1845 = vadd.f32 %v1030, %v1802
      %v1846 = vadd.f32 %v1034, %v1804
      %v1847 = vadd.f32 %v1038, %v1806
      %v1848 = vadd.f32 %v1042, %v1808
      %v1849 = vadd.f32 %v1046, %v1810
      %v1850 = vadd.f32 %v1050, %v1812
      %v1851 = vadd.f32 %v1054, %v1814
      %v1852 = vadd.f32 %v1058, %v1816
      %v1853 = vadd.f32 %v1062, %v1818
      %v1854 = vadd.f32 %v1066, %v1820
      %v1855 = vadd.f32 %v1070, %v1822
      %v1856 = vadd.f32 %v1074, %v1824
      %1873 = vrot.lane.b32.xlu0 %v1841, 96
      %v1874 = vpop.permute.xlu0 %1873
      %1875 = vrot.lane.b32.xlu0 %v1842, 96
      %v1876 = vpop.permute.xlu0 %1875
      %1877 = vrot.lane.b32.xlu0 %v1843, 96
      %v1878 = vpop.permute.xlu0 %1877
      %1879 = vrot.lane.b32.xlu0 %v1844, 96
      %v1880 = vpop.permute.xlu0 %1879
      %1881 = vrot.lane.b32.xlu0 %v1845, 96
      %v1882 = vpop.permute.xlu0 %1881
      %1883 = vrot.lane.b32.xlu0 %v1846, 96
      %v1884 = vpop.permute.xlu0 %1883
      %1885 = vrot.lane.b32.xlu0 %v1847, 96
      %v1886 = vpop.permute.xlu0 %1885
      %1887 = vrot.lane.b32.xlu0 %v1848, 96
      %v1888 = vpop.permute.xlu0 %1887
      %1889 = vrot.lane.b32.xlu0 %v1849, 96
      %v1890 = vpop.permute.xlu0 %1889
      %1891 = vrot.lane.b32.xlu0 %v1850, 96
      %v1892 = vpop.permute.xlu0 %1891
      %1893 = vrot.lane.b32.xlu0 %v1851, 96
      %v1894 = vpop.permute.xlu0 %1893
      %1895 = vrot.lane.b32.xlu0 %v1852, 96
      %v1896 = vpop.permute.xlu0 %1895
      %1897 = vrot.lane.b32.xlu0 %v1853, 96
      %v1898 = vpop.permute.xlu0 %1897
      %1899 = vrot.lane.b32.xlu0 %v1854, 96
      %v1900 = vpop.permute.xlu0 %1899
      %1901 = vrot.lane.b32.xlu0 %v1855, 96
      %v1902 = vpop.permute.xlu0 %1901
      %1903 = vrot.lane.b32.xlu0 %v1856, 96
      %v1904 = vpop.permute.xlu0 %1903
      %v1921 = vmul.f32 %v1777, %v1874
      %v1922 = vmul.f32 %v1778, %v1876
      %v1923 = vmul.f32 %v1779, %v1878
      %v1924 = vmul.f32 %v1780, %v1880
      %v1925 = vmul.f32 %v1781, %v1882
      %v1926 = vmul.f32 %v1782, %v1884
      %v1927 = vmul.f32 %v1783, %v1886
      %v1928 = vmul.f32 %v1784, %v1888
      %v1929 = vmul.f32 %v1785, %v1890
      %v1930 = vmul.f32 %v1786, %v1892
      %v1931 = vmul.f32 %v1787, %v1894
      %v1932 = vmul.f32 %v1788, %v1896
      %v1933 = vmul.f32 %v1789, %v1898
      %v1934 = vmul.f32 %v1790, %v1900
      %v1935 = vmul.f32 %v1791, %v1902
      %v1936 = vmul.f32 %v1792, %v1904
      %v1937 = vsel %vm1488, %v1921, 0.0
      %v1938 = vrot.slane %v1937, 4
      %v1939 = vadd.f32 %v1937, %v1938
      %v1940 = vrot.slane %v1939, 2
      %v1941 = vadd.f32 %v1939, %v1940
      %v1942 = vrot.slane %v1941, 1
      %v1943 = vadd.f32 %v1941, %v1942
      %v1944 = vsel %vm1488, %v1922, 0.0
      %v1945 = vrot.slane %v1944, 4
      %v1946 = vadd.f32 %v1944, %v1945
      %v1947 = vrot.slane %v1946, 2
      %v1948 = vadd.f32 %v1946, %v1947
      %v1949 = vrot.slane %v1948, 1
      %v1950 = vadd.f32 %v1948, %v1949
      %v1951 = vsel %vm1488, %v1923, 0.0
      %v1952 = vrot.slane %v1951, 4
      %v1953 = vadd.f32 %v1951, %v1952
      %v1954 = vrot.slane %v1953, 2
      %v1955 = vadd.f32 %v1953, %v1954
      %v1956 = vrot.slane %v1955, 1
      %v1957 = vadd.f32 %v1955, %v1956
      %v1958 = vsel %vm1488, %v1924, 0.0
      %v1959 = vrot.slane %v1958, 4
      %v1960 = vadd.f32 %v1958, %v1959
      %v1961 = vrot.slane %v1960, 2
      %v1962 = vadd.f32 %v1960, %v1961
      %v1963 = vrot.slane %v1962, 1
      %v1964 = vadd.f32 %v1962, %v1963
      %v1965 = vsel %vm1488, %v1925, 0.0
      %v1966 = vrot.slane %v1965, 4
      %v1967 = vadd.f32 %v1965, %v1966
      %v1968 = vrot.slane %v1967, 2
      %v1969 = vadd.f32 %v1967, %v1968
      %v1970 = vrot.slane %v1969, 1
      %v1971 = vadd.f32 %v1969, %v1970
      %v1972 = vsel %vm1488, %v1926, 0.0
      %v1973 = vrot.slane %v1972, 4
      %v1974 = vadd.f32 %v1972, %v1973
      %v1975 = vrot.slane %v1974, 2
      %v1976 = vadd.f32 %v1974, %v1975
      %v1977 = vrot.slane %v1976, 1
      %v1978 = vadd.f32 %v1976, %v1977
      %v1979 = vsel %vm1488, %v1927, 0.0
      %v1980 = vrot.slane %v1979, 4
      %v1981 = vadd.f32 %v1979, %v1980
      %v1982 = vrot.slane %v1981, 2
      %v1983 = vadd.f32 %v1981, %v1982
      %v1984 = vrot.slane %v1983, 1
      %v1985 = vadd.f32 %v1983, %v1984
      %v1986 = vsel %vm1488, %v1928, 0.0
      %v1987 = vrot.slane %v1986, 4
      %v1988 = vadd.f32 %v1986, %v1987
      %v1989 = vrot.slane %v1988, 2
      %v1990 = vadd.f32 %v1988, %v1989
      %v1991 = vrot.slane %v1990, 1
      %v1992 = vadd.f32 %v1990, %v1991
      %v1993 = vsel %vm1488, %v1929, 0.0
      %v1994 = vrot.slane %v1993, 4
      %v1995 = vadd.f32 %v1993, %v1994
      %v1996 = vrot.slane %v1995, 2
      %v1997 = vadd.f32 %v1995, %v1996
      %v1998 = vrot.slane %v1997, 1
      %v1999 = vadd.f32 %v1997, %v1998
      %v2000 = vsel %vm1488, %v1930, 0.0
      %v2001 = vrot.slane %v2000, 4
      %v2002 = vadd.f32 %v2000, %v2001
      %v2003 = vrot.slane %v2002, 2
      %v2004 = vadd.f32 %v2002, %v2003
      %v2005 = vrot.slane %v2004, 1
      %v2006 = vadd.f32 %v2004, %v2005
      %v2007 = vsel %vm1488, %v1931, 0.0
      %v2008 = vrot.slane %v2007, 4
      %v2009 = vadd.f32 %v2007, %v2008
      %v2010 = vrot.slane %v2009, 2
      %v2011 = vadd.f32 %v2009, %v2010
      %v2012 = vrot.slane %v2011, 1
      %v2013 = vadd.f32 %v2011, %v2012
      %v2014 = vsel %vm1488, %v1932, 0.0
      %v2015 = vrot.slane %v2014, 4
      %v2016 = vadd.f32 %v2014, %v2015
      %v2017 = vrot.slane %v2016, 2
      %v2018 = vadd.f32 %v2016, %v2017
      %v2019 = vrot.slane %v2018, 1
      %v2020 = vadd.f32 %v2018, %v2019
      %v2021 = vsel %vm1488, %v1933, 0.0
      %v2022 = vrot.slane %v2021, 4
      %v2023 = vadd.f32 %v2021, %v2022
      %v2024 = vrot.slane %v2023, 2
      %v2025 = vadd.f32 %v2023, %v2024
      %v2026 = vrot.slane %v2025, 1
      %v2027 = vadd.f32 %v2025, %v2026
      %v2028 = vsel %vm1488, %v1934, 0.0
      %v2029 = vrot.slane %v2028, 4
      %v2030 = vadd.f32 %v2028, %v2029
      %v2031 = vrot.slane %v2030, 2
      %v2032 = vadd.f32 %v2030, %v2031
      %v2033 = vrot.slane %v2032, 1
      %v2034 = vadd.f32 %v2032, %v2033
      %v2035 = vsel %vm1488, %v1935, 0.0
      %v2036 = vrot.slane %v2035, 4
      %v2037 = vadd.f32 %v2035, %v2036
      %v2038 = vrot.slane %v2037, 2
      %v2039 = vadd.f32 %v2037, %v2038
      %v2040 = vrot.slane %v2039, 1
      %v2041 = vadd.f32 %v2039, %v2040
      %v2042 = vsel %vm1488, %v1936, 0.0
      %v2043 = vrot.slane %v2042, 4
      %v2044 = vadd.f32 %v2042, %v2043
      %v2045 = vrot.slane %v2044, 2
      %v2046 = vadd.f32 %v2044, %v2045
      %v2047 = vrot.slane %v2046, 1
      %v2048 = vadd.f32 %v2046, %v2047
      %v2049 = vpack.c.bf16 %v1943, %v1943
      %v2050 = vpack.c.bf16 %v1950, %v1950
      %v2051 = vpack.c.bf16 %v1957, %v1957
      %v2052 = vpack.c.bf16 %v1964, %v1964
      %v2053 = vpack.c.bf16 %v1971, %v1971
      %v2054 = vpack.c.bf16 %v1978, %v1978
      %v2055 = vpack.c.bf16 %v1985, %v1985
      %v2056 = vpack.c.bf16 %v1992, %v1992
      %v2057 = vpack.c.bf16 %v1999, %v1999
      %v2058 = vpack.c.bf16 %v2006, %v2006
      %v2059 = vpack.c.bf16 %v2013, %v2013
      %v2060 = vpack.c.bf16 %v2020, %v2020
      %v2061 = vpack.c.bf16 %v2027, %v2027
      %v2062 = vpack.c.bf16 %v2034, %v2034
      %v2063 = vpack.c.bf16 %v2041, %v2041
      %v2064 = vpack.c.bf16 %v2048, %v2048
      %v2065 = vld [vmem:[%s12] sm:$0xf]
      %v2066 = vld [vmem:[%s12 + $0x4] sm:$0xf]
      %v2067 = vld [vmem:[%s12 + $0x8] sm:$0xf]
      %v2068 = vld [vmem:[%s12 + $0xc] sm:$0xf]
      %v2069 = vld [vmem:[%s13] sm:$0x1]
      %v2071 = vlaneseq
      %v2072 = vshrl.u32 %v2071, 7
      %v2073 = vsub.s32 0, %v2072
      %v2074 = vrot.slane %v2069, %v2073
      %v2092 = vunpack.c.l.b16 %v2049
      %v2093 = vunpack.c.l.b16 %v2050
      %v2094 = vunpack.c.l.b16 %v2051
      %v2095 = vunpack.c.l.b16 %v2052
      %v2096 = vunpack.c.l.b16 %v2053
      %v2097 = vunpack.c.l.b16 %v2054
      %v2098 = vunpack.c.l.b16 %v2055
      %v2099 = vunpack.c.l.b16 %v2056
      %v2100 = vunpack.c.l.b16 %v2057
      %v2101 = vunpack.c.l.b16 %v2058
      %v2102 = vunpack.c.l.b16 %v2059
      %v2103 = vunpack.c.l.b16 %v2060
      %v2104 = vunpack.c.l.b16 %v2061
      %v2105 = vunpack.c.l.b16 %v2062
      %v2106 = vunpack.c.l.b16 %v2063
      %v2107 = vunpack.c.l.b16 %v2064
      %vm2108 = vcmask 1041409
      %v2109 = vsel %vm2108, %v2093, %v2092
      %vm2110 = vcmask 1042434
      %v2111 = vsel %vm2110, %v2094, %v2109
      %vm2112 = vcmask 1043459
      %v2113 = vsel %vm2112, %v2095, %v2111
      %vm2114 = vcmask 1044484
      %v2115 = vsel %vm2114, %v2096, %v2113
      %vm2116 = vcmask 1045509
      %v2117 = vsel %vm2116, %v2097, %v2115
      %vm2118 = vcmask 1046534
      %v2119 = vsel %vm2118, %v2098, %v2117
      %vm2120 = vcmask 1047559
      %v2121 = vsel %vm2120, %v2099, %v2119
      %v2122 = vsel %vm2108, %v2101, %v2100
      %v2123 = vsel %vm2110, %v2102, %v2122
      %v2124 = vsel %vm2112, %v2103, %v2123
      %v2125 = vsel %vm2114, %v2104, %v2124
      %v2126 = vsel %vm2116, %v2105, %v2125
      %v2127 = vsel %vm2118, %v2106, %v2126
      %v2128 = vsel %vm2120, %v2107, %v2127
      %v2129 = vpack.c.b16 %v2128, %v2121
      %v2134 = vunpack.c.l.b16 %v2065
      %v2135 = vunpack.c.l.b16 %v2066
      %v2136 = vunpack.c.l.b16 %v2067
      %v2137 = vunpack.c.l.b16 %v2068
      %v2138 = vpack.c.b16 %v2135, %v2134
      %v2139 = vpack.c.b16 %v2137, %v2136
      %v2143 = vsel %vm1238, %v2129, 0
      %2145 = vmatprep.subr.bf16.mxu0 0
      %2146 = vmatpush1.bf16.msra.mxu0 0
      %2147 = vmatprep.subr.bf16.mxu0 0
      %2148 = vmatpush1.bf16.msra.mxu0 0
      %2149 = vmatprep.subr.bf16.mxu0 0
      %2150 = vmatpush1.bf16.msra.mxu0 0
      %2151 = vmatprep.subr.bf16.mxu0 0
      %2152 = vmatpush1.bf16.msra.mxu0 0
      %2153 = vmatprep.subr.bf16.mxu0 0
      %2154 = vmatpush1.bf16.msra.mxu0 0
      %2155 = vmatprep.subr.bf16.mxu0 0
      %2156 = vmatpush1.bf16.msra.mxu0 0
      %2157 = vmatprep.subr.bf16.mxu0 0
      %2158 = vmatpush1.bf16.msra.mxu0 %v2139
      %2159 = vmatprep.subr.bf16.mxu0 0
      %2160 = vmatpush1.bf16.msra.mxu0 %v2138
      %2161 = vmatprep.subr.bf16.mxu0 0
      %2162 = vmatpush2.bf16.msra.mxu0 0
      %2163 = vmatprep.subr.bf16.mxu0 0
      %2164 = vmatpush2.bf16.msra.mxu0 0
      %2165 = vmatprep.subr.bf16.mxu0 0
      %2166 = vmatpush2.bf16.msra.mxu0 0
      %2167 = vmatprep.subr.bf16.mxu0 0
      %2168 = vmatpush2.bf16.msra.mxu0 0
      %2169 = vmatprep.subr.bf16.mxu0 0
      %2170 = vmatpush2.bf16.msra.mxu0 0
      %2171 = vmatprep.subr.bf16.mxu0 0
      %2172 = vmatpush2.bf16.msra.mxu0 0
      %2173 = vmatprep.subr.bf16.mxu0 0
      %2174 = vmatpush2.bf16.msra.mxu0 0
      %2175 = vmatprep.subr.bf16.mxu0 0
      %2176 = vmatpush2.bf16.msra.mxu0 0
      %2177 = vmatprep.mubr.bf16.mxu0 0
      %2178 = vmatmul.mubr.bf16.gmra.mxu0 %v2143
      %v2179 = vpop.f32.mrf.mxu0
      %v2180 = vadd.f32 %v2074, %v2179
      %v2181 = vpop.f32.mrf.mxu0
      %v2182 = vpop.f32.mrf.mxu0
      %v2183 = vadd.f32 %v2074, %v2182
      %v2184 = vpop.f32.mrf.mxu0
      %2185 = vdwg.mxu0
      %v2186 = vld [vmem:[%s603] sm:$0xff]
      %v2187 = vld [vmem:[%s603 + $0x8] sm:$0xff]
      %v2188 = vadd.f32 %v2180, %v2186
      %v2189 = vadd.f32 %v2183, %v2187
      %vm2190 = vcmask 64512
      %2191 = vst.msk [vmem:[%s613] sm:$0xff] %vm2190, %v2188
      %2192 = vst.msk [vmem:[%s613 + $0x8] sm:$0xff] %vm2190, %v2189
      %s2193 = smul.u32 2, %s30
      %p2194 = scmp.lt.s32.totalorder %s29, 1
      %s2195 = scalar_select %p2194, %s29, 1
      %p2196 = scmp.lt.s32.totalorder %s2193, 1
      %s2197 = scalar_select %p2196, %s2193, 1
      %s2198 = smul.addr %s2195, 2
      %s2199 = sadd.s32 %s2197, %s2198
      %s2200 = smul.addr %s2199, 8
      %s2201 = scalar_lea.vmem %s14, %s2200
      // Predicated region
      $region77: #{skip_transformer_forward.3} parent=75 // pred_check
        %p2202 = pneg %p379
      $region78: #{skip_transformer_forward.3} parent=75 // pred_check_branch
        %2204 = sbr.rel (%p2202) target = $region80
      $region79: #{skip_transformer_forward.3} parent=75 // pred_region
        %s2205 = smul.u32 2, %s30
      $region80: #{skip_transformer_forward.3} parent=75 // pred_fallthru
        _
    $region76: #{skip_transformer_forward.3} parent=5 // pred_fallthru
      _
    %p2206 = scmp.le.s32.totalorder 2, %s20
    // Predicated region
    $region81: #{skip_transformer_forward.3} parent=5 // pred_check
      %p2207 = pneg %p2206
    $region82: #{skip_transformer_forward.3} parent=5 // pred_check_branch
      %2209 = sbr.rel (%p2207) target = $region84
    $region83: #{skip_transformer_forward.3} parent=5 // pred_region
      %s2210 = ssub.s32 %s20, 2
      // Predicated region
      $region85: #{skip_transformer_forward.3} parent=83 // pred_check
        %p2211 = pneg %p385
      $region86: #{skip_transformer_forward.3} parent=83 // pred_check_branch
        %2213 = sbr.rel (%p2211) target = $region88
      $region87: #{skip_transformer_forward.3} parent=83 // pred_region
        %s2214 = smul.u32 2, %s32
        %p2215 = scmp.lt.s32.totalorder %s31, 1
        %s2216 = scalar_select %p2215, %s31, 1
        %p2217 = scmp.lt.s32.totalorder %s2214, 1
        %s2218 = scalar_select %p2217, %s2214, 1
        %s2219 = smul.addr %s2216, 2
        %s2220 = sadd.s32 %s2218, %s2219
        %s2221 = smul.addr %s2220, 8
        %s2222 = scalar_lea.vmem %s14, %s2221
      $region88: #{skip_transformer_forward.3} parent=83 // pred_fallthru
        _
    $region84: #{skip_transformer_forward.3} parent=5 // pred_fallthru
      _
  $region6: #{skip_transformer_forward.3} parent=0 // loop_footer
    %s24 = sadd.s32 1, %s20
  $region7: #{skip_transformer_forward.3} parent=0 // loop_footer_branch
    %19 = sbr.rel target = $region3
  $region8: #{skip_transformer_forward.3} parent=0 // loop_exit
    _

</llo_original>
